<compile_context>
chip_gen: v7x
topology: tpu7x:2x2x1
jax: 0.10.0
libtpu: 0.0.40
codegen_flags: <defaults>
</compile_context>

<pallas_src>
import functools

import jax
import jax.numpy as jnp
from jax.experimental import pallas as pl
from jax.experimental.pallas import tpu as pltpu


def _round_up(x, m):
    return ((x + m - 1) // m) * m


def _vmem_budget_bytes():
    """Physical VMEM minus headroom, per TPU generation (fallback: 64 MiB)."""
    try:
        cap = int(pltpu.get_tpu_info().vmem_capacity_bytes)
    except Exception:
        cap = 64 << 20
    return max(cap - (16 << 20), 16 << 20)


def _conv_bn_lrelu_kernel(w_ref, shift_ref, x_hbm, o_ref,
                          slab_ref, patch_ref, sem_ref, *,
                          taps, cin, tc, n_sub, tq, slab_len, nq, alpha):
    # w_ref:     (Cout, K)            BN-scale-folded weights, K = size^3*Cin (tap-major)
    # shift_ref: (Cout, 1)            BN additive shift (f32)
    # x_hbm:     (N, Cin, Qp)         flattened padded activations (HBM, pl.ANY)
    # o_ref:     (Cout, tq)           lane-dense output tile (leading batch dim squeezed)
    # slab_ref:  (2, Cin, slab_len)   double-buffered input slab (VMEM scratch)
    # patch_ref: (K, tc)              per-sub-chunk K-stacked im2col patch (VMEM scratch)
    c = pl.program_id(0)          # q-split index (v7x megacore)
    n = pl.program_id(1)          # batch element
    j = pl.program_id(2)          # tile index within this (c, n) sweep
    q = c * nq + j                # global tile index
    slot = j % 2

    def slab_copy(q_idx, slot_idx):
        # Identical descriptor is rebuilt for start() and wait() (same n, same base).
        b0 = pl.multiple_of(q_idx * tq, 128)
        return pltpu.make_async_copy(
            x_hbm.at[n, :, pl.ds(b0, slab_len)],
            slab_ref.at[slot_idx],
            sem_ref.at[slot_idx],
        )

    # Prime the per-(c, n) prefetch chain.
    @pl.when(j == 0)
    def _():
        slab_copy(q, slot).start()

    # Wait for this step's slab (started by the prime or the previous step).
    slab_copy(q, slot).wait()

    # Prefetch the next slab of the same sweep; overlaps with compute below.
    @pl.when(j + 1 < nq)
    def _():
        slab_copy(q + 1, 1 - slot).start()

    cur = slab_ref.at[slot]                 # (Cin, slab_len) view, no load
    w2 = w_ref[...]                         # (Cout, K)
    shift = shift_ref[...]                  # (Cout, 1) f32

    # Static sub-chunk loop: all slice offsets below are compile-time constants.
    for s in range(n_sub):
        cb = s * tc
        # In-VMEM im2col: absorb the misaligned tap shifts into the patch build.
        for t, off in enumerate(taps):
            patch_ref[t * cin:(t + 1) * cin, :] = cur[:, cb + off:cb + off + tc]
        # One K-stacked MXU matmul per sub-chunk (f32 accumulation).
        y = jnp.dot(w2, patch_ref[...], preferred_element_type=jnp.float32)
        y = y + shift                                         # folded BN shift
        y = jnp.where(y >= 0.0, y, alpha * y)                 # LeakyReLU
        o_ref[:, cb:cb + tc] = y.astype(o_ref.dtype)


def conv_block_3d(x, conv_w, gamma, beta, running_mean, running_var, *,
                  size, stride, alpha=0.2, eps=1e-5,
                  tc=1024, n_sub_max=4,
                  compute_dtype=jnp.float32, out_dtype=None):
    """ConvBlock3d forward. x: (N, Cin, D, H, W) NCDHW -> (N, Cout, Do, Ho, Wo)."""
    assert tc % 128 == 0, "tc must be a multiple of 128 (lane-dense tiles)"
    out_dtype = compute_dtype if out_dtype is None else out_dtype
    N, Cin, D, H, W = x.shape
    Cout = conv_w.shape[0]

    # --- padding, identical to the PyTorch forward (stays in NCDHW) -------------
    if stride == 1:
        x = jnp.pad(x, ((0, 0), (0, 0), (0, 1), (0, 1), (0, 1)))
    p = (size - 1) // 2
    x = jnp.pad(x, ((0, 0), (0, 0), (p, p), (p, p), (p, p)))
    Dp, Hp, Wp = x.shape[2:]

    Do = (Dp - size) // stride + 1
    Ho = (Hp - size) // stride + 1
    Wo = (Wp - size) // stride + 1
    Dd = (Do - 1) * stride + 1
    Hd = (Ho - 1) * stride + 1
    Wd = (Wo - 1) * stride + 1

    plane = Hp * Wp
    B = Dd * plane                                   # dense (stride-1) output bases
    # Tap offsets in the flattened padded volume (tap-major order matches weights).
    taps = tuple(kd * plane + kh * Wp + kw
                 for kd in range(size) for kh in range(size) for kw in range(size))
    halo = taps[-1]
    K = size ** 3 * Cin

    esz = jnp.dtype(compute_dtype).itemsize
    oesz = jnp.dtype(out_dtype).itemsize
    budget = _vmem_budget_bytes()

    # Tile sizing: big tiles amortize the depth halo; shrink to fit VMEM.
    n_sub = max(1, min(n_sub_max, pl.cdiv(B, tc)))

    def _vmem_need(tc_, n_sub_):
        tq_ = n_sub_ * tc_
        sl = _round_up(tq_ + halo, 128)
        return (2 * Cin * sl * esz                 # double-buffered slab
                + K * tc_ * esz                    # patch scratch
                + 2 * Cout * tq_ * oesz            # double-buffered output tile
                + 2 * (Cout * K * esz + Cout * 4)  # weights + shift
                + (4 << 20))                       # Mosaic-internal headroom

    while n_sub > 1 and _vmem_need(tc, n_sub) > budget:
        n_sub -= 1
    while tc > 256 and _vmem_need(tc, n_sub) > budget:
        tc //= 2
    tq = n_sub * tc

    nq_total = pl.cdiv(B, tq)
    qs = 2 if nq_total >= 4 else 1                 # split q sweep across v7x cores
    nq = pl.cdiv(nq_total, qs)
    total_tiles = qs * nq
    B_pad = total_tiles * tq
    slab_len = _round_up(tq + halo, 128)

    # Flatten spatial dims; zero-pad so every slab DMA stays in bounds.
    Q = Dp * Hp * Wp
    Qp = _round_up(max(Q, (total_tiles - 1) * tq + slab_len), 128)
    x_flat = x.reshape(N, Cin, Q).astype(compute_dtype)
    if Qp > Q:
        x_flat = jnp.pad(x_flat, ((0, 0), (0, 0), (0, Qp - Q)))

    # Fold eval-mode BN scale into the conv weights; keep only the additive shift.
    inv_std = 1.0 / jnp.sqrt(running_var.astype(jnp.float32) + eps)
    scale = gamma.astype(jnp.float32) * inv_std
    shift = beta.astype(jnp.float32) - running_mean.astype(jnp.float32) * scale
    w_scaled = conv_w.astype(jnp.float32) * scale[:, None, None, None, None]
    # (Cout, Cin, kd, kh, kw) -> (Cout, kd, kh, kw, Cin) -> (Cout, size^3*Cin):
    # columns are tap-major / cin-minor, matching the patch-matrix row order.
    w2 = jnp.transpose(w_scaled, (0, 2, 3, 4, 1)).reshape(Cout, K).astype(compute_dtype)
    shift2 = shift.reshape(Cout, 1)

    kernel = functools.partial(
        _conv_bn_lrelu_kernel,
        taps=taps, cin=Cin, tc=tc, n_sub=n_sub, tq=tq,
        slab_len=slab_len, nq=nq, alpha=float(alpha))

    out = pl.pallas_call(
        kernel,
        out_shape=jax.ShapeDtypeStruct((N, Cout, B_pad), out_dtype),
        grid_spec=pltpu.PrefetchScalarGridSpec(
            num_scalar_prefetch=0,
            grid=(qs, N, nq),
            in_specs=[
                # Folded weights + shift: constant index_map -> fetched once.
                pl.BlockSpec((Cout, K), lambda c, n, j: (0, 0)),
                pl.BlockSpec((Cout, 1), lambda c, n, j: (0, 0)),
                # Activations stay in HBM; the kernel DMAs halo'd slabs itself.
                pl.BlockSpec(memory_space=pl.ANY),
            ],
            out_specs=pl.BlockSpec((None, Cout, tq),
                                   lambda c, n, j: (n, 0, c * nq + j)),
            scratch_shapes=[
                pltpu.VMEM((2, Cin, slab_len), compute_dtype),
                pltpu.VMEM((K, tc), compute_dtype),
                pltpu.SemaphoreType.DMA((2,)),
            ]),
        compiler_params=pltpu.CompilerParams(
            # (q-split, batch) shard across TensorCores; the q axis is the
            # sequential sweep that carries the manual slab prefetch chain.
            dimension_semantics=("parallel", "parallel", "arbitrary"),
            vmem_limit_bytes=int(budget)),
    )(w2, shift2, x_flat)

    # Keep valid dense bases, un-flatten, subsample for stride > 1, drop padding.
    out = out[:, :, :B].reshape(N, Cout, Dd, Hp, Wp)
    out = out[:, :, ::stride, :Hd:stride, :Wd:stride]
    return out


def _ref_forward(x, conv_w, gamma, beta, mean, var, *, size, stride,
                 alpha=0.2, eps=1e-5):
    """Pure-JAX reference mirroring the PyTorch forward (eval-mode BN)."""
    if stride == 1:
        x = jnp.pad(x, ((0, 0), (0, 0), (0, 1), (0, 1), (0, 1)))
    p = (size - 1) // 2
    y = jax.lax.conv_general_dilated(
        x, conv_w, window_strides=(stride,) * 3, padding=[(p, p)] * 3,
        dimension_numbers=('NCDHW', 'OIDHW', 'NCDHW'))
    scale = gamma / jnp.sqrt(var + eps)
    shift = beta - mean * scale
    y = y * scale[None, :, None, None, None] + shift[None, :, None, None, None]
    return jnp.where(y >= 0, y, alpha * y)


if __name__ == "__main__":
    key = jax.random.PRNGKey(0)

    def make_inputs(k, N, Cin, D, Cout, size):
        kx, kw, kg, kb, km, kv = jax.random.split(k, 6)
        x = jax.random.normal(kx, (N, Cin, D, D, D), jnp.float32)
        conv_w = 0.1 * jax.random.normal(kw, (Cout, Cin, size, size, size), jnp.float32)
        gamma = 1.0 + 0.1 * jax.random.normal(kg, (Cout,), jnp.float32)
        beta = 0.1 * jax.random.normal(kb, (Cout,), jnp.float32)
        mean = 0.1 * jax.random.normal(km, (Cout,), jnp.float32)
        var = jnp.abs(jax.random.normal(kv, (Cout,), jnp.float32)) + 0.5
        return x, conv_w, gamma, beta, mean, var

    def check(name, k, *, N, Cin, D, Cout, size, stride, atol, rtol, **kw):
        x, conv_w, gamma, beta, mean, var = make_inputs(k, N, Cin, D, Cout, size)
        ref = _ref_forward(x, conv_w, gamma, beta, mean, var,
                           size=size, stride=stride, alpha=0.2)
        out = conv_block_3d(x, conv_w, gamma, beta, mean, var,
                            size=size, stride=stride, alpha=0.2, **kw)
        out = jax.block_until_ready(out)
        assert out.shape == ref.shape, (name, out.shape, ref.shape)
        if not jnp.allclose(out.astype(jnp.float32), ref, atol=atol, rtol=rtol):
            err = float(jnp.max(jnp.abs(out.astype(jnp.float32) - ref)))
            raise AssertionError(f"Pallas ConvBlock3d mismatch ({name}): max abs err {err}")

    k1, k2, k3, _ = jax.random.split(key, 4)

    # ConvBlock3d(4, 8, size=4, strides=1) on a small voxel grid, exact f32 path.
    check("f32_stride1", k1, N=2, Cin=4, D=8, Cout=8, size=4, stride=1,
          atol=1e-3, rtol=1e-3, compute_dtype=jnp.float32)

    # bf16 compute + bf16 output (halves HBM/VMEM traffic); loose tolerance since
    # activations/weights are rounded to bf16 before the matmul (accum stays f32).
    check("bf16_stride1", k1, N=2, Cin=4, D=8, Cout=8, size=4, stride=1,
          atol=1e-1, rtol=1e-1, compute_dtype=jnp.bfloat16)

    # Downsampling block: stride 2.
    check("f32_stride2", k2, N=2, Cin=4, D=8, Cout=8, size=4, stride=2,
          atol=1e-3, rtol=1e-3, compute_dtype=jnp.float32)

    # Larger volume: exercises multi-tile slab prefetch chains, multi-sub-chunk
    # kernel bodies and the q-split (two parallel sweeps / v7x megacore path).
    check("f32_multitile", k3, N=1, Cin=4, D=32, Cout=8, size=4, stride=1,
          atol=1e-3, rtol=1e-3, compute_dtype=jnp.float32, tc=512, n_sub_max=2)

    print("KERNEL_OK")
</pallas_src>

<mosaic_0001>
module attributes {stable_mosaic.version = 11 : i64} {
  func.func @_conv_bn_lrelu_kernel(%arg0: i32, %arg1: i32, %arg2: i32, %arg3: memref<8x256xf32, #tpu.memory_space<vmem>>, %arg4: memref<8x1xf32, #tpu.memory_space<vmem>>, %arg5: memref<2x4x1536xf32, #tpu.memory_space<any>>, %arg6: memref<1x8x1024xf32, #tpu.memory_space<vmem>>, %arg7: memref<2x4x1536xf32, #tpu.memory_space<vmem>>, %arg8: memref<256x1024xf32, #tpu.memory_space<vmem>>, %arg9: memref<2x!tpu.dma_semaphore, #tpu.memory_space<semaphore_mem>>) attributes {dimension_semantics = [#tpu.dimension_semantics<parallel>, #tpu.dimension_semantics<parallel>, #tpu.dimension_semantics<arbitrary>], iteration_bounds = array<i64: 1, 2, 1>, scalar_prefetch = 0 : i64, scratch_operands = 3 : i64, tpu.core_type = #tpu.core_type<tc>, window_params = [{pipeline_mode = #tpu.pipeline_mode<synchronous>, transform_indices = @transform_0, window_bounds = array<i64: 8, 256>}, {pipeline_mode = #tpu.pipeline_mode<synchronous>, transform_indices = @transform_1, window_bounds = array<i64: 8, 1>}, {}, {transform_indices = @transform_3, window_bounds = array<i64: 1, 8, 1024>}]} {
    %c1_i32 = arith.constant 1 : i32
    %0 = arith.muli %arg0, %c1_i32 : i32
    %1 = arith.addi %0, %arg2 : i32
    %c2_i32 = arith.constant 2 : i32
    %c0_i32 = arith.constant 0 : i32
    %2 = arith.cmpi eq, %c2_i32, %c0_i32 : i32
    %c1_i32_0 = arith.constant 1 : i32
    %3 = arith.select %2, %c1_i32_0, %c2_i32 : i32
    %4 = arith.remsi %arg2, %3 : i32
    %c0_i32_1 = arith.constant 0 : i32
    %5 = arith.cmpi ne, %4, %c0_i32_1 : i32
    %c0_i32_2 = arith.constant 0 : i32
    %6 = arith.cmpi slt, %4, %c0_i32_2 : i32
    %c0_i32_3 = arith.constant 0 : i32
    %7 = arith.cmpi slt, %3, %c0_i32_3 : i32
    %8 = arith.xori %6, %7 : i1
    %9 = arith.andi %8, %5 : i1
    %10 = arith.addi %4, %3 : i32
    %11 = arith.select %9, %10, %4 : i32
    %c0_i32_4 = arith.constant 0 : i32
    %12 = arith.cmpi eq, %arg2, %c0_i32_4 : i32
    %13 = arith.extui %12 : i1 to i32
    %c0_i32_5 = arith.constant 0 : i32
    %14 = arith.cmpi ne, %13, %c0_i32_5 : i32
    scf.if %14 {
      %c1024_i32_288 = arith.constant 1024 : i32
      %297 = arith.muli %1, %c1024_i32_288 : i32
      %298 = tpu.assume_multiple %297, 128 : i32
      %c0_i32_289 = arith.constant 0 : i32
      %299 = tpu.memref_slice %arg5[%arg1, %c0_i32_289, %298] : memref<2x4x1536xf32, #tpu.memory_space<any>> -> memref<1x4x1536xf32, #tpu.memory_space<any>>
      %300 = tpu.memref_squeeze %299 : memref<1x4x1536xf32, #tpu.memory_space<any>> -> memref<4x1536xf32, #tpu.memory_space<any>>
      %c0_i32_290 = arith.constant 0 : i32
      %c0_i32_291 = arith.constant 0 : i32
      %301 = tpu.memref_slice %arg7[%11, %c0_i32_290, %c0_i32_291] : memref<2x4x1536xf32, #tpu.memory_space<vmem>> -> memref<1x4x1536xf32, #tpu.memory_space<vmem>>
      %302 = tpu.memref_squeeze %301 : memref<1x4x1536xf32, #tpu.memory_space<vmem>> -> memref<4x1536xf32, #tpu.memory_space<vmem>>
      %303 = tpu.memref_slice %arg9[%11] : memref<2x!tpu.dma_semaphore, #tpu.memory_space<semaphore_mem>> -> memref<1x!tpu.dma_semaphore, #tpu.memory_space<semaphore_mem>>
      %304 = tpu.memref_squeeze %303 : memref<1x!tpu.dma_semaphore, #tpu.memory_space<semaphore_mem>> -> memref<!tpu.dma_semaphore, #tpu.memory_space<semaphore_mem>>
      tpu.enqueue_dma source(%300 : memref<4x1536xf32, #tpu.memory_space<any>>) target(%302 : memref<4x1536xf32, #tpu.memory_space<vmem>>) target_semaphore(%304 : memref<!tpu.dma_semaphore, #tpu.memory_space<semaphore_mem>>)
    } else {
    }
    %c1024_i32 = arith.constant 1024 : i32
    %15 = arith.muli %1, %c1024_i32 : i32
    %16 = tpu.assume_multiple %15, 128 : i32
    %c0_i32_6 = arith.constant 0 : i32
    %17 = tpu.memref_slice %arg5[%arg1, %c0_i32_6, %16] : memref<2x4x1536xf32, #tpu.memory_space<any>> -> memref<1x4x1536xf32, #tpu.memory_space<any>>
    %18 = tpu.memref_squeeze %17 : memref<1x4x1536xf32, #tpu.memory_space<any>> -> memref<4x1536xf32, #tpu.memory_space<any>>
    %c0_i32_7 = arith.constant 0 : i32
    %c0_i32_8 = arith.constant 0 : i32
    %19 = tpu.memref_slice %arg7[%11, %c0_i32_7, %c0_i32_8] : memref<2x4x1536xf32, #tpu.memory_space<vmem>> -> memref<1x4x1536xf32, #tpu.memory_space<vmem>>
    %20 = tpu.memref_squeeze %19 : memref<1x4x1536xf32, #tpu.memory_space<vmem>> -> memref<4x1536xf32, #tpu.memory_space<vmem>>
    %21 = tpu.memref_slice %arg9[%11] : memref<2x!tpu.dma_semaphore, #tpu.memory_space<semaphore_mem>> -> memref<1x!tpu.dma_semaphore, #tpu.memory_space<semaphore_mem>>
    %22 = tpu.memref_squeeze %21 : memref<1x!tpu.dma_semaphore, #tpu.memory_space<semaphore_mem>> -> memref<!tpu.dma_semaphore, #tpu.memory_space<semaphore_mem>>
    tpu.wait_dma2 semaphore(%22 : memref<!tpu.dma_semaphore, #tpu.memory_space<semaphore_mem>>) src(%18 : memref<4x1536xf32, #tpu.memory_space<any>>) dst(%20 : memref<4x1536xf32, #tpu.memory_space<vmem>>)
    %c1_i32_9 = arith.constant 1 : i32
    %23 = arith.addi %arg2, %c1_i32_9 : i32
    %c1_i32_10 = arith.constant 1 : i32
    %24 = arith.cmpi slt, %23, %c1_i32_10 : i32
    %25 = arith.extui %24 : i1 to i32
    %c0_i32_11 = arith.constant 0 : i32
    %26 = arith.cmpi ne, %25, %c0_i32_11 : i32
    scf.if %26 {
      %c1_i32_288 = arith.constant 1 : i32
      %297 = arith.addi %1, %c1_i32_288 : i32
      %c1_i32_289 = arith.constant 1 : i32
      %298 = arith.subi %c1_i32_289, %11 : i32
      %c1024_i32_290 = arith.constant 1024 : i32
      %299 = arith.muli %297, %c1024_i32_290 : i32
      %300 = tpu.assume_multiple %299, 128 : i32
      %c0_i32_291 = arith.constant 0 : i32
      %301 = tpu.memref_slice %arg5[%arg1, %c0_i32_291, %300] : memref<2x4x1536xf32, #tpu.memory_space<any>> -> memref<1x4x1536xf32, #tpu.memory_space<any>>
      %302 = tpu.memref_squeeze %301 : memref<1x4x1536xf32, #tpu.memory_space<any>> -> memref<4x1536xf32, #tpu.memory_space<any>>
      %c0_i32_292 = arith.constant 0 : i32
      %c0_i32_293 = arith.constant 0 : i32
      %303 = tpu.memref_slice %arg7[%298, %c0_i32_292, %c0_i32_293] : memref<2x4x1536xf32, #tpu.memory_space<vmem>> -> memref<1x4x1536xf32, #tpu.memory_space<vmem>>
      %304 = tpu.memref_squeeze %303 : memref<1x4x1536xf32, #tpu.memory_space<vmem>> -> memref<4x1536xf32, #tpu.memory_space<vmem>>
      %305 = tpu.memref_slice %arg9[%298] : memref<2x!tpu.dma_semaphore, #tpu.memory_space<semaphore_mem>> -> memref<1x!tpu.dma_semaphore, #tpu.memory_space<semaphore_mem>>
      %306 = tpu.memref_squeeze %305 : memref<1x!tpu.dma_semaphore, #tpu.memory_space<semaphore_mem>> -> memref<!tpu.dma_semaphore, #tpu.memory_space<semaphore_mem>>
      tpu.enqueue_dma source(%302 : memref<4x1536xf32, #tpu.memory_space<any>>) target(%304 : memref<4x1536xf32, #tpu.memory_space<vmem>>) target_semaphore(%306 : memref<!tpu.dma_semaphore, #tpu.memory_space<semaphore_mem>>)
    } else {
    }
    %c0 = arith.constant 0 : index
    %c0_12 = arith.constant 0 : index
    %27 = vector.load %arg3[%c0, %c0_12] : memref<8x256xf32, #tpu.memory_space<vmem>>, vector<8x256xf32>
    %c0_13 = arith.constant 0 : index
    %c0_14 = arith.constant 0 : index
    %28 = vector.load %arg4[%c0_13, %c0_14] : memref<8x1xf32, #tpu.memory_space<vmem>>, vector<8x1xf32>
    %c0_i32_15 = arith.constant 0 : i32
    %c0_i32_16 = arith.constant 0 : i32
    %29 = tpu.memref_slice %arg7[%11, %c0_i32_15, %c0_i32_16] : memref<2x4x1536xf32, #tpu.memory_space<vmem>> -> memref<1x4x1536xf32, #tpu.memory_space<vmem>>
    %30 = tpu.memref_squeeze %29 : memref<1x4x1536xf32, #tpu.memory_space<vmem>> -> memref<4x1536xf32, #tpu.memory_space<vmem>>
    %c0_17 = arith.constant 0 : index
    %c0_18 = arith.constant 0 : index
    %31 = vector.load %30[%c0_17, %c0_18] : memref<4x1536xf32, #tpu.memory_space<vmem>>, vector<4x1024xf32>
    %c0_19 = arith.constant 0 : index
    %c0_20 = arith.constant 0 : index
    %32 = vector.load %arg8[%c0_19, %c0_20] : memref<256x1024xf32, #tpu.memory_space<vmem>>, vector<4x1024xf32>
    tpu.vector_store %arg8[%c0_19, %c0_20], %31 {strides = array<i32>} : memref<256x1024xf32, #tpu.memory_space<vmem>>, vector<4x1024xf32>,
    %c0_i32_21 = arith.constant 0 : i32
    %c0_i32_22 = arith.constant 0 : i32
    %33 = tpu.memref_slice %arg7[%11, %c0_i32_21, %c0_i32_22] : memref<2x4x1536xf32, #tpu.memory_space<vmem>> -> memref<1x4x1536xf32, #tpu.memory_space<vmem>>
    %34 = tpu.memref_squeeze %33 : memref<1x4x1536xf32, #tpu.memory_space<vmem>> -> memref<4x1536xf32, #tpu.memory_space<vmem>>
    %c0_23 = arith.constant 0 : index
    %c1 = arith.constant 1 : index
    %35 = vector.load %34[%c0_23, %c1] : memref<4x1536xf32, #tpu.memory_space<vmem>>, vector<4x1024xf32>
    %c4 = arith.constant 4 : index
    %c0_24 = arith.constant 0 : index
    %36 = vector.load %arg8[%c4, %c0_24] : memref<256x1024xf32, #tpu.memory_space<vmem>>, vector<4x1024xf32>
    tpu.vector_store %arg8[%c4, %c0_24], %35 {strides = array<i32>} : memref<256x1024xf32, #tpu.memory_space<vmem>>, vector<4x1024xf32>,
    %c0_i32_25 = arith.constant 0 : i32
    %c0_i32_26 = arith.constant 0 : i32
    %37 = tpu.memref_slice %arg7[%11, %c0_i32_25, %c0_i32_26] : memref<2x4x1536xf32, #tpu.memory_space<vmem>> -> memref<1x4x1536xf32, #tpu.memory_space<vmem>>
    %38 = tpu.memref_squeeze %37 : memref<1x4x1536xf32, #tpu.memory_space<vmem>> -> memref<4x1536xf32, #tpu.memory_space<vmem>>
    %c0_27 = arith.constant 0 : index
    %c2 = arith.constant 2 : index
    %39 = vector.load %38[%c0_27, %c2] : memref<4x1536xf32, #tpu.memory_space<vmem>>, vector<4x1024xf32>
    %c8 = arith.constant 8 : index
    %c0_28 = arith.constant 0 : index
    %40 = vector.load %arg8[%c8, %c0_28] : memref<256x1024xf32, #tpu.memory_space<vmem>>, vector<4x1024xf32>
    tpu.vector_store %arg8[%c8, %c0_28], %39 {strides = array<i32>} : memref<256x1024xf32, #tpu.memory_space<vmem>>, vector<4x1024xf32>,
    %c0_i32_29 = arith.constant 0 : i32
    %c0_i32_30 = arith.constant 0 : i32
    %41 = tpu.memref_slice %arg7[%11, %c0_i32_29, %c0_i32_30] : memref<2x4x1536xf32, #tpu.memory_space<vmem>> -> memref<1x4x1536xf32, #tpu.memory_space<vmem>>
    %42 = tpu.memref_squeeze %41 : memref<1x4x1536xf32, #tpu.memory_space<vmem>> -> memref<4x1536xf32, #tpu.memory_space<vmem>>
    %c0_31 = arith.constant 0 : index
    %c3 = arith.constant 3 : index
    %43 = vector.load %42[%c0_31, %c3] : memref<4x1536xf32, #tpu.memory_space<vmem>>, vector<4x1024xf32>
    %c12 = arith.constant 12 : index
    %c0_32 = arith.constant 0 : index
    %44 = vector.load %arg8[%c12, %c0_32] : memref<256x1024xf32, #tpu.memory_space<vmem>>, vector<4x1024xf32>
    tpu.vector_store %arg8[%c12, %c0_32], %43 {strides = array<i32>} : memref<256x1024xf32, #tpu.memory_space<vmem>>, vector<4x1024xf32>,
    %c0_i32_33 = arith.constant 0 : i32
    %c0_i32_34 = arith.constant 0 : i32
    %45 = tpu.memref_slice %arg7[%11, %c0_i32_33, %c0_i32_34] : memref<2x4x1536xf32, #tpu.memory_space<vmem>> -> memref<1x4x1536xf32, #tpu.memory_space<vmem>>
    %46 = tpu.memref_squeeze %45 : memref<1x4x1536xf32, #tpu.memory_space<vmem>> -> memref<4x1536xf32, #tpu.memory_space<vmem>>
    %c0_35 = arith.constant 0 : index
    %c11 = arith.constant 11 : index
    %47 = vector.load %46[%c0_35, %c11] : memref<4x1536xf32, #tpu.memory_space<vmem>>, vector<4x1024xf32>
    %c16 = arith.constant 16 : index
    %c0_36 = arith.constant 0 : index
    %48 = vector.load %arg8[%c16, %c0_36] : memref<256x1024xf32, #tpu.memory_space<vmem>>, vector<4x1024xf32>
    tpu.vector_store %arg8[%c16, %c0_36], %47 {strides = array<i32>} : memref<256x1024xf32, #tpu.memory_space<vmem>>, vector<4x1024xf32>,
    %c0_i32_37 = arith.constant 0 : i32
    %c0_i32_38 = arith.constant 0 : i32
    %49 = tpu.memref_slice %arg7[%11, %c0_i32_37, %c0_i32_38] : memref<2x4x1536xf32, #tpu.memory_space<vmem>> -> memref<1x4x1536xf32, #tpu.memory_space<vmem>>
    %50 = tpu.memref_squeeze %49 : memref<1x4x1536xf32, #tpu.memory_space<vmem>> -> memref<4x1536xf32, #tpu.memory_space<vmem>>
    %c0_39 = arith.constant 0 : index
    %c12_40 = arith.constant 12 : index
    %51 = vector.load %50[%c0_39, %c12_40] : memref<4x1536xf32, #tpu.memory_space<vmem>>, vector<4x1024xf32>
    %c20 = arith.constant 20 : index
    %c0_41 = arith.constant 0 : index
    %52 = vector.load %arg8[%c20, %c0_41] : memref<256x1024xf32, #tpu.memory_space<vmem>>, vector<4x1024xf32>
    tpu.vector_store %arg8[%c20, %c0_41], %51 {strides = array<i32>} : memref<256x1024xf32, #tpu.memory_space<vmem>>, vector<4x1024xf32>,
    %c0_i32_42 = arith.constant 0 : i32
    %c0_i32_43 = arith.constant 0 : i32
    %53 = tpu.memref_slice %arg7[%11, %c0_i32_42, %c0_i32_43] : memref<2x4x1536xf32, #tpu.memory_space<vmem>> -> memref<1x4x1536xf32, #tpu.memory_space<vmem>>
    %54 = tpu.memref_squeeze %53 : memref<1x4x1536xf32, #tpu.memory_space<vmem>> -> memref<4x1536xf32, #tpu.memory_space<vmem>>
    %c0_44 = arith.constant 0 : index
    %c13 = arith.constant 13 : index
    %55 = vector.load %54[%c0_44, %c13] : memref<4x1536xf32, #tpu.memory_space<vmem>>, vector<4x1024xf32>
    %c24 = arith.constant 24 : index
    %c0_45 = arith.constant 0 : index
    %56 = vector.load %arg8[%c24, %c0_45] : memref<256x1024xf32, #tpu.memory_space<vmem>>, vector<4x1024xf32>
    tpu.vector_store %arg8[%c24, %c0_45], %55 {strides = array<i32>} : memref<256x1024xf32, #tpu.memory_space<vmem>>, vector<4x1024xf32>,
    %c0_i32_46 = arith.constant 0 : i32
    %c0_i32_47 = arith.constant 0 : i32
    %57 = tpu.memref_slice %arg7[%11, %c0_i32_46, %c0_i32_47] : memref<2x4x1536xf32, #tpu.memory_space<vmem>> -> memref<1x4x1536xf32, #tpu.memory_space<vmem>>
    %58 = tpu.memref_squeeze %57 : memref<1x4x1536xf32, #tpu.memory_space<vmem>> -> memref<4x1536xf32, #tpu.memory_space<vmem>>
    %c0_48 = arith.constant 0 : index
    %c14 = arith.constant 14 : index
    %59 = vector.load %58[%c0_48, %c14] : memref<4x1536xf32, #tpu.memory_space<vmem>>, vector<4x1024xf32>
    %c28 = arith.constant 28 : index
    %c0_49 = arith.constant 0 : index
    %60 = vector.load %arg8[%c28, %c0_49] : memref<256x1024xf32, #tpu.memory_space<vmem>>, vector<4x1024xf32>
    tpu.vector_store %arg8[%c28, %c0_49], %59 {strides = array<i32>} : memref<256x1024xf32, #tpu.memory_space<vmem>>, vector<4x1024xf32>,
    %c0_i32_50 = arith.constant 0 : i32
    %c0_i32_51 = arith.constant 0 : i32
    %61 = tpu.memref_slice %arg7[%11, %c0_i32_50, %c0_i32_51] : memref<2x4x1536xf32, #tpu.memory_space<vmem>> -> memref<1x4x1536xf32, #tpu.memory_space<vmem>>
    %62 = tpu.memref_squeeze %61 : memref<1x4x1536xf32, #tpu.memory_space<vmem>> -> memref<4x1536xf32, #tpu.memory_space<vmem>>
    %c0_52 = arith.constant 0 : index
    %c22 = arith.constant 22 : index
    %63 = vector.load %62[%c0_52, %c22] : memref<4x1536xf32, #tpu.memory_space<vmem>>, vector<4x1024xf32>
    %c32 = arith.constant 32 : index
    %c0_53 = arith.constant 0 : index
    %64 = vector.load %arg8[%c32, %c0_53] : memref<256x1024xf32, #tpu.memory_space<vmem>>, vector<4x1024xf32>
    tpu.vector_store %arg8[%c32, %c0_53], %63 {strides = array<i32>} : memref<256x1024xf32, #tpu.memory_space<vmem>>, vector<4x1024xf32>,
    %c0_i32_54 = arith.constant 0 : i32
    %c0_i32_55 = arith.constant 0 : i32
    %65 = tpu.memref_slice %arg7[%11, %c0_i32_54, %c0_i32_55] : memref<2x4x1536xf32, #tpu.memory_space<vmem>> -> memref<1x4x1536xf32, #tpu.memory_space<vmem>>
    %66 = tpu.memref_squeeze %65 : memref<1x4x1536xf32, #tpu.memory_space<vmem>> -> memref<4x1536xf32, #tpu.memory_space<vmem>>
    %c0_56 = arith.constant 0 : index
    %c23 = arith.constant 23 : index
    %67 = vector.load %66[%c0_56, %c23] : memref<4x1536xf32, #tpu.memory_space<vmem>>, vector<4x1024xf32>
    %c36 = arith.constant 36 : index
    %c0_57 = arith.constant 0 : index
    %68 = vector.load %arg8[%c36, %c0_57] : memref<256x1024xf32, #tpu.memory_space<vmem>>, vector<4x1024xf32>
    tpu.vector_store %arg8[%c36, %c0_57], %67 {strides = array<i32>} : memref<256x1024xf32, #tpu.memory_space<vmem>>, vector<4x1024xf32>,
    %c0_i32_58 = arith.constant 0 : i32
    %c0_i32_59 = arith.constant 0 : i32
    %69 = tpu.memref_slice %arg7[%11, %c0_i32_58, %c0_i32_59] : memref<2x4x1536xf32, #tpu.memory_space<vmem>> -> memref<1x4x1536xf32, #tpu.memory_space<vmem>>
    %70 = tpu.memref_squeeze %69 : memref<1x4x1536xf32, #tpu.memory_space<vmem>> -> memref<4x1536xf32, #tpu.memory_space<vmem>>
    %c0_60 = arith.constant 0 : index
    %c24_61 = arith.constant 24 : index
    %71 = vector.load %70[%c0_60, %c24_61] : memref<4x1536xf32, #tpu.memory_space<vmem>>, vector<4x1024xf32>
    %c40 = arith.constant 40 : index
    %c0_62 = arith.constant 0 : index
    %72 = vector.load %arg8[%c40, %c0_62] : memref<256x1024xf32, #tpu.memory_space<vmem>>, vector<4x1024xf32>
    tpu.vector_store %arg8[%c40, %c0_62], %71 {strides = array<i32>} : memref<256x1024xf32, #tpu.memory_space<vmem>>, vector<4x1024xf32>,
    %c0_i32_63 = arith.constant 0 : i32
    %c0_i32_64 = arith.constant 0 : i32
    %73 = tpu.memref_slice %arg7[%11, %c0_i32_63, %c0_i32_64] : memref<2x4x1536xf32, #tpu.memory_space<vmem>> -> memref<1x4x1536xf32, #tpu.memory_space<vmem>>
    %74 = tpu.memref_squeeze %73 : memref<1x4x1536xf32, #tpu.memory_space<vmem>> -> memref<4x1536xf32, #tpu.memory_space<vmem>>
    %c0_65 = arith.constant 0 : index
    %c25 = arith.constant 25 : index
    %75 = vector.load %74[%c0_65, %c25] : memref<4x1536xf32, #tpu.memory_space<vmem>>, vector<4x1024xf32>
    %c44 = arith.constant 44 : index
    %c0_66 = arith.constant 0 : index
    %76 = vector.load %arg8[%c44, %c0_66] : memref<256x1024xf32, #tpu.memory_space<vmem>>, vector<4x1024xf32>
    tpu.vector_store %arg8[%c44, %c0_66], %75 {strides = array<i32>} : memref<256x1024xf32, #tpu.memory_space<vmem>>, vector<4x1024xf32>,
    %c0_i32_67 = arith.constant 0 : i32
    %c0_i32_68 = arith.constant 0 : i32
    %77 = tpu.memref_slice %arg7[%11, %c0_i32_67, %c0_i32_68] : memref<2x4x1536xf32, #tpu.memory_space<vmem>> -> memref<1x4x1536xf32, #tpu.memory_space<vmem>>
    %78 = tpu.memref_squeeze %77 : memref<1x4x1536xf32, #tpu.memory_space<vmem>> -> memref<4x1536xf32, #tpu.memory_space<vmem>>
    %c0_69 = arith.constant 0 : index
    %c33 = arith.constant 33 : index
    %79 = vector.load %78[%c0_69, %c33] : memref<4x1536xf32, #tpu.memory_space<vmem>>, vector<4x1024xf32>
    %c48 = arith.constant 48 : index
    %c0_70 = arith.constant 0 : index
    %80 = vector.load %arg8[%c48, %c0_70] : memref<256x1024xf32, #tpu.memory_space<vmem>>, vector<4x1024xf32>
    tpu.vector_store %arg8[%c48, %c0_70], %79 {strides = array<i32>} : memref<256x1024xf32, #tpu.memory_space<vmem>>, vector<4x1024xf32>,
    %c0_i32_71 = arith.constant 0 : i32
    %c0_i32_72 = arith.constant 0 : i32
    %81 = tpu.memref_slice %arg7[%11, %c0_i32_71, %c0_i32_72] : memref<2x4x1536xf32, #tpu.memory_space<vmem>> -> memref<1x4x1536xf32, #tpu.memory_space<vmem>>
    %82 = tpu.memref_squeeze %81 : memref<1x4x1536xf32, #tpu.memory_space<vmem>> -> memref<4x1536xf32, #tpu.memory_space<vmem>>
    %c0_73 = arith.constant 0 : index
    %c34 = arith.constant 34 : index
    %83 = vector.load %82[%c0_73, %c34] : memref<4x1536xf32, #tpu.memory_space<vmem>>, vector<4x1024xf32>
    %c52 = arith.constant 52 : index
    %c0_74 = arith.constant 0 : index
    %84 = vector.load %arg8[%c52, %c0_74] : memref<256x1024xf32, #tpu.memory_space<vmem>>, vector<4x1024xf32>
    tpu.vector_store %arg8[%c52, %c0_74], %83 {strides = array<i32>} : memref<256x1024xf32, #tpu.memory_space<vmem>>, vector<4x1024xf32>,
    %c0_i32_75 = arith.constant 0 : i32
    %c0_i32_76 = arith.constant 0 : i32
    %85 = tpu.memref_slice %arg7[%11, %c0_i32_75, %c0_i32_76] : memref<2x4x1536xf32, #tpu.memory_space<vmem>> -> memref<1x4x1536xf32, #tpu.memory_space<vmem>>
    %86 = tpu.memref_squeeze %85 : memref<1x4x1536xf32, #tpu.memory_space<vmem>> -> memref<4x1536xf32, #tpu.memory_space<vmem>>
    %c0_77 = arith.constant 0 : index
    %c35 = arith.constant 35 : index
    %87 = vector.load %86[%c0_77, %c35] : memref<4x1536xf32, #tpu.memory_space<vmem>>, vector<4x1024xf32>
    %c56 = arith.constant 56 : index
    %c0_78 = arith.constant 0 : index
    %88 = vector.load %arg8[%c56, %c0_78] : memref<256x1024xf32, #tpu.memory_space<vmem>>, vector<4x1024xf32>
    tpu.vector_store %arg8[%c56, %c0_78], %87 {strides = array<i32>} : memref<256x1024xf32, #tpu.memory_space<vmem>>, vector<4x1024xf32>,
    %c0_i32_79 = arith.constant 0 : i32
    %c0_i32_80 = arith.constant 0 : i32
    %89 = tpu.memref_slice %arg7[%11, %c0_i32_79, %c0_i32_80] : memref<2x4x1536xf32, #tpu.memory_space<vmem>> -> memref<1x4x1536xf32, #tpu.memory_space<vmem>>
    %90 = tpu.memref_squeeze %89 : memref<1x4x1536xf32, #tpu.memory_space<vmem>> -> memref<4x1536xf32, #tpu.memory_space<vmem>>
    %c0_81 = arith.constant 0 : index
    %c36_82 = arith.constant 36 : index
    %91 = vector.load %90[%c0_81, %c36_82] : memref<4x1536xf32, #tpu.memory_space<vmem>>, vector<4x1024xf32>
    %c60 = arith.constant 60 : index
    %c0_83 = arith.constant 0 : index
    %92 = vector.load %arg8[%c60, %c0_83] : memref<256x1024xf32, #tpu.memory_space<vmem>>, vector<4x1024xf32>
    tpu.vector_store %arg8[%c60, %c0_83], %91 {strides = array<i32>} : memref<256x1024xf32, #tpu.memory_space<vmem>>, vector<4x1024xf32>,
    %c0_i32_84 = arith.constant 0 : i32
    %c0_i32_85 = arith.constant 0 : i32
    %93 = tpu.memref_slice %arg7[%11, %c0_i32_84, %c0_i32_85] : memref<2x4x1536xf32, #tpu.memory_space<vmem>> -> memref<1x4x1536xf32, #tpu.memory_space<vmem>>
    %94 = tpu.memref_squeeze %93 : memref<1x4x1536xf32, #tpu.memory_space<vmem>> -> memref<4x1536xf32, #tpu.memory_space<vmem>>
    %c0_86 = arith.constant 0 : index
    %c121 = arith.constant 121 : index
    %95 = vector.load %94[%c0_86, %c121] : memref<4x1536xf32, #tpu.memory_space<vmem>>, vector<4x1024xf32>
    %c64 = arith.constant 64 : index
    %c0_87 = arith.constant 0 : index
    %96 = vector.load %arg8[%c64, %c0_87] : memref<256x1024xf32, #tpu.memory_space<vmem>>, vector<4x1024xf32>
    tpu.vector_store %arg8[%c64, %c0_87], %95 {strides = array<i32>} : memref<256x1024xf32, #tpu.memory_space<vmem>>, vector<4x1024xf32>,
    %c0_i32_88 = arith.constant 0 : i32
    %c0_i32_89 = arith.constant 0 : i32
    %97 = tpu.memref_slice %arg7[%11, %c0_i32_88, %c0_i32_89] : memref<2x4x1536xf32, #tpu.memory_space<vmem>> -> memref<1x4x1536xf32, #tpu.memory_space<vmem>>
    %98 = tpu.memref_squeeze %97 : memref<1x4x1536xf32, #tpu.memory_space<vmem>> -> memref<4x1536xf32, #tpu.memory_space<vmem>>
    %c0_90 = arith.constant 0 : index
    %c122 = arith.constant 122 : index
    %99 = vector.load %98[%c0_90, %c122] : memref<4x1536xf32, #tpu.memory_space<vmem>>, vector<4x1024xf32>
    %c68 = arith.constant 68 : index
    %c0_91 = arith.constant 0 : index
    %100 = vector.load %arg8[%c68, %c0_91] : memref<256x1024xf32, #tpu.memory_space<vmem>>, vector<4x1024xf32>
    tpu.vector_store %arg8[%c68, %c0_91], %99 {strides = array<i32>} : memref<256x1024xf32, #tpu.memory_space<vmem>>, vector<4x1024xf32>,
    %c0_i32_92 = arith.constant 0 : i32
    %c0_i32_93 = arith.constant 0 : i32
    %101 = tpu.memref_slice %arg7[%11, %c0_i32_92, %c0_i32_93] : memref<2x4x1536xf32, #tpu.memory_space<vmem>> -> memref<1x4x1536xf32, #tpu.memory_space<vmem>>
    %102 = tpu.memref_squeeze %101 : memref<1x4x1536xf32, #tpu.memory_space<vmem>> -> memref<4x1536xf32, #tpu.memory_space<vmem>>
    %c0_94 = arith.constant 0 : index
    %c123 = arith.constant 123 : index
    %103 = vector.load %102[%c0_94, %c123] : memref<4x1536xf32, #tpu.memory_space<vmem>>, vector<4x1024xf32>
    %c72 = arith.constant 72 : index
    %c0_95 = arith.constant 0 : index
    %104 = vector.load %arg8[%c72, %c0_95] : memref<256x1024xf32, #tpu.memory_space<vmem>>, vector<4x1024xf32>
    tpu.vector_store %arg8[%c72, %c0_95], %103 {strides = array<i32>} : memref<256x1024xf32, #tpu.memory_space<vmem>>, vector<4x1024xf32>,
    %c0_i32_96 = arith.constant 0 : i32
    %c0_i32_97 = arith.constant 0 : i32
    %105 = tpu.memref_slice %arg7[%11, %c0_i32_96, %c0_i32_97] : memref<2x4x1536xf32, #tpu.memory_space<vmem>> -> memref<1x4x1536xf32, #tpu.memory_space<vmem>>
    %106 = tpu.memref_squeeze %105 : memref<1x4x1536xf32, #tpu.memory_space<vmem>> -> memref<4x1536xf32, #tpu.memory_space<vmem>>
    %c0_98 = arith.constant 0 : index
    %c124 = arith.constant 124 : index
    %107 = vector.load %106[%c0_98, %c124] : memref<4x1536xf32, #tpu.memory_space<vmem>>, vector<4x1024xf32>
    %c76 = arith.constant 76 : index
    %c0_99 = arith.constant 0 : index
    %108 = vector.load %arg8[%c76, %c0_99] : memref<256x1024xf32, #tpu.memory_space<vmem>>, vector<4x1024xf32>
    tpu.vector_store %arg8[%c76, %c0_99], %107 {strides = array<i32>} : memref<256x1024xf32, #tpu.memory_space<vmem>>, vector<4x1024xf32>,
    %c0_i32_100 = arith.constant 0 : i32
    %c0_i32_101 = arith.constant 0 : i32
    %109 = tpu.memref_slice %arg7[%11, %c0_i32_100, %c0_i32_101] : memref<2x4x1536xf32, #tpu.memory_space<vmem>> -> memref<1x4x1536xf32, #tpu.memory_space<vmem>>
    %110 = tpu.memref_squeeze %109 : memref<1x4x1536xf32, #tpu.memory_space<vmem>> -> memref<4x1536xf32, #tpu.memory_space<vmem>>
    %c0_102 = arith.constant 0 : index
    %c132 = arith.constant 132 : index
    %111 = vector.load %110[%c0_102, %c132] : memref<4x1536xf32, #tpu.memory_space<vmem>>, vector<4x1024xf32>
    %c80 = arith.constant 80 : index
    %c0_103 = arith.constant 0 : index
    %112 = vector.load %arg8[%c80, %c0_103] : memref<256x1024xf32, #tpu.memory_space<vmem>>, vector<4x1024xf32>
    tpu.vector_store %arg8[%c80, %c0_103], %111 {strides = array<i32>} : memref<256x1024xf32, #tpu.memory_space<vmem>>, vector<4x1024xf32>,
    %c0_i32_104 = arith.constant 0 : i32
    %c0_i32_105 = arith.constant 0 : i32
    %113 = tpu.memref_slice %arg7[%11, %c0_i32_104, %c0_i32_105] : memref<2x4x1536xf32, #tpu.memory_space<vmem>> -> memref<1x4x1536xf32, #tpu.memory_space<vmem>>
    %114 = tpu.memref_squeeze %113 : memref<1x4x1536xf32, #tpu.memory_space<vmem>> -> memref<4x1536xf32, #tpu.memory_space<vmem>>
    %c0_106 = arith.constant 0 : index
    %c133 = arith.constant 133 : index
    %115 = vector.load %114[%c0_106, %c133] : memref<4x1536xf32, #tpu.memory_space<vmem>>, vector<4x1024xf32>
    %c84 = arith.constant 84 : index
    %c0_107 = arith.constant 0 : index
    %116 = vector.load %arg8[%c84, %c0_107] : memref<256x1024xf32, #tpu.memory_space<vmem>>, vector<4x1024xf32>
    tpu.vector_store %arg8[%c84, %c0_107], %115 {strides = array<i32>} : memref<256x1024xf32, #tpu.memory_space<vmem>>, vector<4x1024xf32>,
    %c0_i32_108 = arith.constant 0 : i32
    %c0_i32_109 = arith.constant 0 : i32
    %117 = tpu.memref_slice %arg7[%11, %c0_i32_108, %c0_i32_109] : memref<2x4x1536xf32, #tpu.memory_space<vmem>> -> memref<1x4x1536xf32, #tpu.memory_space<vmem>>
    %118 = tpu.memref_squeeze %117 : memref<1x4x1536xf32, #tpu.memory_space<vmem>> -> memref<4x1536xf32, #tpu.memory_space<vmem>>
    %c0_110 = arith.constant 0 : index
    %c134 = arith.constant 134 : index
    %119 = vector.load %118[%c0_110, %c134] : memref<4x1536xf32, #tpu.memory_space<vmem>>, vector<4x1024xf32>
    %c88 = arith.constant 88 : index
    %c0_111 = arith.constant 0 : index
    %120 = vector.load %arg8[%c88, %c0_111] : memref<256x1024xf32, #tpu.memory_space<vmem>>, vector<4x1024xf32>
    tpu.vector_store %arg8[%c88, %c0_111], %119 {strides = array<i32>} : memref<256x1024xf32, #tpu.memory_space<vmem>>, vector<4x1024xf32>,
    %c0_i32_112 = arith.constant 0 : i32
    %c0_i32_113 = arith.constant 0 : i32
    %121 = tpu.memref_slice %arg7[%11, %c0_i32_112, %c0_i32_113] : memref<2x4x1536xf32, #tpu.memory_space<vmem>> -> memref<1x4x1536xf32, #tpu.memory_space<vmem>>
    %122 = tpu.memref_squeeze %121 : memref<1x4x1536xf32, #tpu.memory_space<vmem>> -> memref<4x1536xf32, #tpu.memory_space<vmem>>
    %c0_114 = arith.constant 0 : index
    %c135 = arith.constant 135 : index
    %123 = vector.load %122[%c0_114, %c135] : memref<4x1536xf32, #tpu.memory_space<vmem>>, vector<4x1024xf32>
    %c92 = arith.constant 92 : index
    %c0_115 = arith.constant 0 : index
    %124 = vector.load %arg8[%c92, %c0_115] : memref<256x1024xf32, #tpu.memory_space<vmem>>, vector<4x1024xf32>
    tpu.vector_store %arg8[%c92, %c0_115], %123 {strides = array<i32>} : memref<256x1024xf32, #tpu.memory_space<vmem>>, vector<4x1024xf32>,
    %c0_i32_116 = arith.constant 0 : i32
    %c0_i32_117 = arith.constant 0 : i32
    %125 = tpu.memref_slice %arg7[%11, %c0_i32_116, %c0_i32_117] : memref<2x4x1536xf32, #tpu.memory_space<vmem>> -> memref<1x4x1536xf32, #tpu.memory_space<vmem>>
    %126 = tpu.memref_squeeze %125 : memref<1x4x1536xf32, #tpu.memory_space<vmem>> -> memref<4x1536xf32, #tpu.memory_space<vmem>>
    %c0_118 = arith.constant 0 : index
    %c143 = arith.constant 143 : index
    %127 = vector.load %126[%c0_118, %c143] : memref<4x1536xf32, #tpu.memory_space<vmem>>, vector<4x1024xf32>
    %c96 = arith.constant 96 : index
    %c0_119 = arith.constant 0 : index
    %128 = vector.load %arg8[%c96, %c0_119] : memref<256x1024xf32, #tpu.memory_space<vmem>>, vector<4x1024xf32>
    tpu.vector_store %arg8[%c96, %c0_119], %127 {strides = array<i32>} : memref<256x1024xf32, #tpu.memory_space<vmem>>, vector<4x1024xf32>,
    %c0_i32_120 = arith.constant 0 : i32
    %c0_i32_121 = arith.constant 0 : i32
    %129 = tpu.memref_slice %arg7[%11, %c0_i32_120, %c0_i32_121] : memref<2x4x1536xf32, #tpu.memory_space<vmem>> -> memref<1x4x1536xf32, #tpu.memory_space<vmem>>
    %130 = tpu.memref_squeeze %129 : memref<1x4x1536xf32, #tpu.memory_space<vmem>> -> memref<4x1536xf32, #tpu.memory_space<vmem>>
    %c0_122 = arith.constant 0 : index
    %c144 = arith.constant 144 : index
    %131 = vector.load %130[%c0_122, %c144] : memref<4x1536xf32, #tpu.memory_space<vmem>>, vector<4x1024xf32>
    %c100 = arith.constant 100 : index
    %c0_123 = arith.constant 0 : index
    %132 = vector.load %arg8[%c100, %c0_123] : memref<256x1024xf32, #tpu.memory_space<vmem>>, vector<4x1024xf32>
    tpu.vector_store %arg8[%c100, %c0_123], %131 {strides = array<i32>} : memref<256x1024xf32, #tpu.memory_space<vmem>>, vector<4x1024xf32>,
    %c0_i32_124 = arith.constant 0 : i32
    %c0_i32_125 = arith.constant 0 : i32
    %133 = tpu.memref_slice %arg7[%11, %c0_i32_124, %c0_i32_125] : memref<2x4x1536xf32, #tpu.memory_space<vmem>> -> memref<1x4x1536xf32, #tpu.memory_space<vmem>>
    %134 = tpu.memref_squeeze %133 : memref<1x4x1536xf32, #tpu.memory_space<vmem>> -> memref<4x1536xf32, #tpu.memory_space<vmem>>
    %c0_126 = arith.constant 0 : index
    %c145 = arith.constant 145 : index
    %135 = vector.load %134[%c0_126, %c145] : memref<4x1536xf32, #tpu.memory_space<vmem>>, vector<4x1024xf32>
    %c104 = arith.constant 104 : index
    %c0_127 = arith.constant 0 : index
    %136 = vector.load %arg8[%c104, %c0_127] : memref<256x1024xf32, #tpu.memory_space<vmem>>, vector<4x1024xf32>
    tpu.vector_store %arg8[%c104, %c0_127], %135 {strides = array<i32>} : memref<256x1024xf32, #tpu.memory_space<vmem>>, vector<4x1024xf32>,
    %c0_i32_128 = arith.constant 0 : i32
    %c0_i32_129 = arith.constant 0 : i32
    %137 = tpu.memref_slice %arg7[%11, %c0_i32_128, %c0_i32_129] : memref<2x4x1536xf32, #tpu.memory_space<vmem>> -> memref<1x4x1536xf32, #tpu.memory_space<vmem>>
    %138 = tpu.memref_squeeze %137 : memref<1x4x1536xf32, #tpu.memory_space<vmem>> -> memref<4x1536xf32, #tpu.memory_space<vmem>>
    %c0_130 = arith.constant 0 : index
    %c146 = arith.constant 146 : index
    %139 = vector.load %138[%c0_130, %c146] : memref<4x1536xf32, #tpu.memory_space<vmem>>, vector<4x1024xf32>
    %c108 = arith.constant 108 : index
    %c0_131 = arith.constant 0 : index
    %140 = vector.load %arg8[%c108, %c0_131] : memref<256x1024xf32, #tpu.memory_space<vmem>>, vector<4x1024xf32>
    tpu.vector_store %arg8[%c108, %c0_131], %139 {strides = array<i32>} : memref<256x1024xf32, #tpu.memory_space<vmem>>, vector<4x1024xf32>,
    %c0_i32_132 = arith.constant 0 : i32
    %c0_i32_133 = arith.constant 0 : i32
    %141 = tpu.memref_slice %arg7[%11, %c0_i32_132, %c0_i32_133] : memref<2x4x1536xf32, #tpu.memory_space<vmem>> -> memref<1x4x1536xf32, #tpu.memory_space<vmem>>
    %142 = tpu.memref_squeeze %141 : memref<1x4x1536xf32, #tpu.memory_space<vmem>> -> memref<4x1536xf32, #tpu.memory_space<vmem>>
    %c0_134 = arith.constant 0 : index
    %c154 = arith.constant 154 : index
    %143 = vector.load %142[%c0_134, %c154] : memref<4x1536xf32, #tpu.memory_space<vmem>>, vector<4x1024xf32>
    %c112 = arith.constant 112 : index
    %c0_135 = arith.constant 0 : index
    %144 = vector.load %arg8[%c112, %c0_135] : memref<256x1024xf32, #tpu.memory_space<vmem>>, vector<4x1024xf32>
    tpu.vector_store %arg8[%c112, %c0_135], %143 {strides = array<i32>} : memref<256x1024xf32, #tpu.memory_space<vmem>>, vector<4x1024xf32>,
    %c0_i32_136 = arith.constant 0 : i32
    %c0_i32_137 = arith.constant 0 : i32
    %145 = tpu.memref_slice %arg7[%11, %c0_i32_136, %c0_i32_137] : memref<2x4x1536xf32, #tpu.memory_space<vmem>> -> memref<1x4x1536xf32, #tpu.memory_space<vmem>>
    %146 = tpu.memref_squeeze %145 : memref<1x4x1536xf32, #tpu.memory_space<vmem>> -> memref<4x1536xf32, #tpu.memory_space<vmem>>
    %c0_138 = arith.constant 0 : index
    %c155 = arith.constant 155 : index
    %147 = vector.load %146[%c0_138, %c155] : memref<4x1536xf32, #tpu.memory_space<vmem>>, vector<4x1024xf32>
    %c116 = arith.constant 116 : index
    %c0_139 = arith.constant 0 : index
    %148 = vector.load %arg8[%c116, %c0_139] : memref<256x1024xf32, #tpu.memory_space<vmem>>, vector<4x1024xf32>
    tpu.vector_store %arg8[%c116, %c0_139], %147 {strides = array<i32>} : memref<256x1024xf32, #tpu.memory_space<vmem>>, vector<4x1024xf32>,
    %c0_i32_140 = arith.constant 0 : i32
    %c0_i32_141 = arith.constant 0 : i32
    %149 = tpu.memref_slice %arg7[%11, %c0_i32_140, %c0_i32_141] : memref<2x4x1536xf32, #tpu.memory_space<vmem>> -> memref<1x4x1536xf32, #tpu.memory_space<vmem>>
    %150 = tpu.memref_squeeze %149 : memref<1x4x1536xf32, #tpu.memory_space<vmem>> -> memref<4x1536xf32, #tpu.memory_space<vmem>>
    %c0_142 = arith.constant 0 : index
    %c156 = arith.constant 156 : index
    %151 = vector.load %150[%c0_142, %c156] : memref<4x1536xf32, #tpu.memory_space<vmem>>, vector<4x1024xf32>
    %c120 = arith.constant 120 : index
    %c0_143 = arith.constant 0 : index
    %152 = vector.load %arg8[%c120, %c0_143] : memref<256x1024xf32, #tpu.memory_space<vmem>>, vector<4x1024xf32>
    tpu.vector_store %arg8[%c120, %c0_143], %151 {strides = array<i32>} : memref<256x1024xf32, #tpu.memory_space<vmem>>, vector<4x1024xf32>,
    %c0_i32_144 = arith.constant 0 : i32
    %c0_i32_145 = arith.constant 0 : i32
    %153 = tpu.memref_slice %arg7[%11, %c0_i32_144, %c0_i32_145] : memref<2x4x1536xf32, #tpu.memory_space<vmem>> -> memref<1x4x1536xf32, #tpu.memory_space<vmem>>
    %154 = tpu.memref_squeeze %153 : memref<1x4x1536xf32, #tpu.memory_space<vmem>> -> memref<4x1536xf32, #tpu.memory_space<vmem>>
    %c0_146 = arith.constant 0 : index
    %c157 = arith.constant 157 : index
    %155 = vector.load %154[%c0_146, %c157] : memref<4x1536xf32, #tpu.memory_space<vmem>>, vector<4x1024xf32>
    %c124_147 = arith.constant 124 : index
    %c0_148 = arith.constant 0 : index
    %156 = vector.load %arg8[%c124_147, %c0_148] : memref<256x1024xf32, #tpu.memory_space<vmem>>, vector<4x1024xf32>
    tpu.vector_store %arg8[%c124_147, %c0_148], %155 {strides = array<i32>} : memref<256x1024xf32, #tpu.memory_space<vmem>>, vector<4x1024xf32>,
    %c0_i32_149 = arith.constant 0 : i32
    %c0_i32_150 = arith.constant 0 : i32
    %157 = tpu.memref_slice %arg7[%11, %c0_i32_149, %c0_i32_150] : memref<2x4x1536xf32, #tpu.memory_space<vmem>> -> memref<1x4x1536xf32, #tpu.memory_space<vmem>>
    %158 = tpu.memref_squeeze %157 : memref<1x4x1536xf32, #tpu.memory_space<vmem>> -> memref<4x1536xf32, #tpu.memory_space<vmem>>
    %c0_151 = arith.constant 0 : index
    %c242 = arith.constant 242 : index
    %159 = vector.load %158[%c0_151, %c242] : memref<4x1536xf32, #tpu.memory_space<vmem>>, vector<4x1024xf32>
    %c128 = arith.constant 128 : index
    %c0_152 = arith.constant 0 : index
    %160 = vector.load %arg8[%c128, %c0_152] : memref<256x1024xf32, #tpu.memory_space<vmem>>, vector<4x1024xf32>
    tpu.vector_store %arg8[%c128, %c0_152], %159 {strides = array<i32>} : memref<256x1024xf32, #tpu.memory_space<vmem>>, vector<4x1024xf32>,
    %c0_i32_153 = arith.constant 0 : i32
    %c0_i32_154 = arith.constant 0 : i32
    %161 = tpu.memref_slice %arg7[%11, %c0_i32_153, %c0_i32_154] : memref<2x4x1536xf32, #tpu.memory_space<vmem>> -> memref<1x4x1536xf32, #tpu.memory_space<vmem>>
    %162 = tpu.memref_squeeze %161 : memref<1x4x1536xf32, #tpu.memory_space<vmem>> -> memref<4x1536xf32, #tpu.memory_space<vmem>>
    %c0_155 = arith.constant 0 : index
    %c243 = arith.constant 243 : index
    %163 = vector.load %162[%c0_155, %c243] : memref<4x1536xf32, #tpu.memory_space<vmem>>, vector<4x1024xf32>
    %c132_156 = arith.constant 132 : index
    %c0_157 = arith.constant 0 : index
    %164 = vector.load %arg8[%c132_156, %c0_157] : memref<256x1024xf32, #tpu.memory_space<vmem>>, vector<4x1024xf32>
    tpu.vector_store %arg8[%c132_156, %c0_157], %163 {strides = array<i32>} : memref<256x1024xf32, #tpu.memory_space<vmem>>, vector<4x1024xf32>,
    %c0_i32_158 = arith.constant 0 : i32
    %c0_i32_159 = arith.constant 0 : i32
    %165 = tpu.memref_slice %arg7[%11, %c0_i32_158, %c0_i32_159] : memref<2x4x1536xf32, #tpu.memory_space<vmem>> -> memref<1x4x1536xf32, #tpu.memory_space<vmem>>
    %166 = tpu.memref_squeeze %165 : memref<1x4x1536xf32, #tpu.memory_space<vmem>> -> memref<4x1536xf32, #tpu.memory_space<vmem>>
    %c0_160 = arith.constant 0 : index
    %c244 = arith.constant 244 : index
    %167 = vector.load %166[%c0_160, %c244] : memref<4x1536xf32, #tpu.memory_space<vmem>>, vector<4x1024xf32>
    %c136 = arith.constant 136 : index
    %c0_161 = arith.constant 0 : index
    %168 = vector.load %arg8[%c136, %c0_161] : memref<256x1024xf32, #tpu.memory_space<vmem>>, vector<4x1024xf32>
    tpu.vector_store %arg8[%c136, %c0_161], %167 {strides = array<i32>} : memref<256x1024xf32, #tpu.memory_space<vmem>>, vector<4x1024xf32>,
    %c0_i32_162 = arith.constant 0 : i32
    %c0_i32_163 = arith.constant 0 : i32
    %169 = tpu.memref_slice %arg7[%11, %c0_i32_162, %c0_i32_163] : memref<2x4x1536xf32, #tpu.memory_space<vmem>> -> memref<1x4x1536xf32, #tpu.memory_space<vmem>>
    %170 = tpu.memref_squeeze %169 : memref<1x4x1536xf32, #tpu.memory_space<vmem>> -> memref<4x1536xf32, #tpu.memory_space<vmem>>
    %c0_164 = arith.constant 0 : index
    %c245 = arith.constant 245 : index
    %171 = vector.load %170[%c0_164, %c245] : memref<4x1536xf32, #tpu.memory_space<vmem>>, vector<4x1024xf32>
    %c140 = arith.constant 140 : index
    %c0_165 = arith.constant 0 : index
    %172 = vector.load %arg8[%c140, %c0_165] : memref<256x1024xf32, #tpu.memory_space<vmem>>, vector<4x1024xf32>
    tpu.vector_store %arg8[%c140, %c0_165], %171 {strides = array<i32>} : memref<256x1024xf32, #tpu.memory_space<vmem>>, vector<4x1024xf32>,
    %c0_i32_166 = arith.constant 0 : i32
    %c0_i32_167 = arith.constant 0 : i32
    %173 = tpu.memref_slice %arg7[%11, %c0_i32_166, %c0_i32_167] : memref<2x4x1536xf32, #tpu.memory_space<vmem>> -> memref<1x4x1536xf32, #tpu.memory_space<vmem>>
    %174 = tpu.memref_squeeze %173 : memref<1x4x1536xf32, #tpu.memory_space<vmem>> -> memref<4x1536xf32, #tpu.memory_space<vmem>>
    %c0_168 = arith.constant 0 : index
    %c253 = arith.constant 253 : index
    %175 = vector.load %174[%c0_168, %c253] : memref<4x1536xf32, #tpu.memory_space<vmem>>, vector<4x1024xf32>
    %c144_169 = arith.constant 144 : index
    %c0_170 = arith.constant 0 : index
    %176 = vector.load %arg8[%c144_169, %c0_170] : memref<256x1024xf32, #tpu.memory_space<vmem>>, vector<4x1024xf32>
    tpu.vector_store %arg8[%c144_169, %c0_170], %175 {strides = array<i32>} : memref<256x1024xf32, #tpu.memory_space<vmem>>, vector<4x1024xf32>,
    %c0_i32_171 = arith.constant 0 : i32
    %c0_i32_172 = arith.constant 0 : i32
    %177 = tpu.memref_slice %arg7[%11, %c0_i32_171, %c0_i32_172] : memref<2x4x1536xf32, #tpu.memory_space<vmem>> -> memref<1x4x1536xf32, #tpu.memory_space<vmem>>
    %178 = tpu.memref_squeeze %177 : memref<1x4x1536xf32, #tpu.memory_space<vmem>> -> memref<4x1536xf32, #tpu.memory_space<vmem>>
    %c0_173 = arith.constant 0 : index
    %c254 = arith.constant 254 : index
    %179 = vector.load %178[%c0_173, %c254] : memref<4x1536xf32, #tpu.memory_space<vmem>>, vector<4x1024xf32>
    %c148 = arith.constant 148 : index
    %c0_174 = arith.constant 0 : index
    %180 = vector.load %arg8[%c148, %c0_174] : memref<256x1024xf32, #tpu.memory_space<vmem>>, vector<4x1024xf32>
    tpu.vector_store %arg8[%c148, %c0_174], %179 {strides = array<i32>} : memref<256x1024xf32, #tpu.memory_space<vmem>>, vector<4x1024xf32>,
    %c0_i32_175 = arith.constant 0 : i32
    %c0_i32_176 = arith.constant 0 : i32
    %181 = tpu.memref_slice %arg7[%11, %c0_i32_175, %c0_i32_176] : memref<2x4x1536xf32, #tpu.memory_space<vmem>> -> memref<1x4x1536xf32, #tpu.memory_space<vmem>>
    %182 = tpu.memref_squeeze %181 : memref<1x4x1536xf32, #tpu.memory_space<vmem>> -> memref<4x1536xf32, #tpu.memory_space<vmem>>
    %c0_177 = arith.constant 0 : index
    %c255 = arith.constant 255 : index
    %183 = vector.load %182[%c0_177, %c255] : memref<4x1536xf32, #tpu.memory_space<vmem>>, vector<4x1024xf32>
    %c152 = arith.constant 152 : index
    %c0_178 = arith.constant 0 : index
    %184 = vector.load %arg8[%c152, %c0_178] : memref<256x1024xf32, #tpu.memory_space<vmem>>, vector<4x1024xf32>
    tpu.vector_store %arg8[%c152, %c0_178], %183 {strides = array<i32>} : memref<256x1024xf32, #tpu.memory_space<vmem>>, vector<4x1024xf32>,
    %c0_i32_179 = arith.constant 0 : i32
    %c0_i32_180 = arith.constant 0 : i32
    %185 = tpu.memref_slice %arg7[%11, %c0_i32_179, %c0_i32_180] : memref<2x4x1536xf32, #tpu.memory_space<vmem>> -> memref<1x4x1536xf32, #tpu.memory_space<vmem>>
    %186 = tpu.memref_squeeze %185 : memref<1x4x1536xf32, #tpu.memory_space<vmem>> -> memref<4x1536xf32, #tpu.memory_space<vmem>>
    %c0_181 = arith.constant 0 : index
    %c256 = arith.constant 256 : index
    %187 = vector.load %186[%c0_181, %c256] : memref<4x1536xf32, #tpu.memory_space<vmem>>, vector<4x1024xf32>
    %c156_182 = arith.constant 156 : index
    %c0_183 = arith.constant 0 : index
    %188 = vector.load %arg8[%c156_182, %c0_183] : memref<256x1024xf32, #tpu.memory_space<vmem>>, vector<4x1024xf32>
    tpu.vector_store %arg8[%c156_182, %c0_183], %187 {strides = array<i32>} : memref<256x1024xf32, #tpu.memory_space<vmem>>, vector<4x1024xf32>,
    %c0_i32_184 = arith.constant 0 : i32
    %c0_i32_185 = arith.constant 0 : i32
    %189 = tpu.memref_slice %arg7[%11, %c0_i32_184, %c0_i32_185] : memref<2x4x1536xf32, #tpu.memory_space<vmem>> -> memref<1x4x1536xf32, #tpu.memory_space<vmem>>
    %190 = tpu.memref_squeeze %189 : memref<1x4x1536xf32, #tpu.memory_space<vmem>> -> memref<4x1536xf32, #tpu.memory_space<vmem>>
    %c0_186 = arith.constant 0 : index
    %c264 = arith.constant 264 : index
    %191 = vector.load %190[%c0_186, %c264] : memref<4x1536xf32, #tpu.memory_space<vmem>>, vector<4x1024xf32>
    %c160 = arith.constant 160 : index
    %c0_187 = arith.constant 0 : index
    %192 = vector.load %arg8[%c160, %c0_187] : memref<256x1024xf32, #tpu.memory_space<vmem>>, vector<4x1024xf32>
    tpu.vector_store %arg8[%c160, %c0_187], %191 {strides = array<i32>} : memref<256x1024xf32, #tpu.memory_space<vmem>>, vector<4x1024xf32>,
    %c0_i32_188 = arith.constant 0 : i32
    %c0_i32_189 = arith.constant 0 : i32
    %193 = tpu.memref_slice %arg7[%11, %c0_i32_188, %c0_i32_189] : memref<2x4x1536xf32, #tpu.memory_space<vmem>> -> memref<1x4x1536xf32, #tpu.memory_space<vmem>>
    %194 = tpu.memref_squeeze %193 : memref<1x4x1536xf32, #tpu.memory_space<vmem>> -> memref<4x1536xf32, #tpu.memory_space<vmem>>
    %c0_190 = arith.constant 0 : index
    %c265 = arith.constant 265 : index
    %195 = vector.load %194[%c0_190, %c265] : memref<4x1536xf32, #tpu.memory_space<vmem>>, vector<4x1024xf32>
    %c164 = arith.constant 164 : index
    %c0_191 = arith.constant 0 : index
    %196 = vector.load %arg8[%c164, %c0_191] : memref<256x1024xf32, #tpu.memory_space<vmem>>, vector<4x1024xf32>
    tpu.vector_store %arg8[%c164, %c0_191], %195 {strides = array<i32>} : memref<256x1024xf32, #tpu.memory_space<vmem>>, vector<4x1024xf32>,
    %c0_i32_192 = arith.constant 0 : i32
    %c0_i32_193 = arith.constant 0 : i32
    %197 = tpu.memref_slice %arg7[%11, %c0_i32_192, %c0_i32_193] : memref<2x4x1536xf32, #tpu.memory_space<vmem>> -> memref<1x4x1536xf32, #tpu.memory_space<vmem>>
    %198 = tpu.memref_squeeze %197 : memref<1x4x1536xf32, #tpu.memory_space<vmem>> -> memref<4x1536xf32, #tpu.memory_space<vmem>>
    %c0_194 = arith.constant 0 : index
    %c266 = arith.constant 266 : index
    %199 = vector.load %198[%c0_194, %c266] : memref<4x1536xf32, #tpu.memory_space<vmem>>, vector<4x1024xf32>
    %c168 = arith.constant 168 : index
    %c0_195 = arith.constant 0 : index
    %200 = vector.load %arg8[%c168, %c0_195] : memref<256x1024xf32, #tpu.memory_space<vmem>>, vector<4x1024xf32>
    tpu.vector_store %arg8[%c168, %c0_195], %199 {strides = array<i32>} : memref<256x1024xf32, #tpu.memory_space<vmem>>, vector<4x1024xf32>,
    %c0_i32_196 = arith.constant 0 : i32
    %c0_i32_197 = arith.constant 0 : i32
    %201 = tpu.memref_slice %arg7[%11, %c0_i32_196, %c0_i32_197] : memref<2x4x1536xf32, #tpu.memory_space<vmem>> -> memref<1x4x1536xf32, #tpu.memory_space<vmem>>
    %202 = tpu.memref_squeeze %201 : memref<1x4x1536xf32, #tpu.memory_space<vmem>> -> memref<4x1536xf32, #tpu.memory_space<vmem>>
    %c0_198 = arith.constant 0 : index
    %c267 = arith.constant 267 : index
    %203 = vector.load %202[%c0_198, %c267] : memref<4x1536xf32, #tpu.memory_space<vmem>>, vector<4x1024xf32>
    %c172 = arith.constant 172 : index
    %c0_199 = arith.constant 0 : index
    %204 = vector.load %arg8[%c172, %c0_199] : memref<256x1024xf32, #tpu.memory_space<vmem>>, vector<4x1024xf32>
    tpu.vector_store %arg8[%c172, %c0_199], %203 {strides = array<i32>} : memref<256x1024xf32, #tpu.memory_space<vmem>>, vector<4x1024xf32>,
    %c0_i32_200 = arith.constant 0 : i32
    %c0_i32_201 = arith.constant 0 : i32
    %205 = tpu.memref_slice %arg7[%11, %c0_i32_200, %c0_i32_201] : memref<2x4x1536xf32, #tpu.memory_space<vmem>> -> memref<1x4x1536xf32, #tpu.memory_space<vmem>>
    %206 = tpu.memref_squeeze %205 : memref<1x4x1536xf32, #tpu.memory_space<vmem>> -> memref<4x1536xf32, #tpu.memory_space<vmem>>
    %c0_202 = arith.constant 0 : index
    %c275 = arith.constant 275 : index
    %207 = vector.load %206[%c0_202, %c275] : memref<4x1536xf32, #tpu.memory_space<vmem>>, vector<4x1024xf32>
    %c176 = arith.constant 176 : index
    %c0_203 = arith.constant 0 : index
    %208 = vector.load %arg8[%c176, %c0_203] : memref<256x1024xf32, #tpu.memory_space<vmem>>, vector<4x1024xf32>
    tpu.vector_store %arg8[%c176, %c0_203], %207 {strides = array<i32>} : memref<256x1024xf32, #tpu.memory_space<vmem>>, vector<4x1024xf32>,
    %c0_i32_204 = arith.constant 0 : i32
    %c0_i32_205 = arith.constant 0 : i32
    %209 = tpu.memref_slice %arg7[%11, %c0_i32_204, %c0_i32_205] : memref<2x4x1536xf32, #tpu.memory_space<vmem>> -> memref<1x4x1536xf32, #tpu.memory_space<vmem>>
    %210 = tpu.memref_squeeze %209 : memref<1x4x1536xf32, #tpu.memory_space<vmem>> -> memref<4x1536xf32, #tpu.memory_space<vmem>>
    %c0_206 = arith.constant 0 : index
    %c276 = arith.constant 276 : index
    %211 = vector.load %210[%c0_206, %c276] : memref<4x1536xf32, #tpu.memory_space<vmem>>, vector<4x1024xf32>
    %c180 = arith.constant 180 : index
    %c0_207 = arith.constant 0 : index
    %212 = vector.load %arg8[%c180, %c0_207] : memref<256x1024xf32, #tpu.memory_space<vmem>>, vector<4x1024xf32>
    tpu.vector_store %arg8[%c180, %c0_207], %211 {strides = array<i32>} : memref<256x1024xf32, #tpu.memory_space<vmem>>, vector<4x1024xf32>,
    %c0_i32_208 = arith.constant 0 : i32
    %c0_i32_209 = arith.constant 0 : i32
    %213 = tpu.memref_slice %arg7[%11, %c0_i32_208, %c0_i32_209] : memref<2x4x1536xf32, #tpu.memory_space<vmem>> -> memref<1x4x1536xf32, #tpu.memory_space<vmem>>
    %214 = tpu.memref_squeeze %213 : memref<1x4x1536xf32, #tpu.memory_space<vmem>> -> memref<4x1536xf32, #tpu.memory_space<vmem>>
    %c0_210 = arith.constant 0 : index
    %c277 = arith.constant 277 : index
    %215 = vector.load %214[%c0_210, %c277] : memref<4x1536xf32, #tpu.memory_space<vmem>>, vector<4x1024xf32>
    %c184 = arith.constant 184 : index
    %c0_211 = arith.constant 0 : index
    %216 = vector.load %arg8[%c184, %c0_211] : memref<256x1024xf32, #tpu.memory_space<vmem>>, vector<4x1024xf32>
    tpu.vector_store %arg8[%c184, %c0_211], %215 {strides = array<i32>} : memref<256x1024xf32, #tpu.memory_space<vmem>>, vector<4x1024xf32>,
    %c0_i32_212 = arith.constant 0 : i32
    %c0_i32_213 = arith.constant 0 : i32
    %217 = tpu.memref_slice %arg7[%11, %c0_i32_212, %c0_i32_213] : memref<2x4x1536xf32, #tpu.memory_space<vmem>> -> memref<1x4x1536xf32, #tpu.memory_space<vmem>>
    %218 = tpu.memref_squeeze %217 : memref<1x4x1536xf32, #tpu.memory_space<vmem>> -> memref<4x1536xf32, #tpu.memory_space<vmem>>
    %c0_214 = arith.constant 0 : index
    %c278 = arith.constant 278 : index
    %219 = vector.load %218[%c0_214, %c278] : memref<4x1536xf32, #tpu.memory_space<vmem>>, vector<4x1024xf32>
    %c188 = arith.constant 188 : index
    %c0_215 = arith.constant 0 : index
    %220 = vector.load %arg8[%c188, %c0_215] : memref<256x1024xf32, #tpu.memory_space<vmem>>, vector<4x1024xf32>
    tpu.vector_store %arg8[%c188, %c0_215], %219 {strides = array<i32>} : memref<256x1024xf32, #tpu.memory_space<vmem>>, vector<4x1024xf32>,
    %c0_i32_216 = arith.constant 0 : i32
    %c0_i32_217 = arith.constant 0 : i32
    %221 = tpu.memref_slice %arg7[%11, %c0_i32_216, %c0_i32_217] : memref<2x4x1536xf32, #tpu.memory_space<vmem>> -> memref<1x4x1536xf32, #tpu.memory_space<vmem>>
    %222 = tpu.memref_squeeze %221 : memref<1x4x1536xf32, #tpu.memory_space<vmem>> -> memref<4x1536xf32, #tpu.memory_space<vmem>>
    %c0_218 = arith.constant 0 : index
    %c363 = arith.constant 363 : index
    %223 = vector.load %222[%c0_218, %c363] : memref<4x1536xf32, #tpu.memory_space<vmem>>, vector<4x1024xf32>
    %c192 = arith.constant 192 : index
    %c0_219 = arith.constant 0 : index
    %224 = vector.load %arg8[%c192, %c0_219] : memref<256x1024xf32, #tpu.memory_space<vmem>>, vector<4x1024xf32>
    tpu.vector_store %arg8[%c192, %c0_219], %223 {strides = array<i32>} : memref<256x1024xf32, #tpu.memory_space<vmem>>, vector<4x1024xf32>,
    %c0_i32_220 = arith.constant 0 : i32
    %c0_i32_221 = arith.constant 0 : i32
    %225 = tpu.memref_slice %arg7[%11, %c0_i32_220, %c0_i32_221] : memref<2x4x1536xf32, #tpu.memory_space<vmem>> -> memref<1x4x1536xf32, #tpu.memory_space<vmem>>
    %226 = tpu.memref_squeeze %225 : memref<1x4x1536xf32, #tpu.memory_space<vmem>> -> memref<4x1536xf32, #tpu.memory_space<vmem>>
    %c0_222 = arith.constant 0 : index
    %c364 = arith.constant 364 : index
    %227 = vector.load %226[%c0_222, %c364] : memref<4x1536xf32, #tpu.memory_space<vmem>>, vector<4x1024xf32>
    %c196 = arith.constant 196 : index
    %c0_223 = arith.constant 0 : index
    %228 = vector.load %arg8[%c196, %c0_223] : memref<256x1024xf32, #tpu.memory_space<vmem>>, vector<4x1024xf32>
    tpu.vector_store %arg8[%c196, %c0_223], %227 {strides = array<i32>} : memref<256x1024xf32, #tpu.memory_space<vmem>>, vector<4x1024xf32>,
    %c0_i32_224 = arith.constant 0 : i32
    %c0_i32_225 = arith.constant 0 : i32
    %229 = tpu.memref_slice %arg7[%11, %c0_i32_224, %c0_i32_225] : memref<2x4x1536xf32, #tpu.memory_space<vmem>> -> memref<1x4x1536xf32, #tpu.memory_space<vmem>>
    %230 = tpu.memref_squeeze %229 : memref<1x4x1536xf32, #tpu.memory_space<vmem>> -> memref<4x1536xf32, #tpu.memory_space<vmem>>
    %c0_226 = arith.constant 0 : index
    %c365 = arith.constant 365 : index
    %231 = vector.load %230[%c0_226, %c365] : memref<4x1536xf32, #tpu.memory_space<vmem>>, vector<4x1024xf32>
    %c200 = arith.constant 200 : index
    %c0_227 = arith.constant 0 : index
    %232 = vector.load %arg8[%c200, %c0_227] : memref<256x1024xf32, #tpu.memory_space<vmem>>, vector<4x1024xf32>
    tpu.vector_store %arg8[%c200, %c0_227], %231 {strides = array<i32>} : memref<256x1024xf32, #tpu.memory_space<vmem>>, vector<4x1024xf32>,
    %c0_i32_228 = arith.constant 0 : i32
    %c0_i32_229 = arith.constant 0 : i32
    %233 = tpu.memref_slice %arg7[%11, %c0_i32_228, %c0_i32_229] : memref<2x4x1536xf32, #tpu.memory_space<vmem>> -> memref<1x4x1536xf32, #tpu.memory_space<vmem>>
    %234 = tpu.memref_squeeze %233 : memref<1x4x1536xf32, #tpu.memory_space<vmem>> -> memref<4x1536xf32, #tpu.memory_space<vmem>>
    %c0_230 = arith.constant 0 : index
    %c366 = arith.constant 366 : index
    %235 = vector.load %234[%c0_230, %c366] : memref<4x1536xf32, #tpu.memory_space<vmem>>, vector<4x1024xf32>
    %c204 = arith.constant 204 : index
    %c0_231 = arith.constant 0 : index
    %236 = vector.load %arg8[%c204, %c0_231] : memref<256x1024xf32, #tpu.memory_space<vmem>>, vector<4x1024xf32>
    tpu.vector_store %arg8[%c204, %c0_231], %235 {strides = array<i32>} : memref<256x1024xf32, #tpu.memory_space<vmem>>, vector<4x1024xf32>,
    %c0_i32_232 = arith.constant 0 : i32
    %c0_i32_233 = arith.constant 0 : i32
    %237 = tpu.memref_slice %arg7[%11, %c0_i32_232, %c0_i32_233] : memref<2x4x1536xf32, #tpu.memory_space<vmem>> -> memref<1x4x1536xf32, #tpu.memory_space<vmem>>
    %238 = tpu.memref_squeeze %237 : memref<1x4x1536xf32, #tpu.memory_space<vmem>> -> memref<4x1536xf32, #tpu.memory_space<vmem>>
    %c0_234 = arith.constant 0 : index
    %c374 = arith.constant 374 : index
    %239 = vector.load %238[%c0_234, %c374] : memref<4x1536xf32, #tpu.memory_space<vmem>>, vector<4x1024xf32>
    %c208 = arith.constant 208 : index
    %c0_235 = arith.constant 0 : index
    %240 = vector.load %arg8[%c208, %c0_235] : memref<256x1024xf32, #tpu.memory_space<vmem>>, vector<4x1024xf32>
    tpu.vector_store %arg8[%c208, %c0_235], %239 {strides = array<i32>} : memref<256x1024xf32, #tpu.memory_space<vmem>>, vector<4x1024xf32>,
    %c0_i32_236 = arith.constant 0 : i32
    %c0_i32_237 = arith.constant 0 : i32
    %241 = tpu.memref_slice %arg7[%11, %c0_i32_236, %c0_i32_237] : memref<2x4x1536xf32, #tpu.memory_space<vmem>> -> memref<1x4x1536xf32, #tpu.memory_space<vmem>>
    %242 = tpu.memref_squeeze %241 : memref<1x4x1536xf32, #tpu.memory_space<vmem>> -> memref<4x1536xf32, #tpu.memory_space<vmem>>
    %c0_238 = arith.constant 0 : index
    %c375 = arith.constant 375 : index
    %243 = vector.load %242[%c0_238, %c375] : memref<4x1536xf32, #tpu.memory_space<vmem>>, vector<4x1024xf32>
    %c212 = arith.constant 212 : index
    %c0_239 = arith.constant 0 : index
    %244 = vector.load %arg8[%c212, %c0_239] : memref<256x1024xf32, #tpu.memory_space<vmem>>, vector<4x1024xf32>
    tpu.vector_store %arg8[%c212, %c0_239], %243 {strides = array<i32>} : memref<256x1024xf32, #tpu.memory_space<vmem>>, vector<4x1024xf32>,
    %c0_i32_240 = arith.constant 0 : i32
    %c0_i32_241 = arith.constant 0 : i32
    %245 = tpu.memref_slice %arg7[%11, %c0_i32_240, %c0_i32_241] : memref<2x4x1536xf32, #tpu.memory_space<vmem>> -> memref<1x4x1536xf32, #tpu.memory_space<vmem>>
    %246 = tpu.memref_squeeze %245 : memref<1x4x1536xf32, #tpu.memory_space<vmem>> -> memref<4x1536xf32, #tpu.memory_space<vmem>>
    %c0_242 = arith.constant 0 : index
    %c376 = arith.constant 376 : index
    %247 = vector.load %246[%c0_242, %c376] : memref<4x1536xf32, #tpu.memory_space<vmem>>, vector<4x1024xf32>
    %c216 = arith.constant 216 : index
    %c0_243 = arith.constant 0 : index
    %248 = vector.load %arg8[%c216, %c0_243] : memref<256x1024xf32, #tpu.memory_space<vmem>>, vector<4x1024xf32>
    tpu.vector_store %arg8[%c216, %c0_243], %247 {strides = array<i32>} : memref<256x1024xf32, #tpu.memory_space<vmem>>, vector<4x1024xf32>,
    %c0_i32_244 = arith.constant 0 : i32
    %c0_i32_245 = arith.constant 0 : i32
    %249 = tpu.memref_slice %arg7[%11, %c0_i32_244, %c0_i32_245] : memref<2x4x1536xf32, #tpu.memory_space<vmem>> -> memref<1x4x1536xf32, #tpu.memory_space<vmem>>
    %250 = tpu.memref_squeeze %249 : memref<1x4x1536xf32, #tpu.memory_space<vmem>> -> memref<4x1536xf32, #tpu.memory_space<vmem>>
    %c0_246 = arith.constant 0 : index
    %c377 = arith.constant 377 : index
    %251 = vector.load %250[%c0_246, %c377] : memref<4x1536xf32, #tpu.memory_space<vmem>>, vector<4x1024xf32>
    %c220 = arith.constant 220 : index
    %c0_247 = arith.constant 0 : index
    %252 = vector.load %arg8[%c220, %c0_247] : memref<256x1024xf32, #tpu.memory_space<vmem>>, vector<4x1024xf32>
    tpu.vector_store %arg8[%c220, %c0_247], %251 {strides = array<i32>} : memref<256x1024xf32, #tpu.memory_space<vmem>>, vector<4x1024xf32>,
    %c0_i32_248 = arith.constant 0 : i32
    %c0_i32_249 = arith.constant 0 : i32
    %253 = tpu.memref_slice %arg7[%11, %c0_i32_248, %c0_i32_249] : memref<2x4x1536xf32, #tpu.memory_space<vmem>> -> memref<1x4x1536xf32, #tpu.memory_space<vmem>>
    %254 = tpu.memref_squeeze %253 : memref<1x4x1536xf32, #tpu.memory_space<vmem>> -> memref<4x1536xf32, #tpu.memory_space<vmem>>
    %c0_250 = arith.constant 0 : index
    %c385 = arith.constant 385 : index
    %255 = vector.load %254[%c0_250, %c385] : memref<4x1536xf32, #tpu.memory_space<vmem>>, vector<4x1024xf32>
    %c224 = arith.constant 224 : index
    %c0_251 = arith.constant 0 : index
    %256 = vector.load %arg8[%c224, %c0_251] : memref<256x1024xf32, #tpu.memory_space<vmem>>, vector<4x1024xf32>
    tpu.vector_store %arg8[%c224, %c0_251], %255 {strides = array<i32>} : memref<256x1024xf32, #tpu.memory_space<vmem>>, vector<4x1024xf32>,
    %c0_i32_252 = arith.constant 0 : i32
    %c0_i32_253 = arith.constant 0 : i32
    %257 = tpu.memref_slice %arg7[%11, %c0_i32_252, %c0_i32_253] : memref<2x4x1536xf32, #tpu.memory_space<vmem>> -> memref<1x4x1536xf32, #tpu.memory_space<vmem>>
    %258 = tpu.memref_squeeze %257 : memref<1x4x1536xf32, #tpu.memory_space<vmem>> -> memref<4x1536xf32, #tpu.memory_space<vmem>>
    %c0_254 = arith.constant 0 : index
    %c386 = arith.constant 386 : index
    %259 = vector.load %258[%c0_254, %c386] : memref<4x1536xf32, #tpu.memory_space<vmem>>, vector<4x1024xf32>
    %c228 = arith.constant 228 : index
    %c0_255 = arith.constant 0 : index
    %260 = vector.load %arg8[%c228, %c0_255] : memref<256x1024xf32, #tpu.memory_space<vmem>>, vector<4x1024xf32>
    tpu.vector_store %arg8[%c228, %c0_255], %259 {strides = array<i32>} : memref<256x1024xf32, #tpu.memory_space<vmem>>, vector<4x1024xf32>,
    %c0_i32_256 = arith.constant 0 : i32
    %c0_i32_257 = arith.constant 0 : i32
    %261 = tpu.memref_slice %arg7[%11, %c0_i32_256, %c0_i32_257] : memref<2x4x1536xf32, #tpu.memory_space<vmem>> -> memref<1x4x1536xf32, #tpu.memory_space<vmem>>
    %262 = tpu.memref_squeeze %261 : memref<1x4x1536xf32, #tpu.memory_space<vmem>> -> memref<4x1536xf32, #tpu.memory_space<vmem>>
    %c0_258 = arith.constant 0 : index
    %c387 = arith.constant 387 : index
    %263 = vector.load %262[%c0_258, %c387] : memref<4x1536xf32, #tpu.memory_space<vmem>>, vector<4x1024xf32>
    %c232 = arith.constant 232 : index
    %c0_259 = arith.constant 0 : index
    %264 = vector.load %arg8[%c232, %c0_259] : memref<256x1024xf32, #tpu.memory_space<vmem>>, vector<4x1024xf32>
    tpu.vector_store %arg8[%c232, %c0_259], %263 {strides = array<i32>} : memref<256x1024xf32, #tpu.memory_space<vmem>>, vector<4x1024xf32>,
    %c0_i32_260 = arith.constant 0 : i32
    %c0_i32_261 = arith.constant 0 : i32
    %265 = tpu.memref_slice %arg7[%11, %c0_i32_260, %c0_i32_261] : memref<2x4x1536xf32, #tpu.memory_space<vmem>> -> memref<1x4x1536xf32, #tpu.memory_space<vmem>>
    %266 = tpu.memref_squeeze %265 : memref<1x4x1536xf32, #tpu.memory_space<vmem>> -> memref<4x1536xf32, #tpu.memory_space<vmem>>
    %c0_262 = arith.constant 0 : index
    %c388 = arith.constant 388 : index
    %267 = vector.load %266[%c0_262, %c388] : memref<4x1536xf32, #tpu.memory_space<vmem>>, vector<4x1024xf32>
    %c236 = arith.constant 236 : index
    %c0_263 = arith.constant 0 : index
    %268 = vector.load %arg8[%c236, %c0_263] : memref<256x1024xf32, #tpu.memory_space<vmem>>, vector<4x1024xf32>
    tpu.vector_store %arg8[%c236, %c0_263], %267 {strides = array<i32>} : memref<256x1024xf32, #tpu.memory_space<vmem>>, vector<4x1024xf32>,
    %c0_i32_264 = arith.constant 0 : i32
    %c0_i32_265 = arith.constant 0 : i32
    %269 = tpu.memref_slice %arg7[%11, %c0_i32_264, %c0_i32_265] : memref<2x4x1536xf32, #tpu.memory_space<vmem>> -> memref<1x4x1536xf32, #tpu.memory_space<vmem>>
    %270 = tpu.memref_squeeze %269 : memref<1x4x1536xf32, #tpu.memory_space<vmem>> -> memref<4x1536xf32, #tpu.memory_space<vmem>>
    %c0_266 = arith.constant 0 : index
    %c396 = arith.constant 396 : index
    %271 = vector.load %270[%c0_266, %c396] : memref<4x1536xf32, #tpu.memory_space<vmem>>, vector<4x1024xf32>
    %c240 = arith.constant 240 : index
    %c0_267 = arith.constant 0 : index
    %272 = vector.load %arg8[%c240, %c0_267] : memref<256x1024xf32, #tpu.memory_space<vmem>>, vector<4x1024xf32>
    tpu.vector_store %arg8[%c240, %c0_267], %271 {strides = array<i32>} : memref<256x1024xf32, #tpu.memory_space<vmem>>, vector<4x1024xf32>,
    %c0_i32_268 = arith.constant 0 : i32
    %c0_i32_269 = arith.constant 0 : i32
    %273 = tpu.memref_slice %arg7[%11, %c0_i32_268, %c0_i32_269] : memref<2x4x1536xf32, #tpu.memory_space<vmem>> -> memref<1x4x1536xf32, #tpu.memory_space<vmem>>
    %274 = tpu.memref_squeeze %273 : memref<1x4x1536xf32, #tpu.memory_space<vmem>> -> memref<4x1536xf32, #tpu.memory_space<vmem>>
    %c0_270 = arith.constant 0 : index
    %c397 = arith.constant 397 : index
    %275 = vector.load %274[%c0_270, %c397] : memref<4x1536xf32, #tpu.memory_space<vmem>>, vector<4x1024xf32>
    %c244_271 = arith.constant 244 : index
    %c0_272 = arith.constant 0 : index
    %276 = vector.load %arg8[%c244_271, %c0_272] : memref<256x1024xf32, #tpu.memory_space<vmem>>, vector<4x1024xf32>
    tpu.vector_store %arg8[%c244_271, %c0_272], %275 {strides = array<i32>} : memref<256x1024xf32, #tpu.memory_space<vmem>>, vector<4x1024xf32>,
    %c0_i32_273 = arith.constant 0 : i32
    %c0_i32_274 = arith.constant 0 : i32
    %277 = tpu.memref_slice %arg7[%11, %c0_i32_273, %c0_i32_274] : memref<2x4x1536xf32, #tpu.memory_space<vmem>> -> memref<1x4x1536xf32, #tpu.memory_space<vmem>>
    %278 = tpu.memref_squeeze %277 : memref<1x4x1536xf32, #tpu.memory_space<vmem>> -> memref<4x1536xf32, #tpu.memory_space<vmem>>
    %c0_275 = arith.constant 0 : index
    %c398 = arith.constant 398 : index
    %279 = vector.load %278[%c0_275, %c398] : memref<4x1536xf32, #tpu.memory_space<vmem>>, vector<4x1024xf32>
    %c248 = arith.constant 248 : index
    %c0_276 = arith.constant 0 : index
    %280 = vector.load %arg8[%c248, %c0_276] : memref<256x1024xf32, #tpu.memory_space<vmem>>, vector<4x1024xf32>
    tpu.vector_store %arg8[%c248, %c0_276], %279 {strides = array<i32>} : memref<256x1024xf32, #tpu.memory_space<vmem>>, vector<4x1024xf32>,
    %c0_i32_277 = arith.constant 0 : i32
    %c0_i32_278 = arith.constant 0 : i32
    %281 = tpu.memref_slice %arg7[%11, %c0_i32_277, %c0_i32_278] : memref<2x4x1536xf32, #tpu.memory_space<vmem>> -> memref<1x4x1536xf32, #tpu.memory_space<vmem>>
    %282 = tpu.memref_squeeze %281 : memref<1x4x1536xf32, #tpu.memory_space<vmem>> -> memref<4x1536xf32, #tpu.memory_space<vmem>>
    %c0_279 = arith.constant 0 : index
    %c399 = arith.constant 399 : index
    %283 = vector.load %282[%c0_279, %c399] : memref<4x1536xf32, #tpu.memory_space<vmem>>, vector<4x1024xf32>
    %c252 = arith.constant 252 : index
    %c0_280 = arith.constant 0 : index
    %284 = vector.load %arg8[%c252, %c0_280] : memref<256x1024xf32, #tpu.memory_space<vmem>>, vector<4x1024xf32>
    tpu.vector_store %arg8[%c252, %c0_280], %283 {strides = array<i32>} : memref<256x1024xf32, #tpu.memory_space<vmem>>, vector<4x1024xf32>,
    %c0_281 = arith.constant 0 : index
    %c0_282 = arith.constant 0 : index
    %285 = vector.load %arg8[%c0_281, %c0_282] : memref<256x1024xf32, #tpu.memory_space<vmem>>, vector<256x1024xf32>
    %cst = arith.constant dense<0.000000e+00> : vector<8x1024xf32>
    %286 = tpu.matmul %27, %285, %cst {dimension_numbers = #tpu.dot_dimension_numbers<[1], [0], [0], [1], [0, 0, 1, 1], [], []>} : vector<8x256xf32>, vector<256x1024xf32>, vector<8x1024xf32> -> vector<8x1024xf32>
    %287 = vector.broadcast %28 : vector<8x1xf32> to vector<8x1024xf32>
    %288 = arith.addf %286, %287 : vector<8x1024xf32>
    %cst_283 = arith.constant 0.000000e+00 : f32
    %289 = vector.broadcast %cst_283 : f32 to vector<8x1024xf32>
    %290 = arith.cmpf oge, %288, %289 : vector<8x1024xf32>
    %cst_284 = arith.constant 2.000000e-01 : f32
    %291 = vector.broadcast %cst_284 : f32 to vector<8x1024xf32>
    %292 = arith.mulf %291, %288 : vector<8x1024xf32>
    %293 = arith.select %290, %288, %292 : vector<8x1024xi1>, vector<8x1024xf32>
    %c0_285 = arith.constant 0 : index
    %c0_286 = arith.constant 0 : index
    %c0_287 = arith.constant 0 : index
    %294 = vector.load %arg6[%c0_285, %c0_286, %c0_287] : memref<1x8x1024xf32, #tpu.memory_space<vmem>>, vector<1x8x1024xf32>
    %295 = vector.shape_cast %294 : vector<1x8x1024xf32> to vector<8x1024xf32>
    %296 = vector.shape_cast %293 : vector<8x1024xf32> to vector<1x8x1024xf32>
    tpu.vector_store %arg6[%c0_285, %c0_286, %c0_287], %296 {strides = array<i32>} : memref<1x8x1024xf32, #tpu.memory_space<vmem>>, vector<1x8x1024xf32>,
    return
  }
  func.func @transform_0(%arg0: i32, %arg1: i32, %arg2: i32) -> (i32, i32) {
    %c0_i32 = arith.constant 0 : i32
    %c0_i32_0 = arith.constant 0 : i32
    %c0_i32_1 = arith.constant 0 : i32
    return %c0_i32, %c0_i32_0 : i32, i32
  }
  func.func @transform_1(%arg0: i32, %arg1: i32, %arg2: i32) -> (i32, i32) {
    %c0_i32 = arith.constant 0 : i32
    %c0_i32_0 = arith.constant 0 : i32
    %c0_i32_1 = arith.constant 0 : i32
    return %c0_i32, %c0_i32_0 : i32, i32
  }
  func.func @transform_3(%arg0: i32, %arg1: i32, %arg2: i32) -> (i32, i32, i32) {
    %c1_i32 = arith.constant 1 : i32
    %0 = arith.muli %arg0, %c1_i32 : i32
    %1 = arith.addi %0, %arg2 : i32
    %c0_i32 = arith.constant 0 : i32
    %c0_i32_0 = arith.constant 0 : i32
    return %arg1, %c0_i32, %1 : i32, i32, i32
  }
}

</mosaic_0001>

<llo_original>
// kernel: tpu_custom_call.1
$region0: #{tpu_custom_call.1}
  #allocation0 [shape = 'u32[]', space=smem, size = 0x4, offset = 0x4, fixed_abs, tag = 'smem constant byte address 0x4 - core index']
  #allocation1 [shape = 'u32[144,128]{1,0:T(1,128)}', space=vmem, size = 0x12000, scoped, tag = 'internal scratch']
  #allocation2 [shape = 'f32[2,4,1536]{2,1,0:T(4,128)}', space=vmem, size = 0xc000, scoped, tag = 'scratch operand']
  #allocation3 [shape = 'f32[256,1024]{1,0:T(8,128)}', space=vmem, size = 0x100000, scoped, tag = 'scratch operand']
  #allocation4 [shape = 's32[2]{0}', space=sflag, size = 0x8, scoped, tag = 'scratch operand']
  #allocation9 [shape = 's32[]', space=sflag, size = 0x4, offset = 0, fixed_abs, tag = 'sflag constant byte address 0x0 - dummy sync flag']
  #allocation10 [shape = 's32[]', space=sflag, size = 0x4, offset = 0, fixed_abs, tag = 'sflag constant byte address 0x0 - dummy sync flag']
  #allocation11 [shape = 'u32[]', space=smem, size = 0x4, offset = 0x44, fixed_abs, tag = 'smem constant byte address 0x44 - assertion arg 0']
  #allocation12 [shape = 'u32[]', space=smem, size = 0x4, offset = 0x48, fixed_abs, tag = 'smem constant byte address 0x48 - assertion arg 1']
  #allocation13 [shape = 's32[]', space=sflag, size = 0x4, offset = 0, fixed_abs, tag = 'sflag constant byte address 0x0 - dummy sync flag']
  #allocation14 [shape = 's32[]', space=sflag, size = 0x4, offset = 0, fixed_abs, tag = 'sflag constant byte address 0x0 - dummy sync flag']
  %s0 = inlined_call_operand.hbm [shape: f32[8,256], index: 0, kind: input, shape index: {}]
  %s1 = inlined_call_operand.vmem [shape: f32[8,1], index: 1, kind: input, shape index: {}]
  %s2 = inlined_call_operand.hbm [shape: f32[2,4,1536], index: 2, kind: input, shape index: {}]
  %s3 = inlined_call_operand.hbm [shape: f32[2,8,1024], index: 3, kind: output, shape index: {}]
  %s4 = sld [smem:[#allocation0]]
  $region61: #{tpu_custom_call.1} parent=0
    _
  %s6 = ssub.s32 1, %s4
  %s7 = scalar_select 0, %s6, %s4
  $region1: #{tpu_custom_call.1} parent=0
    #allocation5 [shape = 'u8[8192]{0}', space=vmem, size = 0x2000, scoped, tag = 'input window, operand 0, single buffered']
    #allocation6 [shape = 's32[2]{0}', space=sflag, size = 0x8, scoped, tag = 'scoped memory for tpu_custom_call.1']
    #allocation7 [shape = 's32[2]{0}', space=sflag, size = 0x8, scoped, tag = 'scoped memory for tpu_custom_call.1']
    #allocation8 [shape = 'u8[65536]{0}', space=vmem, size = 0x10000, scoped, tag = 'output window, operand 0']
    %8 = vsyncpa [#allocation6], 0
    %9 = vsyncpa [#allocation7], 0
    %s10 = scalar_lea.sflag [#allocation7], 1
    %11 = vsyncpa %s10, 0
    loop: start=0, step=1, limit=4
    $region2: #{tpu_custom_call.1} parent=1 // loop_pre_header
      _
    $region3: #{tpu_custom_call.1} parent=1 // loop_header
      %s13 = sphi 0, %s17
      %p14 = scmp.ge.s32.totalorder %s13, 4
      %s20 = sphi 0, %s39
      %s21 = sphi 0, %s35
      %s22 = sphi 0, %s31
      %s23 = sphi 0, %s20
      %s24 = sphi 0, %s21
      %s25 = sphi 0, %s22
      %s26 = sphi 0, %s23
      %s27 = sphi 0, %s24
      %s28 = sphi 0, %s25
      %s40 = sphi 0, %s40
      %s42 = sphi 0, %s40
      %s43 = sphi 0, %s42
      %s57 = sphi 0, %s43
      %s61 = sphi 0, %s61
      %s63 = sphi 0, %s61
      %s64 = sphi 0, %s63
      %s78 = sphi 0, %s64
      %s88 = sphi 0, %s90
      %s91 = sphi 0, %s88
      %s92 = sphi 0, %s91
      %s108 = sphi 0, %s92
    $region4: #{tpu_custom_call.1} parent=1 // loop_header_branch
      %16 = sbr.rel (%p14) target = $region8
    $region5: #{tpu_custom_call.1} parent=1 // loop_body
      %s18 = ssub.s32 %s13, 1
      %s19 = ssub.s32 %s13, 2
      %s29 = sadd.s32 1, %s22
      %p30 = scmp.ge.s32.totalorder %s29, 1
      %s31 = scalar_select %p30, 0, %s29
      %s32 = sadd.s32 1, %s21
      %s33 = scalar_select %p30, %s32, %s21
      %p34 = scmp.ge.s32.totalorder %s33, 2
      %s35 = scalar_select %p34, 0, %s33
      %s36 = sadd.s32 1, %s20
      %s37 = scalar_select %p34, %s36, %s20
      %p38 = scmp.ge.s32.totalorder %s37, 1
      %s39 = scalar_select %p38, 0, %s37
      %s41 = sadd.s32 %s40, 1
      %p44 = scmp.eq.s32.totalorder %s13, 1
      %p45 = scmp.ne.s32.totalorder %s40, %s42
      %p46 = scmp.eq.s32.totalorder %s13, 0
      %p47 = por %p45, %p46
      %p48 = scmp.ne.s32.totalorder %s40, %s42
      %p49 = scmp.eq.s32.totalorder %s18, 1
      %p50 = por %p48, %p49
      %p51 = scmp.ne.s32.totalorder %s42, %s43
      %p52 = scmp.eq.s32.totalorder %s18, 0
      %p53 = por %p51, %p52
      %p54 = scmp.ne.s32.totalorder %s42, %s43
      %p55 = scmp.eq.s32.totalorder %s19, 1
      %p56 = por %p54, %p55
      %p58 = scmp.ne.s32.totalorder %s43, %s57
      %p59 = scmp.eq.s32.totalorder %s19, 0
      %p60 = por %p58, %p59
      %s62 = sadd.s32 %s61, 1
      %p65 = scmp.eq.s32.totalorder %s13, 1
      %p66 = scmp.ne.s32.totalorder %s61, %s63
      %p67 = scmp.eq.s32.totalorder %s13, 0
      %p68 = por %p66, %p67
      %p69 = scmp.ne.s32.totalorder %s61, %s63
      %p70 = scmp.eq.s32.totalorder %s18, 1
      %p71 = por %p69, %p70
      %p72 = scmp.ne.s32.totalorder %s63, %s64
      %p73 = scmp.eq.s32.totalorder %s18, 0
      %p74 = por %p72, %p73
      %p75 = scmp.ne.s32.totalorder %s63, %s64
      %p76 = scmp.eq.s32.totalorder %s19, 1
      %p77 = por %p75, %p76
      %p79 = scmp.ne.s32.totalorder %s64, %s78
      %p80 = scmp.eq.s32.totalorder %s19, 0
      %p81 = por %p79, %p80
      %s82 = sadd.s32 %s20, %s22
      %s83 = sadd.s32 %s39, %s31
      %s84 = ssub.s32 %s21, %s35
      %s85 = ssub.s32 %s82, %s83
      %s86 = sor.u32 %s84, %s85
      %p87 = scmp.eq.s32.totalorder %s86, 0
      %s89 = sadd.s32 %s88, 1
      %s90 = scalar_select %p87, %s88, %s89
      %p93 = pneg %p87
      %p94 = scmp.eq.s32.totalorder %s13, 1
      %p95 = por %p93, %p94
      %p96 = scmp.ne.s32.totalorder %s88, %s91
      %p97 = scmp.eq.s32.totalorder %s13, 0
      %p98 = por %p96, %p97
      %p99 = scmp.ne.s32.totalorder %s88, %s91
      %p100 = scmp.eq.s32.totalorder %s18, 1
      %p101 = por %p99, %p100
      %p102 = scmp.ne.s32.totalorder %s91, %s92
      %p103 = scmp.eq.s32.totalorder %s18, 0
      %p104 = por %p102, %p103
      %p105 = scmp.ne.s32.totalorder %s91, %s92
      %p106 = scmp.eq.s32.totalorder %s19, 1
      %p107 = por %p105, %p106
      %p109 = scmp.ne.s32.totalorder %s92, %s108
      %p110 = scmp.eq.s32.totalorder %s19, 0
      %p111 = por %p109, %p110
      %p112 = scmp.le.s32.totalorder 1, %s13
      %p113 = scmp.lt.s32.totalorder %s13, 3
      %p114 = pnand %p112, %p113
      %p115 = pneg %p114
      // Predicated region
      $region9: #{tpu_custom_call.1} parent=5 // pred_check
        _
      $region10: #{tpu_custom_call.1} parent=5 // pred_check_branch
        %117 = sbr.rel (%p114) target = $region12
      $region11: #{tpu_custom_call.1} parent=5 // pred_region
        %s118 = ssub.s32 %s13, 1
        // Predicated region
        $region13: #{tpu_custom_call.1} parent=11 // pred_check
          %p119 = pneg %p53
        $region14: #{tpu_custom_call.1} parent=11 // pred_check_branch
          %121 = sbr.rel (%p119) target = $region16
        $region15: #{tpu_custom_call.1} parent=11 // pred_region
          %s123 = ssub.s32 256, 256
          %124 = vsyncadd [#allocation6], %s123
          %s126 = sshll.u32 [#allocation5], 4
          %s127 = int_to_ptr.vmem [resolvable:$true] %s126
          %129 = dma.hbm_to_vmem [thread:$0]  %s0, 256, %s127, [#allocation6]
        $region16: #{tpu_custom_call.1} parent=11 // pred_fallthru
          _
        // Predicated region
        $region17: #{tpu_custom_call.1} parent=11 // pred_check
          %p130 = pneg %p74
        $region18: #{tpu_custom_call.1} parent=11 // pred_check_branch
          %132 = sbr.rel (%p130) target = $region20
        $region19: #{tpu_custom_call.1} parent=11 // pred_region
          _
        $region20: #{tpu_custom_call.1} parent=11 // pred_fallthru
          _
      $region12: #{tpu_custom_call.1} parent=5 // pred_fallthru
        _
      %p133 = scmp.lt.s32.totalorder %s13, 2
      // Predicated region
      $region21: #{tpu_custom_call.1} parent=5 // pred_check
        %p134 = pneg %p133
      $region22: #{tpu_custom_call.1} parent=5 // pred_check_branch
        %136 = sbr.rel (%p134) target = $region24
      $region23: #{tpu_custom_call.1} parent=5 // pred_region
        _
      $region24: #{tpu_custom_call.1} parent=5 // pred_fallthru
        _
      %p137 = scmp.le.s32.totalorder 1, %s13
      %p138 = scmp.lt.s32.totalorder %s13, 3
      %p139 = pnand %p137, %p138
      %p140 = pneg %p139
      // Predicated region
      $region25: #{tpu_custom_call.1} parent=5 // pred_check
        _
      $region26: #{tpu_custom_call.1} parent=5 // pred_check_branch
        %142 = sbr.rel (%p139) target = $region28
      $region27: #{tpu_custom_call.1} parent=5 // pred_region
        %s143 = ssub.s32 %s13, 1
        // Predicated region
        $region29: #{tpu_custom_call.1} parent=27 // pred_check
          %p144 = pneg %p53
        $region30: #{tpu_custom_call.1} parent=27 // pred_check_branch
          %146 = sbr.rel (%p144) target = $region32
        $region31: #{tpu_custom_call.1} parent=27 // pred_region
          %147 = dma.done [#allocation6], 256
        $region32: #{tpu_custom_call.1} parent=27 // pred_fallthru
          _
        %p148 = pneg %p53
        %p149 = pneg %p50
        %p150 = pneg %p74
        %p151 = pneg %p71
        %p152 = pneg %p104
        %p153 = pneg %p101
        %s154 = sand.u32 %s91, 1
        %s155 = scalar_lea.sflag [#allocation7], %s154
        %s156 = sand.u32 %s91, 1
        %s157 = smul.addr %s156, 64
        %s158 = scalar_lea.vmem [#allocation8], %s157
        %s159 = sadd.s32 %s23, %s25
        %s160 = smul.u32 8, %s159
        %s161 = sadd.s32 %s23, %s25
        %p162 = scmp.lt.s32.totalorder %s25, 0
        %s163 = ssub.s32 0, %s25
        %s164 = scalar_select %p162, %s163, %s25
        %s165 = sand.u32 %s164, 1
        %s166 = ssub.s32 0, %s165
        %s167 = scalar_select %p162, %s166, %s165
        %p168 = scmp.ne.s32.totalorder %s167, 0
        %p169 = scmp.lt.s32.totalorder %s167, 0
        %p170 = pnand %p169, %p168
        %p171 = pneg %p170
        %s172 = sadd.s32 %s167, 2
        %s173 = scalar_select %p171, %s172, %s167
        %p174 = scmp.eq.s32.totalorder %s25, 0
        // Predicated region
        $region33: #{tpu_custom_call.1} parent=27 // pred_check
          %p175 = pneg %p174
        $region34: #{tpu_custom_call.1} parent=27 // pred_check_branch
          %177 = sbr.rel (%p175) target = $region36
        $region35: #{tpu_custom_call.1} parent=27 // pred_region
          %s178 = smul.u32 %s161, 1024
          %s179 = sshra.s32 %s178, 7
          %s180 = sand.u32 %s178, 127
          %s181 = smul.u32 %s24, 12
          %s182 = sadd.s32 %s179, %s181
          %s183 = smul.addr %s182, 64
          %s184 = scalar_lea.hbm %s2, %s183
          %s185 = smul.u32 %s173, 12
          %s186 = smul.addr %s185, 4
          %s187 = scalar_lea.vmem [#allocation2], %s186
          %s188 = scalar_lea.sflag [#allocation4], %s173
          // Predicated region
          $region37: #{tpu_custom_call.1} parent=35 // pred_check
            _
          $region38: #{tpu_custom_call.1} parent=35 // pred_check_branch
            %190 = sbr.rel target = $region40
          $region39: #{tpu_custom_call.1} parent=35 // pred_region
            %191 = sst [smem:[#allocation11]] [#allocation10]
            %192 = sst [smem:[#allocation12]] [#allocation9]
          $region40: #{tpu_custom_call.1} parent=35 // pred_fallthru
            _
          %194 = shalt.err (0)
          %s196 = sshll.u32 %s187, 4
          %s197 = int_to_ptr.vmem [resolvable:$true] %s196
          %199 = dma.hbm_to_vmem [thread:$0]  %s184, 768, %s197, %s188
        $region36: #{tpu_custom_call.1} parent=27 // pred_fallthru
          _
        %s200 = smul.u32 %s161, 1024
        %s201 = smul.u32 %s173, 12
        %s202 = smul.addr %s201, 4
        %s203 = scalar_lea.vmem [#allocation2], %s202
        %s204 = scalar_lea.sflag [#allocation4], %s173
        %s205 = smul.u32 4, 1
        %s206 = smul.u32 %s205, 12
        %s207 = sshll.u32 %s206, 4
        %208 = dma.done %s204, %s207
        %s209 = sadd.s32 %s25, 1
        %p210 = scmp.lt.s32.totalorder %s209, 1
        // Predicated region
        $region41: #{tpu_custom_call.1} parent=27 // pred_check
          %p211 = pneg %p210
        $region42: #{tpu_custom_call.1} parent=27 // pred_check_branch
          %213 = sbr.rel (%p211) target = $region44
        $region43: #{tpu_custom_call.1} parent=27 // pred_region
          %s214 = sadd.s32 %s161, 1
          %s215 = ssub.s32 1, %s173
          %s216 = smul.u32 %s214, 1024
          %s217 = sshra.s32 %s216, 7
          %s218 = sand.u32 %s216, 127
          %s219 = smul.u32 %s24, 12
          %s220 = sadd.s32 %s217, %s219
          %s221 = smul.addr %s220, 64
          %s222 = scalar_lea.hbm %s2, %s221
          %s223 = smul.u32 %s215, 12
          %s224 = smul.addr %s223, 4
          %s225 = scalar_lea.vmem [#allocation2], %s224
          %s226 = scalar_lea.sflag [#allocation4], %s215
          // Predicated region
          $region45: #{tpu_custom_call.1} parent=43 // pred_check
            _
          $region46: #{tpu_custom_call.1} parent=43 // pred_check_branch
            %228 = sbr.rel target = $region48
          $region47: #{tpu_custom_call.1} parent=43 // pred_region
            %229 = sst [smem:[#allocation11]] [#allocation14]
            %230 = sst [smem:[#allocation12]] [#allocation13]
          $region48: #{tpu_custom_call.1} parent=43 // pred_fallthru
            _
          %232 = shalt.err (0)
          %s234 = sshll.u32 %s225, 4
          %s235 = int_to_ptr.vmem [resolvable:$true] %s234
          %237 = dma.hbm_to_vmem [thread:$0]  %s222, 768, %s235, %s226
        $region44: #{tpu_custom_call.1} parent=27 // pred_fallthru
          _
        %v238 = vld [vmem:[#allocation5] sm:$0xff]
        %v239 = vld [vmem:[#allocation5 + $0x8] sm:$0xff]
        %v240 = vld [vmem:[%s1] sm:$0xff]
        %v241 = vld [vmem:[%s203] sm:$0xff]
        %v242 = vld [vmem:[%s203 + $0x8] sm:$0xff]
        %v243 = vld [vmem:[%s203 + $0x10] sm:$0xff]
        %v244 = vld [vmem:[%s203 + $0x18] sm:$0xff]
        %v249 = vcombine.high %v241, %v241
        %v250 = vcombine.high %v242, %v242
        %v251 = vcombine.high %v243, %v243
        %v252 = vcombine.high %v244, %v244
        %257 = vst [vmem:[#allocation3] sm:$0xf] %v241
        %258 = vst [vmem:[#allocation3 + $0x8] sm:$0xf] %v249
        %259 = vst [vmem:[#allocation3 + $0x10] sm:$0xf] %v242
        %260 = vst [vmem:[#allocation3 + $0x18] sm:$0xf] %v250
        %261 = vst [vmem:[#allocation3 + $0x20] sm:$0xf] %v243
        %262 = vst [vmem:[#allocation3 + $0x28] sm:$0xf] %v251
        %263 = vst [vmem:[#allocation3 + $0x30] sm:$0xf] %v244
        %264 = vst [vmem:[#allocation3 + $0x38] sm:$0xf] %v252
        %v265 = vld [vmem:[%s203] sm:$0xff]
        %v266 = vld [vmem:[%s203 + $0x8] sm:$0xff]
        %v267 = vld [vmem:[%s203 + $0x10] sm:$0xff]
        %v268 = vld [vmem:[%s203 + $0x18] sm:$0xff]
        %v269 = vld [vmem:[%s203 + $0x20] sm:$0xf]
        %v275 = vcombine.low %v265, %v265
        %v276 = vcombine.low %v266, %v266
        %v277 = vcombine.low %v267, %v267
        %v278 = vcombine.low %v268, %v268
        %v279 = vcombine.low %v269, %v269
        %280 = vrot.lane.b32.xlu0 %v275, 127
        %v281 = vpop.permute.xlu0 %280
        %282 = vrot.lane.b32.xlu0 %v265, 127
        %v283 = vpop.permute.xlu0 %282
        %284 = vrot.lane.b32.xlu0 %v276, 127
        %v285 = vpop.permute.xlu0 %284
        %286 = vrot.lane.b32.xlu0 %v266, 127
        %v287 = vpop.permute.xlu0 %286
        %288 = vrot.lane.b32.xlu0 %v277, 127
        %v289 = vpop.permute.xlu0 %288
        %290 = vrot.lane.b32.xlu0 %v267, 127
        %v291 = vpop.permute.xlu0 %290
        %292 = vrot.lane.b32.xlu0 %v278, 127
        %v293 = vpop.permute.xlu0 %292
        %294 = vrot.lane.b32.xlu0 %v268, 127
        %v295 = vpop.permute.xlu0 %294
        %296 = vrot.lane.b32.xlu0 %v279, 127
        %v297 = vpop.permute.xlu0 %296
        %vm298 = vcmask 1039360
        %v299 = vsel %vm298, %v281, %v283
        %v300 = vsel %vm298, %v283, %v285
        %v301 = vsel %vm298, %v285, %v287
        %v302 = vsel %vm298, %v287, %v289
        %v303 = vsel %vm298, %v289, %v291
        %v304 = vsel %vm298, %v291, %v293
        %v305 = vsel %vm298, %v293, %v295
        %v306 = vsel %vm298, %v295, %v297
        %315 = vst [vmem:[#allocation3] sm:$0xf0] %v299
        %316 = vst [vmem:[#allocation3 + $0x8] sm:$0xf0] %v300
        %317 = vst [vmem:[#allocation3 + $0x10] sm:$0xf0] %v301
        %318 = vst [vmem:[#allocation3 + $0x18] sm:$0xf0] %v302
        %319 = vst [vmem:[#allocation3 + $0x20] sm:$0xf0] %v303
        %320 = vst [vmem:[#allocation3 + $0x28] sm:$0xf0] %v304
        %321 = vst [vmem:[#allocation3 + $0x30] sm:$0xf0] %v305
        %322 = vst [vmem:[#allocation3 + $0x38] sm:$0xf0] %v306
        %v323 = vld [vmem:[%s203] sm:$0xff]
        %v324 = vld [vmem:[%s203 + $0x8] sm:$0xff]
        %v325 = vld [vmem:[%s203 + $0x10] sm:$0xff]
        %v326 = vld [vmem:[%s203 + $0x18] sm:$0xff]
        %v327 = vld [vmem:[%s203 + $0x20] sm:$0xf]
        %v333 = vcombine.high %v323, %v323
        %v334 = vcombine.high %v324, %v324
        %v335 = vcombine.high %v325, %v325
        %v336 = vcombine.high %v326, %v326
        %337 = vrot.lane.b32.xlu0 %v323, 126
        %v338 = vpop.permute.xlu0 %337
        %339 = vrot.lane.b32.xlu0 %v333, 126
        %v340 = vpop.permute.xlu0 %339
        %341 = vrot.lane.b32.xlu0 %v324, 126
        %v342 = vpop.permute.xlu0 %341
        %343 = vrot.lane.b32.xlu0 %v334, 126
        %v344 = vpop.permute.xlu0 %343
        %345 = vrot.lane.b32.xlu0 %v325, 126
        %v346 = vpop.permute.xlu0 %345
        %347 = vrot.lane.b32.xlu0 %v335, 126
        %v348 = vpop.permute.xlu0 %347
        %349 = vrot.lane.b32.xlu0 %v326, 126
        %v350 = vpop.permute.xlu0 %349
        %351 = vrot.lane.b32.xlu0 %v336, 126
        %v352 = vpop.permute.xlu0 %351
        %353 = vrot.lane.b32.xlu0 %v327, 126
        %v354 = vpop.permute.xlu0 %353
        %vm355 = vcmask 1031168
        %v356 = vsel %vm355, %v338, %v340
        %v357 = vsel %vm355, %v340, %v342
        %v358 = vsel %vm355, %v342, %v344
        %v359 = vsel %vm355, %v344, %v346
        %v360 = vsel %vm355, %v346, %v348
        %v361 = vsel %vm355, %v348, %v350
        %v362 = vsel %vm355, %v350, %v352
        %v363 = vsel %vm355, %v352, %v354
        %372 = vst [vmem:[#allocation3 + $0x40] sm:$0xf] %v356
        %373 = vst [vmem:[#allocation3 + $0x48] sm:$0xf] %v357
        %374 = vst [vmem:[#allocation3 + $0x50] sm:$0xf] %v358
        %375 = vst [vmem:[#allocation3 + $0x58] sm:$0xf] %v359
        %376 = vst [vmem:[#allocation3 + $0x60] sm:$0xf] %v360
        %377 = vst [vmem:[#allocation3 + $0x68] sm:$0xf] %v361
        %378 = vst [vmem:[#allocation3 + $0x70] sm:$0xf] %v362
        %379 = vst [vmem:[#allocation3 + $0x78] sm:$0xf] %v363
        %v380 = vld [vmem:[%s203] sm:$0xff]
        %v381 = vld [vmem:[%s203 + $0x8] sm:$0xff]
        %v382 = vld [vmem:[%s203 + $0x10] sm:$0xff]
        %v383 = vld [vmem:[%s203 + $0x18] sm:$0xff]
        %v384 = vld [vmem:[%s203 + $0x20] sm:$0xf]
        %v390 = vcombine.low %v380, %v380
        %v391 = vcombine.low %v381, %v381
        %v392 = vcombine.low %v382, %v382
        %v393 = vcombine.low %v383, %v383
        %v394 = vcombine.low %v384, %v384
        %395 = vrot.lane.b32.xlu0 %v390, 125
        %v396 = vpop.permute.xlu0 %395
        %397 = vrot.lane.b32.xlu0 %v380, 125
        %v398 = vpop.permute.xlu0 %397
        %399 = vrot.lane.b32.xlu0 %v391, 125
        %v400 = vpop.permute.xlu0 %399
        %401 = vrot.lane.b32.xlu0 %v381, 125
        %v402 = vpop.permute.xlu0 %401
        %403 = vrot.lane.b32.xlu0 %v392, 125
        %v404 = vpop.permute.xlu0 %403
        %405 = vrot.lane.b32.xlu0 %v382, 125
        %v406 = vpop.permute.xlu0 %405
        %407 = vrot.lane.b32.xlu0 %v393, 125
        %v408 = vpop.permute.xlu0 %407
        %409 = vrot.lane.b32.xlu0 %v383, 125
        %v410 = vpop.permute.xlu0 %409
        %411 = vrot.lane.b32.xlu0 %v394, 125
        %v412 = vpop.permute.xlu0 %411
        %vm413 = vcmask 1022976
        %v414 = vsel %vm413, %v396, %v398
        %v415 = vsel %vm413, %v398, %v400
        %v416 = vsel %vm413, %v400, %v402
        %v417 = vsel %vm413, %v402, %v404
        %v418 = vsel %vm413, %v404, %v406
        %v419 = vsel %vm413, %v406, %v408
        %v420 = vsel %vm413, %v408, %v410
        %v421 = vsel %vm413, %v410, %v412
        %430 = vst [vmem:[#allocation3 + $0x40] sm:$0xf0] %v414
        %431 = vst [vmem:[#allocation3 + $0x48] sm:$0xf0] %v415
        %432 = vst [vmem:[#allocation3 + $0x50] sm:$0xf0] %v416
        %433 = vst [vmem:[#allocation3 + $0x58] sm:$0xf0] %v417
        %434 = vst [vmem:[#allocation3 + $0x60] sm:$0xf0] %v418
        %435 = vst [vmem:[#allocation3 + $0x68] sm:$0xf0] %v419
        %436 = vst [vmem:[#allocation3 + $0x70] sm:$0xf0] %v420
        %437 = vst [vmem:[#allocation3 + $0x78] sm:$0xf0] %v421
        %v438 = vld [vmem:[%s203] sm:$0xff]
        %v439 = vld [vmem:[%s203 + $0x8] sm:$0xff]
        %v440 = vld [vmem:[%s203 + $0x10] sm:$0xff]
        %v441 = vld [vmem:[%s203 + $0x18] sm:$0xff]
        %v442 = vld [vmem:[%s203 + $0x20] sm:$0xf]
        %v448 = vcombine.high %v438, %v438
        %v449 = vcombine.high %v439, %v439
        %v450 = vcombine.high %v440, %v440
        %v451 = vcombine.high %v441, %v441
        %452 = vrot.lane.b32.xlu0 %v438, 117
        %v453 = vpop.permute.xlu0 %452
        %454 = vrot.lane.b32.xlu0 %v448, 117
        %v455 = vpop.permute.xlu0 %454
        %456 = vrot.lane.b32.xlu0 %v439, 117
        %v457 = vpop.permute.xlu0 %456
        %458 = vrot.lane.b32.xlu0 %v449, 117
        %v459 = vpop.permute.xlu0 %458
        %460 = vrot.lane.b32.xlu0 %v440, 117
        %v461 = vpop.permute.xlu0 %460
        %462 = vrot.lane.b32.xlu0 %v450, 117
        %v463 = vpop.permute.xlu0 %462
        %464 = vrot.lane.b32.xlu0 %v441, 117
        %v465 = vpop.permute.xlu0 %464
        %466 = vrot.lane.b32.xlu0 %v451, 117
        %v467 = vpop.permute.xlu0 %466
        %468 = vrot.lane.b32.xlu0 %v442, 117
        %v469 = vpop.permute.xlu0 %468
        %vm470 = vcmask 957440
        %v471 = vsel %vm470, %v453, %v455
        %v472 = vsel %vm470, %v455, %v457
        %v473 = vsel %vm470, %v457, %v459
        %v474 = vsel %vm470, %v459, %v461
        %v475 = vsel %vm470, %v461, %v463
        %v476 = vsel %vm470, %v463, %v465
        %v477 = vsel %vm470, %v465, %v467
        %v478 = vsel %vm470, %v467, %v469
        %487 = vst [vmem:[#allocation3 + $0x80] sm:$0xf] %v471
        %488 = vst [vmem:[#allocation3 + $0x88] sm:$0xf] %v472
        %489 = vst [vmem:[#allocation3 + $0x90] sm:$0xf] %v473
        %490 = vst [vmem:[#allocation3 + $0x98] sm:$0xf] %v474
        %491 = vst [vmem:[#allocation3 + $0xa0] sm:$0xf] %v475
        %492 = vst [vmem:[#allocation3 + $0xa8] sm:$0xf] %v476
        %493 = vst [vmem:[#allocation3 + $0xb0] sm:$0xf] %v477
        %494 = vst [vmem:[#allocation3 + $0xb8] sm:$0xf] %v478
        %v495 = vld [vmem:[%s203] sm:$0xff]
        %v496 = vld [vmem:[%s203 + $0x8] sm:$0xff]
        %v497 = vld [vmem:[%s203 + $0x10] sm:$0xff]
        %v498 = vld [vmem:[%s203 + $0x18] sm:$0xff]
        %v499 = vld [vmem:[%s203 + $0x20] sm:$0xf]
        %v505 = vcombine.low %v495, %v495
        %v506 = vcombine.low %v496, %v496
        %v507 = vcombine.low %v497, %v497
        %v508 = vcombine.low %v498, %v498
        %v509 = vcombine.low %v499, %v499
        %510 = vrot.lane.b32.xlu0 %v505, 116
        %v511 = vpop.permute.xlu0 %510
        %512 = vrot.lane.b32.xlu0 %v495, 116
        %v513 = vpop.permute.xlu0 %512
        %514 = vrot.lane.b32.xlu0 %v506, 116
        %v515 = vpop.permute.xlu0 %514
        %516 = vrot.lane.b32.xlu0 %v496, 116
        %v517 = vpop.permute.xlu0 %516
        %518 = vrot.lane.b32.xlu0 %v507, 116
        %v519 = vpop.permute.xlu0 %518
        %520 = vrot.lane.b32.xlu0 %v497, 116
        %v521 = vpop.permute.xlu0 %520
        %522 = vrot.lane.b32.xlu0 %v508, 116
        %v523 = vpop.permute.xlu0 %522
        %524 = vrot.lane.b32.xlu0 %v498, 116
        %v525 = vpop.permute.xlu0 %524
        %526 = vrot.lane.b32.xlu0 %v509, 116
        %v527 = vpop.permute.xlu0 %526
        %vm528 = vcmask 949248
        %v529 = vsel %vm528, %v511, %v513
        %v530 = vsel %vm528, %v513, %v515
        %v531 = vsel %vm528, %v515, %v517
        %v532 = vsel %vm528, %v517, %v519
        %v533 = vsel %vm528, %v519, %v521
        %v534 = vsel %vm528, %v521, %v523
        %v535 = vsel %vm528, %v523, %v525
        %v536 = vsel %vm528, %v525, %v527
        %545 = vst [vmem:[#allocation3 + $0x80] sm:$0xf0] %v529
        %546 = vst [vmem:[#allocation3 + $0x88] sm:$0xf0] %v530
        %547 = vst [vmem:[#allocation3 + $0x90] sm:$0xf0] %v531
        %548 = vst [vmem:[#allocation3 + $0x98] sm:$0xf0] %v532
        %549 = vst [vmem:[#allocation3 + $0xa0] sm:$0xf0] %v533
        %550 = vst [vmem:[#allocation3 + $0xa8] sm:$0xf0] %v534
        %551 = vst [vmem:[#allocation3 + $0xb0] sm:$0xf0] %v535
        %552 = vst [vmem:[#allocation3 + $0xb8] sm:$0xf0] %v536
        %v553 = vld [vmem:[%s203] sm:$0xff]
        %v554 = vld [vmem:[%s203 + $0x8] sm:$0xff]
        %v555 = vld [vmem:[%s203 + $0x10] sm:$0xff]
        %v556 = vld [vmem:[%s203 + $0x18] sm:$0xff]
        %v557 = vld [vmem:[%s203 + $0x20] sm:$0xf]
        %v563 = vcombine.high %v553, %v553
        %v564 = vcombine.high %v554, %v554
        %v565 = vcombine.high %v555, %v555
        %v566 = vcombine.high %v556, %v556
        %567 = vrot.lane.b32.xlu0 %v553, 115
        %v568 = vpop.permute.xlu0 %567
        %569 = vrot.lane.b32.xlu0 %v563, 115
        %v570 = vpop.permute.xlu0 %569
        %571 = vrot.lane.b32.xlu0 %v554, 115
        %v572 = vpop.permute.xlu0 %571
        %573 = vrot.lane.b32.xlu0 %v564, 115
        %v574 = vpop.permute.xlu0 %573
        %575 = vrot.lane.b32.xlu0 %v555, 115
        %v576 = vpop.permute.xlu0 %575
        %577 = vrot.lane.b32.xlu0 %v565, 115
        %v578 = vpop.permute.xlu0 %577
        %579 = vrot.lane.b32.xlu0 %v556, 115
        %v580 = vpop.permute.xlu0 %579
        %581 = vrot.lane.b32.xlu0 %v566, 115
        %v582 = vpop.permute.xlu0 %581
        %583 = vrot.lane.b32.xlu0 %v557, 115
        %v584 = vpop.permute.xlu0 %583
        %vm585 = vcmask 941056
        %v586 = vsel %vm585, %v568, %v570
        %v587 = vsel %vm585, %v570, %v572
        %v588 = vsel %vm585, %v572, %v574
        %v589 = vsel %vm585, %v574, %v576
        %v590 = vsel %vm585, %v576, %v578
        %v591 = vsel %vm585, %v578, %v580
        %v592 = vsel %vm585, %v580, %v582
        %v593 = vsel %vm585, %v582, %v584
        %602 = vst [vmem:[#allocation3 + $0xc0] sm:$0xf] %v586
        %603 = vst [vmem:[#allocation3 + $0xc8] sm:$0xf] %v587
        %604 = vst [vmem:[#allocation3 + $0xd0] sm:$0xf] %v588
        %605 = vst [vmem:[#allocation3 + $0xd8] sm:$0xf] %v589
        %606 = vst [vmem:[#allocation3 + $0xe0] sm:$0xf] %v590
        %607 = vst [vmem:[#allocation3 + $0xe8] sm:$0xf] %v591
        %608 = vst [vmem:[#allocation3 + $0xf0] sm:$0xf] %v592
        %609 = vst [vmem:[#allocation3 + $0xf8] sm:$0xf] %v593
        %v610 = vld [vmem:[%s203] sm:$0xff]
        %v611 = vld [vmem:[%s203 + $0x8] sm:$0xff]
        %v612 = vld [vmem:[%s203 + $0x10] sm:$0xff]
        %v613 = vld [vmem:[%s203 + $0x18] sm:$0xff]
        %v614 = vld [vmem:[%s203 + $0x20] sm:$0xf]
        %v620 = vcombine.low %v610, %v610
        %v621 = vcombine.low %v611, %v611
        %v622 = vcombine.low %v612, %v612
        %v623 = vcombine.low %v613, %v613
        %v624 = vcombine.low %v614, %v614
        %625 = vrot.lane.b32.xlu0 %v620, 114
        %v626 = vpop.permute.xlu0 %625
        %627 = vrot.lane.b32.xlu0 %v610, 114
        %v628 = vpop.permute.xlu0 %627
        %629 = vrot.lane.b32.xlu0 %v621, 114
        %v630 = vpop.permute.xlu0 %629
        %631 = vrot.lane.b32.xlu0 %v611, 114
        %v632 = vpop.permute.xlu0 %631
        %633 = vrot.lane.b32.xlu0 %v622, 114
        %v634 = vpop.permute.xlu0 %633
        %635 = vrot.lane.b32.xlu0 %v612, 114
        %v636 = vpop.permute.xlu0 %635
        %637 = vrot.lane.b32.xlu0 %v623, 114
        %v638 = vpop.permute.xlu0 %637
        %639 = vrot.lane.b32.xlu0 %v613, 114
        %v640 = vpop.permute.xlu0 %639
        %641 = vrot.lane.b32.xlu0 %v624, 114
        %v642 = vpop.permute.xlu0 %641
        %vm643 = vcmask 932864
        %v644 = vsel %vm643, %v626, %v628
        %v645 = vsel %vm643, %v628, %v630
        %v646 = vsel %vm643, %v630, %v632
        %v647 = vsel %vm643, %v632, %v634
        %v648 = vsel %vm643, %v634, %v636
        %v649 = vsel %vm643, %v636, %v638
        %v650 = vsel %vm643, %v638, %v640
        %v651 = vsel %vm643, %v640, %v642
        %660 = vst [vmem:[#allocation3 + $0xc0] sm:$0xf0] %v644
        %661 = vst [vmem:[#allocation3 + $0xc8] sm:$0xf0] %v645
        %662 = vst [vmem:[#allocation3 + $0xd0] sm:$0xf0] %v646
        %663 = vst [vmem:[#allocation3 + $0xd8] sm:$0xf0] %v647
        %664 = vst [vmem:[#allocation3 + $0xe0] sm:$0xf0] %v648
        %665 = vst [vmem:[#allocation3 + $0xe8] sm:$0xf0] %v649
        %666 = vst [vmem:[#allocation3 + $0xf0] sm:$0xf0] %v650
        %667 = vst [vmem:[#allocation3 + $0xf8] sm:$0xf0] %v651
        %v668 = vld [vmem:[%s203] sm:$0xff]
        %v669 = vld [vmem:[%s203 + $0x8] sm:$0xff]
        %v670 = vld [vmem:[%s203 + $0x10] sm:$0xff]
        %v671 = vld [vmem:[%s203 + $0x18] sm:$0xff]
        %v672 = vld [vmem:[%s203 + $0x20] sm:$0xf]
        %v678 = vcombine.high %v668, %v668
        %v679 = vcombine.high %v669, %v669
        %v680 = vcombine.high %v670, %v670
        %v681 = vcombine.high %v671, %v671
        %682 = vrot.lane.b32.xlu0 %v668, 106
        %v683 = vpop.permute.xlu0 %682
        %684 = vrot.lane.b32.xlu0 %v678, 106
        %v685 = vpop.permute.xlu0 %684
        %686 = vrot.lane.b32.xlu0 %v669, 106
        %v687 = vpop.permute.xlu0 %686
        %688 = vrot.lane.b32.xlu0 %v679, 106
        %v689 = vpop.permute.xlu0 %688
        %690 = vrot.lane.b32.xlu0 %v670, 106
        %v691 = vpop.permute.xlu0 %690
        %692 = vrot.lane.b32.xlu0 %v680, 106
        %v693 = vpop.permute.xlu0 %692
        %694 = vrot.lane.b32.xlu0 %v671, 106
        %v695 = vpop.permute.xlu0 %694
        %696 = vrot.lane.b32.xlu0 %v681, 106
        %v697 = vpop.permute.xlu0 %696
        %698 = vrot.lane.b32.xlu0 %v672, 106
        %v699 = vpop.permute.xlu0 %698
        %vm700 = vcmask 867328
        %v701 = vsel %vm700, %v683, %v685
        %v702 = vsel %vm700, %v685, %v687
        %v703 = vsel %vm700, %v687, %v689
        %v704 = vsel %vm700, %v689, %v691
        %v705 = vsel %vm700, %v691, %v693
        %v706 = vsel %vm700, %v693, %v695
        %v707 = vsel %vm700, %v695, %v697
        %v708 = vsel %vm700, %v697, %v699
        %717 = vst [vmem:[#allocation3 + $0x100] sm:$0xf] %v701
        %718 = vst [vmem:[#allocation3 + $0x108] sm:$0xf] %v702
        %719 = vst [vmem:[#allocation3 + $0x110] sm:$0xf] %v703
        %720 = vst [vmem:[#allocation3 + $0x118] sm:$0xf] %v704
        %721 = vst [vmem:[#allocation3 + $0x120] sm:$0xf] %v705
        %722 = vst [vmem:[#allocation3 + $0x128] sm:$0xf] %v706
        %723 = vst [vmem:[#allocation3 + $0x130] sm:$0xf] %v707
        %724 = vst [vmem:[#allocation3 + $0x138] sm:$0xf] %v708
        %v725 = vld [vmem:[%s203] sm:$0xff]
        %v726 = vld [vmem:[%s203 + $0x8] sm:$0xff]
        %v727 = vld [vmem:[%s203 + $0x10] sm:$0xff]
        %v728 = vld [vmem:[%s203 + $0x18] sm:$0xff]
        %v729 = vld [vmem:[%s203 + $0x20] sm:$0xf]
        %v735 = vcombine.low %v725, %v725
        %v736 = vcombine.low %v726, %v726
        %v737 = vcombine.low %v727, %v727
        %v738 = vcombine.low %v728, %v728
        %v739 = vcombine.low %v729, %v729
        %740 = vrot.lane.b32.xlu0 %v735, 105
        %v741 = vpop.permute.xlu0 %740
        %742 = vrot.lane.b32.xlu0 %v725, 105
        %v743 = vpop.permute.xlu0 %742
        %744 = vrot.lane.b32.xlu0 %v736, 105
        %v745 = vpop.permute.xlu0 %744
        %746 = vrot.lane.b32.xlu0 %v726, 105
        %v747 = vpop.permute.xlu0 %746
        %748 = vrot.lane.b32.xlu0 %v737, 105
        %v749 = vpop.permute.xlu0 %748
        %750 = vrot.lane.b32.xlu0 %v727, 105
        %v751 = vpop.permute.xlu0 %750
        %752 = vrot.lane.b32.xlu0 %v738, 105
        %v753 = vpop.permute.xlu0 %752
        %754 = vrot.lane.b32.xlu0 %v728, 105
        %v755 = vpop.permute.xlu0 %754
        %756 = vrot.lane.b32.xlu0 %v739, 105
        %v757 = vpop.permute.xlu0 %756
        %vm758 = vcmask 859136
        %v759 = vsel %vm758, %v741, %v743
        %v760 = vsel %vm758, %v743, %v745
        %v761 = vsel %vm758, %v745, %v747
        %v762 = vsel %vm758, %v747, %v749
        %v763 = vsel %vm758, %v749, %v751
        %v764 = vsel %vm758, %v751, %v753
        %v765 = vsel %vm758, %v753, %v755
        %v766 = vsel %vm758, %v755, %v757
        %775 = vst [vmem:[#allocation3 + $0x100] sm:$0xf0] %v759
        %776 = vst [vmem:[#allocation3 + $0x108] sm:$0xf0] %v760
        %777 = vst [vmem:[#allocation3 + $0x110] sm:$0xf0] %v761
        %778 = vst [vmem:[#allocation3 + $0x118] sm:$0xf0] %v762
        %779 = vst [vmem:[#allocation3 + $0x120] sm:$0xf0] %v763
        %780 = vst [vmem:[#allocation3 + $0x128] sm:$0xf0] %v764
        %781 = vst [vmem:[#allocation3 + $0x130] sm:$0xf0] %v765
        %782 = vst [vmem:[#allocation3 + $0x138] sm:$0xf0] %v766
        %v783 = vld [vmem:[%s203] sm:$0xff]
        %v784 = vld [vmem:[%s203 + $0x8] sm:$0xff]
        %v785 = vld [vmem:[%s203 + $0x10] sm:$0xff]
        %v786 = vld [vmem:[%s203 + $0x18] sm:$0xff]
        %v787 = vld [vmem:[%s203 + $0x20] sm:$0xf]
        %v793 = vcombine.high %v783, %v783
        %v794 = vcombine.high %v784, %v784
        %v795 = vcombine.high %v785, %v785
        %v796 = vcombine.high %v786, %v786
        %797 = vrot.lane.b32.xlu0 %v783, 104
        %v798 = vpop.permute.xlu0 %797
        %799 = vrot.lane.b32.xlu0 %v793, 104
        %v800 = vpop.permute.xlu0 %799
        %801 = vrot.lane.b32.xlu0 %v784, 104
        %v802 = vpop.permute.xlu0 %801
        %803 = vrot.lane.b32.xlu0 %v794, 104
        %v804 = vpop.permute.xlu0 %803
        %805 = vrot.lane.b32.xlu0 %v785, 104
        %v806 = vpop.permute.xlu0 %805
        %807 = vrot.lane.b32.xlu0 %v795, 104
        %v808 = vpop.permute.xlu0 %807
        %809 = vrot.lane.b32.xlu0 %v786, 104
        %v810 = vpop.permute.xlu0 %809
        %811 = vrot.lane.b32.xlu0 %v796, 104
        %v812 = vpop.permute.xlu0 %811
        %813 = vrot.lane.b32.xlu0 %v787, 104
        %v814 = vpop.permute.xlu0 %813
        %vm815 = vcmask 850944
        %v816 = vsel %vm815, %v798, %v800
        %v817 = vsel %vm815, %v800, %v802
        %v818 = vsel %vm815, %v802, %v804
        %v819 = vsel %vm815, %v804, %v806
        %v820 = vsel %vm815, %v806, %v808
        %v821 = vsel %vm815, %v808, %v810
        %v822 = vsel %vm815, %v810, %v812
        %v823 = vsel %vm815, %v812, %v814
        %832 = vst [vmem:[#allocation3 + $0x140] sm:$0xf] %v816
        %833 = vst [vmem:[#allocation3 + $0x148] sm:$0xf] %v817
        %834 = vst [vmem:[#allocation3 + $0x150] sm:$0xf] %v818
        %835 = vst [vmem:[#allocation3 + $0x158] sm:$0xf] %v819
        %836 = vst [vmem:[#allocation3 + $0x160] sm:$0xf] %v820
        %837 = vst [vmem:[#allocation3 + $0x168] sm:$0xf] %v821
        %838 = vst [vmem:[#allocation3 + $0x170] sm:$0xf] %v822
        %839 = vst [vmem:[#allocation3 + $0x178] sm:$0xf] %v823
        %v840 = vld [vmem:[%s203] sm:$0xff]
        %v841 = vld [vmem:[%s203 + $0x8] sm:$0xff]
        %v842 = vld [vmem:[%s203 + $0x10] sm:$0xff]
        %v843 = vld [vmem:[%s203 + $0x18] sm:$0xff]
        %v844 = vld [vmem:[%s203 + $0x20] sm:$0xf]
        %v850 = vcombine.low %v840, %v840
        %v851 = vcombine.low %v841, %v841
        %v852 = vcombine.low %v842, %v842
        %v853 = vcombine.low %v843, %v843
        %v854 = vcombine.low %v844, %v844
        %855 = vrot.lane.b32.xlu0 %v850, 103
        %v856 = vpop.permute.xlu0 %855
        %857 = vrot.lane.b32.xlu0 %v840, 103
        %v858 = vpop.permute.xlu0 %857
        %859 = vrot.lane.b32.xlu0 %v851, 103
        %v860 = vpop.permute.xlu0 %859
        %861 = vrot.lane.b32.xlu0 %v841, 103
        %v862 = vpop.permute.xlu0 %861
        %863 = vrot.lane.b32.xlu0 %v852, 103
        %v864 = vpop.permute.xlu0 %863
        %865 = vrot.lane.b32.xlu0 %v842, 103
        %v866 = vpop.permute.xlu0 %865
        %867 = vrot.lane.b32.xlu0 %v853, 103
        %v868 = vpop.permute.xlu0 %867
        %869 = vrot.lane.b32.xlu0 %v843, 103
        %v870 = vpop.permute.xlu0 %869
        %871 = vrot.lane.b32.xlu0 %v854, 103
        %v872 = vpop.permute.xlu0 %871
        %vm873 = vcmask 842752
        %v874 = vsel %vm873, %v856, %v858
        %v875 = vsel %vm873, %v858, %v860
        %v876 = vsel %vm873, %v860, %v862
        %v877 = vsel %vm873, %v862, %v864
        %v878 = vsel %vm873, %v864, %v866
        %v879 = vsel %vm873, %v866, %v868
        %v880 = vsel %vm873, %v868, %v870
        %v881 = vsel %vm873, %v870, %v872
        %890 = vst [vmem:[#allocation3 + $0x140] sm:$0xf0] %v874
        %891 = vst [vmem:[#allocation3 + $0x148] sm:$0xf0] %v875
        %892 = vst [vmem:[#allocation3 + $0x150] sm:$0xf0] %v876
        %893 = vst [vmem:[#allocation3 + $0x158] sm:$0xf0] %v877
        %894 = vst [vmem:[#allocation3 + $0x160] sm:$0xf0] %v878
        %895 = vst [vmem:[#allocation3 + $0x168] sm:$0xf0] %v879
        %896 = vst [vmem:[#allocation3 + $0x170] sm:$0xf0] %v880
        %897 = vst [vmem:[#allocation3 + $0x178] sm:$0xf0] %v881
        %v898 = vld [vmem:[%s203] sm:$0xff]
        %v899 = vld [vmem:[%s203 + $0x8] sm:$0xff]
        %v900 = vld [vmem:[%s203 + $0x10] sm:$0xff]
        %v901 = vld [vmem:[%s203 + $0x18] sm:$0xff]
        %v902 = vld [vmem:[%s203 + $0x20] sm:$0xf]
        %v908 = vcombine.high %v898, %v898
        %v909 = vcombine.high %v899, %v899
        %v910 = vcombine.high %v900, %v900
        %v911 = vcombine.high %v901, %v901
        %912 = vrot.lane.b32.xlu0 %v898, 95
        %v913 = vpop.permute.xlu0 %912
        %914 = vrot.lane.b32.xlu0 %v908, 95
        %v915 = vpop.permute.xlu0 %914
        %916 = vrot.lane.b32.xlu0 %v899, 95
        %v917 = vpop.permute.xlu0 %916
        %918 = vrot.lane.b32.xlu0 %v909, 95
        %v919 = vpop.permute.xlu0 %918
        %920 = vrot.lane.b32.xlu0 %v900, 95
        %v921 = vpop.permute.xlu0 %920
        %922 = vrot.lane.b32.xlu0 %v910, 95
        %v923 = vpop.permute.xlu0 %922
        %924 = vrot.lane.b32.xlu0 %v901, 95
        %v925 = vpop.permute.xlu0 %924
        %926 = vrot.lane.b32.xlu0 %v911, 95
        %v927 = vpop.permute.xlu0 %926
        %928 = vrot.lane.b32.xlu0 %v902, 95
        %v929 = vpop.permute.xlu0 %928
        %vm930 = vcmask 777216
        %v931 = vsel %vm930, %v913, %v915
        %v932 = vsel %vm930, %v915, %v917
        %v933 = vsel %vm930, %v917, %v919
        %v934 = vsel %vm930, %v919, %v921
        %v935 = vsel %vm930, %v921, %v923
        %v936 = vsel %vm930, %v923, %v925
        %v937 = vsel %vm930, %v925, %v927
        %v938 = vsel %vm930, %v927, %v929
        %947 = vst [vmem:[#allocation3 + $0x180] sm:$0xf] %v931
        %948 = vst [vmem:[#allocation3 + $0x188] sm:$0xf] %v932
        %949 = vst [vmem:[#allocation3 + $0x190] sm:$0xf] %v933
        %950 = vst [vmem:[#allocation3 + $0x198] sm:$0xf] %v934
        %951 = vst [vmem:[#allocation3 + $0x1a0] sm:$0xf] %v935
        %952 = vst [vmem:[#allocation3 + $0x1a8] sm:$0xf] %v936
        %953 = vst [vmem:[#allocation3 + $0x1b0] sm:$0xf] %v937
        %954 = vst [vmem:[#allocation3 + $0x1b8] sm:$0xf] %v938
        %v955 = vld [vmem:[%s203] sm:$0xff]
        %v956 = vld [vmem:[%s203 + $0x8] sm:$0xff]
        %v957 = vld [vmem:[%s203 + $0x10] sm:$0xff]
        %v958 = vld [vmem:[%s203 + $0x18] sm:$0xff]
        %v959 = vld [vmem:[%s203 + $0x20] sm:$0xf]
        %v965 = vcombine.low %v955, %v955
        %v966 = vcombine.low %v956, %v956
        %v967 = vcombine.low %v957, %v957
        %v968 = vcombine.low %v958, %v958
        %v969 = vcombine.low %v959, %v959
        %970 = vrot.lane.b32.xlu0 %v965, 94
        %v971 = vpop.permute.xlu0 %970
        %972 = vrot.lane.b32.xlu0 %v955, 94
        %v973 = vpop.permute.xlu0 %972
        %974 = vrot.lane.b32.xlu0 %v966, 94
        %v975 = vpop.permute.xlu0 %974
        %976 = vrot.lane.b32.xlu0 %v956, 94
        %v977 = vpop.permute.xlu0 %976
        %978 = vrot.lane.b32.xlu0 %v967, 94
        %v979 = vpop.permute.xlu0 %978
        %980 = vrot.lane.b32.xlu0 %v957, 94
        %v981 = vpop.permute.xlu0 %980
        %982 = vrot.lane.b32.xlu0 %v968, 94
        %v983 = vpop.permute.xlu0 %982
        %984 = vrot.lane.b32.xlu0 %v958, 94
        %v985 = vpop.permute.xlu0 %984
        %986 = vrot.lane.b32.xlu0 %v969, 94
        %v987 = vpop.permute.xlu0 %986
        %vm988 = vcmask 769024
        %v989 = vsel %vm988, %v971, %v973
        %v990 = vsel %vm988, %v973, %v975
        %v991 = vsel %vm988, %v975, %v977
        %v992 = vsel %vm988, %v977, %v979
        %v993 = vsel %vm988, %v979, %v981
        %v994 = vsel %vm988, %v981, %v983
        %v995 = vsel %vm988, %v983, %v985
        %v996 = vsel %vm988, %v985, %v987
        %1005 = vst [vmem:[#allocation3 + $0x180] sm:$0xf0] %v989
        %1006 = vst [vmem:[#allocation3 + $0x188] sm:$0xf0] %v990
        %1007 = vst [vmem:[#allocation3 + $0x190] sm:$0xf0] %v991
        %1008 = vst [vmem:[#allocation3 + $0x198] sm:$0xf0] %v992
        %1009 = vst [vmem:[#allocation3 + $0x1a0] sm:$0xf0] %v993
        %1010 = vst [vmem:[#allocation3 + $0x1a8] sm:$0xf0] %v994
        %1011 = vst [vmem:[#allocation3 + $0x1b0] sm:$0xf0] %v995
        %1012 = vst [vmem:[#allocation3 + $0x1b8] sm:$0xf0] %v996
        %v1013 = vld [vmem:[%s203] sm:$0xff]
        %v1014 = vld [vmem:[%s203 + $0x8] sm:$0xff]
        %v1015 = vld [vmem:[%s203 + $0x10] sm:$0xff]
        %v1016 = vld [vmem:[%s203 + $0x18] sm:$0xff]
        %v1017 = vld [vmem:[%s203 + $0x20] sm:$0xf]
        %v1023 = vcombine.high %v1013, %v1013
        %v1024 = vcombine.high %v1014, %v1014
        %v1025 = vcombine.high %v1015, %v1015
        %v1026 = vcombine.high %v1016, %v1016
        %1027 = vrot.lane.b32.xlu0 %v1013, 93
        %v1028 = vpop.permute.xlu0 %1027
        %1029 = vrot.lane.b32.xlu0 %v1023, 93
        %v1030 = vpop.permute.xlu0 %1029
        %1031 = vrot.lane.b32.xlu0 %v1014, 93
        %v1032 = vpop.permute.xlu0 %1031
        %1033 = vrot.lane.b32.xlu0 %v1024, 93
        %v1034 = vpop.permute.xlu0 %1033
        %1035 = vrot.lane.b32.xlu0 %v1015, 93
        %v1036 = vpop.permute.xlu0 %1035
        %1037 = vrot.lane.b32.xlu0 %v1025, 93
        %v1038 = vpop.permute.xlu0 %1037
        %1039 = vrot.lane.b32.xlu0 %v1016, 93
        %v1040 = vpop.permute.xlu0 %1039
        %1041 = vrot.lane.b32.xlu0 %v1026, 93
        %v1042 = vpop.permute.xlu0 %1041
        %1043 = vrot.lane.b32.xlu0 %v1017, 93
        %v1044 = vpop.permute.xlu0 %1043
        %vm1045 = vcmask 760832
        %v1046 = vsel %vm1045, %v1028, %v1030
        %v1047 = vsel %vm1045, %v1030, %v1032
        %v1048 = vsel %vm1045, %v1032, %v1034
        %v1049 = vsel %vm1045, %v1034, %v1036
        %v1050 = vsel %vm1045, %v1036, %v1038
        %v1051 = vsel %vm1045, %v1038, %v1040
        %v1052 = vsel %vm1045, %v1040, %v1042
        %v1053 = vsel %vm1045, %v1042, %v1044
        %1062 = vst [vmem:[#allocation3 + $0x1c0] sm:$0xf] %v1046
        %1063 = vst [vmem:[#allocation3 + $0x1c8] sm:$0xf] %v1047
        %1064 = vst [vmem:[#allocation3 + $0x1d0] sm:$0xf] %v1048
        %1065 = vst [vmem:[#allocation3 + $0x1d8] sm:$0xf] %v1049
        %1066 = vst [vmem:[#allocation3 + $0x1e0] sm:$0xf] %v1050
        %1067 = vst [vmem:[#allocation3 + $0x1e8] sm:$0xf] %v1051
        %1068 = vst [vmem:[#allocation3 + $0x1f0] sm:$0xf] %v1052
        %1069 = vst [vmem:[#allocation3 + $0x1f8] sm:$0xf] %v1053
        %v1070 = vld [vmem:[%s203] sm:$0xff]
        %v1071 = vld [vmem:[%s203 + $0x8] sm:$0xff]
        %v1072 = vld [vmem:[%s203 + $0x10] sm:$0xff]
        %v1073 = vld [vmem:[%s203 + $0x18] sm:$0xff]
        %v1074 = vld [vmem:[%s203 + $0x20] sm:$0xf]
        %v1080 = vcombine.low %v1070, %v1070
        %v1081 = vcombine.low %v1071, %v1071
        %v1082 = vcombine.low %v1072, %v1072
        %v1083 = vcombine.low %v1073, %v1073
        %v1084 = vcombine.low %v1074, %v1074
        %1085 = vrot.lane.b32.xlu0 %v1080, 92
        %v1086 = vpop.permute.xlu0 %1085
        %1087 = vrot.lane.b32.xlu0 %v1070, 92
        %v1088 = vpop.permute.xlu0 %1087
        %1089 = vrot.lane.b32.xlu0 %v1081, 92
        %v1090 = vpop.permute.xlu0 %1089
        %1091 = vrot.lane.b32.xlu0 %v1071, 92
        %v1092 = vpop.permute.xlu0 %1091
        %1093 = vrot.lane.b32.xlu0 %v1082, 92
        %v1094 = vpop.permute.xlu0 %1093
        %1095 = vrot.lane.b32.xlu0 %v1072, 92
        %v1096 = vpop.permute.xlu0 %1095
        %1097 = vrot.lane.b32.xlu0 %v1083, 92
        %v1098 = vpop.permute.xlu0 %1097
        %1099 = vrot.lane.b32.xlu0 %v1073, 92
        %v1100 = vpop.permute.xlu0 %1099
        %1101 = vrot.lane.b32.xlu0 %v1084, 92
        %v1102 = vpop.permute.xlu0 %1101
        %vm1103 = vcmask 752640
        %v1104 = vsel %vm1103, %v1086, %v1088
        %v1105 = vsel %vm1103, %v1088, %v1090
        %v1106 = vsel %vm1103, %v1090, %v1092
        %v1107 = vsel %vm1103, %v1092, %v1094
        %v1108 = vsel %vm1103, %v1094, %v1096
        %v1109 = vsel %vm1103, %v1096, %v1098
        %v1110 = vsel %vm1103, %v1098, %v1100
        %v1111 = vsel %vm1103, %v1100, %v1102
        %1120 = vst [vmem:[#allocation3 + $0x1c0] sm:$0xf0] %v1104
        %1121 = vst [vmem:[#allocation3 + $0x1c8] sm:$0xf0] %v1105
        %1122 = vst [vmem:[#allocation3 + $0x1d0] sm:$0xf0] %v1106
        %1123 = vst [vmem:[#allocation3 + $0x1d8] sm:$0xf0] %v1107
        %1124 = vst [vmem:[#allocation3 + $0x1e0] sm:$0xf0] %v1108
        %1125 = vst [vmem:[#allocation3 + $0x1e8] sm:$0xf0] %v1109
        %1126 = vst [vmem:[#allocation3 + $0x1f0] sm:$0xf0] %v1110
        %1127 = vst [vmem:[#allocation3 + $0x1f8] sm:$0xf0] %v1111
        %v1128 = vld [vmem:[%s203] sm:$0xff]
        %v1129 = vld [vmem:[%s203 + $0x8] sm:$0xff]
        %v1130 = vld [vmem:[%s203 + $0x10] sm:$0xff]
        %v1131 = vld [vmem:[%s203 + $0x18] sm:$0xff]
        %v1132 = vld [vmem:[%s203 + $0x20] sm:$0xf]
        %v1138 = vcombine.high %v1128, %v1128
        %v1139 = vcombine.high %v1129, %v1129
        %v1140 = vcombine.high %v1130, %v1130
        %v1141 = vcombine.high %v1131, %v1131
        %1142 = vrot.lane.b32.xlu0 %v1128, 7
        %v1143 = vpop.permute.xlu0 %1142
        %1144 = vrot.lane.b32.xlu0 %v1138, 7
        %v1145 = vpop.permute.xlu0 %1144
        %1146 = vrot.lane.b32.xlu0 %v1129, 7
        %v1147 = vpop.permute.xlu0 %1146
        %1148 = vrot.lane.b32.xlu0 %v1139, 7
        %v1149 = vpop.permute.xlu0 %1148
        %1150 = vrot.lane.b32.xlu0 %v1130, 7
        %v1151 = vpop.permute.xlu0 %1150
        %1152 = vrot.lane.b32.xlu0 %v1140, 7
        %v1153 = vpop.permute.xlu0 %1152
        %1154 = vrot.lane.b32.xlu0 %v1131, 7
        %v1155 = vpop.permute.xlu0 %1154
        %1156 = vrot.lane.b32.xlu0 %v1141, 7
        %v1157 = vpop.permute.xlu0 %1156
        %1158 = vrot.lane.b32.xlu0 %v1132, 7
        %v1159 = vpop.permute.xlu0 %1158
        %vm1160 = vcmask 56320
        %v1161 = vsel %vm1160, %v1143, %v1145
        %v1162 = vsel %vm1160, %v1145, %v1147
        %v1163 = vsel %vm1160, %v1147, %v1149
        %v1164 = vsel %vm1160, %v1149, %v1151
        %v1165 = vsel %vm1160, %v1151, %v1153
        %v1166 = vsel %vm1160, %v1153, %v1155
        %v1167 = vsel %vm1160, %v1155, %v1157
        %v1168 = vsel %vm1160, %v1157, %v1159
        %1177 = vst [vmem:[#allocation3 + $0x200] sm:$0xf] %v1161
        %1178 = vst [vmem:[#allocation3 + $0x208] sm:$0xf] %v1162
        %1179 = vst [vmem:[#allocation3 + $0x210] sm:$0xf] %v1163
        %1180 = vst [vmem:[#allocation3 + $0x218] sm:$0xf] %v1164
        %1181 = vst [vmem:[#allocation3 + $0x220] sm:$0xf] %v1165
        %1182 = vst [vmem:[#allocation3 + $0x228] sm:$0xf] %v1166
        %1183 = vst [vmem:[#allocation3 + $0x230] sm:$0xf] %v1167
        %1184 = vst [vmem:[#allocation3 + $0x238] sm:$0xf] %v1168
        %v1185 = vld [vmem:[%s203] sm:$0xff]
        %v1186 = vld [vmem:[%s203 + $0x8] sm:$0xff]
        %v1187 = vld [vmem:[%s203 + $0x10] sm:$0xff]
        %v1188 = vld [vmem:[%s203 + $0x18] sm:$0xff]
        %v1189 = vld [vmem:[%s203 + $0x20] sm:$0xf]
        %v1195 = vcombine.low %v1185, %v1185
        %v1196 = vcombine.low %v1186, %v1186
        %v1197 = vcombine.low %v1187, %v1187
        %v1198 = vcombine.low %v1188, %v1188
        %v1199 = vcombine.low %v1189, %v1189
        %1200 = vrot.lane.b32.xlu0 %v1195, 6
        %v1201 = vpop.permute.xlu0 %1200
        %1202 = vrot.lane.b32.xlu0 %v1185, 6
        %v1203 = vpop.permute.xlu0 %1202
        %1204 = vrot.lane.b32.xlu0 %v1196, 6
        %v1205 = vpop.permute.xlu0 %1204
        %1206 = vrot.lane.b32.xlu0 %v1186, 6
        %v1207 = vpop.permute.xlu0 %1206
        %1208 = vrot.lane.b32.xlu0 %v1197, 6
        %v1209 = vpop.permute.xlu0 %1208
        %1210 = vrot.lane.b32.xlu0 %v1187, 6
        %v1211 = vpop.permute.xlu0 %1210
        %1212 = vrot.lane.b32.xlu0 %v1198, 6
        %v1213 = vpop.permute.xlu0 %1212
        %1214 = vrot.lane.b32.xlu0 %v1188, 6
        %v1215 = vpop.permute.xlu0 %1214
        %1216 = vrot.lane.b32.xlu0 %v1199, 6
        %v1217 = vpop.permute.xlu0 %1216
        %vm1218 = vcmask 48128
        %v1219 = vsel %vm1218, %v1201, %v1203
        %v1220 = vsel %vm1218, %v1203, %v1205
        %v1221 = vsel %vm1218, %v1205, %v1207
        %v1222 = vsel %vm1218, %v1207, %v1209
        %v1223 = vsel %vm1218, %v1209, %v1211
        %v1224 = vsel %vm1218, %v1211, %v1213
        %v1225 = vsel %vm1218, %v1213, %v1215
        %v1226 = vsel %vm1218, %v1215, %v1217
        %1235 = vst [vmem:[#allocation3 + $0x200] sm:$0xf0] %v1219
        %1236 = vst [vmem:[#allocation3 + $0x208] sm:$0xf0] %v1220
        %1237 = vst [vmem:[#allocation3 + $0x210] sm:$0xf0] %v1221
        %1238 = vst [vmem:[#allocation3 + $0x218] sm:$0xf0] %v1222
        %1239 = vst [vmem:[#allocation3 + $0x220] sm:$0xf0] %v1223
        %1240 = vst [vmem:[#allocation3 + $0x228] sm:$0xf0] %v1224
        %1241 = vst [vmem:[#allocation3 + $0x230] sm:$0xf0] %v1225
        %1242 = vst [vmem:[#allocation3 + $0x238] sm:$0xf0] %v1226
        %v1243 = vld [vmem:[%s203] sm:$0xff]
        %v1244 = vld [vmem:[%s203 + $0x8] sm:$0xff]
        %v1245 = vld [vmem:[%s203 + $0x10] sm:$0xff]
        %v1246 = vld [vmem:[%s203 + $0x18] sm:$0xff]
        %v1247 = vld [vmem:[%s203 + $0x20] sm:$0xf]
        %v1253 = vcombine.high %v1243, %v1243
        %v1254 = vcombine.high %v1244, %v1244
        %v1255 = vcombine.high %v1245, %v1245
        %v1256 = vcombine.high %v1246, %v1246
        %1257 = vrot.lane.b32.xlu0 %v1243, 5
        %v1258 = vpop.permute.xlu0 %1257
        %1259 = vrot.lane.b32.xlu0 %v1253, 5
        %v1260 = vpop.permute.xlu0 %1259
        %1261 = vrot.lane.b32.xlu0 %v1244, 5
        %v1262 = vpop.permute.xlu0 %1261
        %1263 = vrot.lane.b32.xlu0 %v1254, 5
        %v1264 = vpop.permute.xlu0 %1263
        %1265 = vrot.lane.b32.xlu0 %v1245, 5
        %v1266 = vpop.permute.xlu0 %1265
        %1267 = vrot.lane.b32.xlu0 %v1255, 5
        %v1268 = vpop.permute.xlu0 %1267
        %1269 = vrot.lane.b32.xlu0 %v1246, 5
        %v1270 = vpop.permute.xlu0 %1269
        %1271 = vrot.lane.b32.xlu0 %v1256, 5
        %v1272 = vpop.permute.xlu0 %1271
        %1273 = vrot.lane.b32.xlu0 %v1247, 5
        %v1274 = vpop.permute.xlu0 %1273
        %vm1275 = vcmask 39936
        %v1276 = vsel %vm1275, %v1258, %v1260
        %v1277 = vsel %vm1275, %v1260, %v1262
        %v1278 = vsel %vm1275, %v1262, %v1264
        %v1279 = vsel %vm1275, %v1264, %v1266
        %v1280 = vsel %vm1275, %v1266, %v1268
        %v1281 = vsel %vm1275, %v1268, %v1270
        %v1282 = vsel %vm1275, %v1270, %v1272
        %v1283 = vsel %vm1275, %v1272, %v1274
        %1292 = vst [vmem:[#allocation3 + $0x240] sm:$0xf] %v1276
        %1293 = vst [vmem:[#allocation3 + $0x248] sm:$0xf] %v1277
        %1294 = vst [vmem:[#allocation3 + $0x250] sm:$0xf] %v1278
        %1295 = vst [vmem:[#allocation3 + $0x258] sm:$0xf] %v1279
        %1296 = vst [vmem:[#allocation3 + $0x260] sm:$0xf] %v1280
        %1297 = vst [vmem:[#allocation3 + $0x268] sm:$0xf] %v1281
        %1298 = vst [vmem:[#allocation3 + $0x270] sm:$0xf] %v1282
        %1299 = vst [vmem:[#allocation3 + $0x278] sm:$0xf] %v1283
        %v1300 = vld [vmem:[%s203] sm:$0xff]
        %v1301 = vld [vmem:[%s203 + $0x8] sm:$0xff]
        %v1302 = vld [vmem:[%s203 + $0x10] sm:$0xff]
        %v1303 = vld [vmem:[%s203 + $0x18] sm:$0xff]
        %v1304 = vld [vmem:[%s203 + $0x20] sm:$0xf]
        %v1310 = vcombine.low %v1300, %v1300
        %v1311 = vcombine.low %v1301, %v1301
        %v1312 = vcombine.low %v1302, %v1302
        %v1313 = vcombine.low %v1303, %v1303
        %v1314 = vcombine.low %v1304, %v1304
        %1315 = vrot.lane.b32.xlu0 %v1310, 4
        %v1316 = vpop.permute.xlu0 %1315
        %1317 = vrot.lane.b32.xlu0 %v1300, 4
        %v1318 = vpop.permute.xlu0 %1317
        %1319 = vrot.lane.b32.xlu0 %v1311, 4
        %v1320 = vpop.permute.xlu0 %1319
        %1321 = vrot.lane.b32.xlu0 %v1301, 4
        %v1322 = vpop.permute.xlu0 %1321
        %1323 = vrot.lane.b32.xlu0 %v1312, 4
        %v1324 = vpop.permute.xlu0 %1323
        %1325 = vrot.lane.b32.xlu0 %v1302, 4
        %v1326 = vpop.permute.xlu0 %1325
        %1327 = vrot.lane.b32.xlu0 %v1313, 4
        %v1328 = vpop.permute.xlu0 %1327
        %1329 = vrot.lane.b32.xlu0 %v1303, 4
        %v1330 = vpop.permute.xlu0 %1329
        %1331 = vrot.lane.b32.xlu0 %v1314, 4
        %v1332 = vpop.permute.xlu0 %1331
        %vm1333 = vcmask 31744
        %v1334 = vsel %vm1333, %v1316, %v1318
        %v1335 = vsel %vm1333, %v1318, %v1320
        %v1336 = vsel %vm1333, %v1320, %v1322
        %v1337 = vsel %vm1333, %v1322, %v1324
        %v1338 = vsel %vm1333, %v1324, %v1326
        %v1339 = vsel %vm1333, %v1326, %v1328
        %v1340 = vsel %vm1333, %v1328, %v1330
        %v1341 = vsel %vm1333, %v1330, %v1332
        %1350 = vst [vmem:[#allocation3 + $0x240] sm:$0xf0] %v1334
        %1351 = vst [vmem:[#allocation3 + $0x248] sm:$0xf0] %v1335
        %1352 = vst [vmem:[#allocation3 + $0x250] sm:$0xf0] %v1336
        %1353 = vst [vmem:[#allocation3 + $0x258] sm:$0xf0] %v1337
        %1354 = vst [vmem:[#allocation3 + $0x260] sm:$0xf0] %v1338
        %1355 = vst [vmem:[#allocation3 + $0x268] sm:$0xf0] %v1339
        %1356 = vst [vmem:[#allocation3 + $0x270] sm:$0xf0] %v1340
        %1357 = vst [vmem:[#allocation3 + $0x278] sm:$0xf0] %v1341
        %v1358 = vld [vmem:[%s203 + $0x4] sm:$0xff]
        %v1359 = vld [vmem:[%s203 + $0xc] sm:$0xff]
        %v1360 = vld [vmem:[%s203 + $0x14] sm:$0xff]
        %v1361 = vld [vmem:[%s203 + $0x1c] sm:$0xff]
        %v1362 = vld [vmem:[%s203 + $0x24] sm:$0xf]
        %v1368 = vcombine.high %v1358, %v1358
        %v1369 = vcombine.high %v1359, %v1359
        %v1370 = vcombine.high %v1360, %v1360
        %v1371 = vcombine.high %v1361, %v1361
        %1372 = vrot.lane.b32.xlu0 %v1358, 124
        %v1373 = vpop.permute.xlu0 %1372
        %1374 = vrot.lane.b32.xlu0 %v1368, 124
        %v1375 = vpop.permute.xlu0 %1374
        %1376 = vrot.lane.b32.xlu0 %v1359, 124
        %v1377 = vpop.permute.xlu0 %1376
        %1378 = vrot.lane.b32.xlu0 %v1369, 124
        %v1379 = vpop.permute.xlu0 %1378
        %1380 = vrot.lane.b32.xlu0 %v1360, 124
        %v1381 = vpop.permute.xlu0 %1380
        %1382 = vrot.lane.b32.xlu0 %v1370, 124
        %v1383 = vpop.permute.xlu0 %1382
        %1384 = vrot.lane.b32.xlu0 %v1361, 124
        %v1385 = vpop.permute.xlu0 %1384
        %1386 = vrot.lane.b32.xlu0 %v1371, 124
        %v1387 = vpop.permute.xlu0 %1386
        %1388 = vrot.lane.b32.xlu0 %v1362, 124
        %v1389 = vpop.permute.xlu0 %1388
        %vm1390 = vcmask 1014784
        %v1391 = vsel %vm1390, %v1373, %v1375
        %v1392 = vsel %vm1390, %v1375, %v1377
        %v1393 = vsel %vm1390, %v1377, %v1379
        %v1394 = vsel %vm1390, %v1379, %v1381
        %v1395 = vsel %vm1390, %v1381, %v1383
        %v1396 = vsel %vm1390, %v1383, %v1385
        %v1397 = vsel %vm1390, %v1385, %v1387
        %v1398 = vsel %vm1390, %v1387, %v1389
        %1407 = vst [vmem:[#allocation3 + $0x280] sm:$0xf] %v1391
        %1408 = vst [vmem:[#allocation3 + $0x288] sm:$0xf] %v1392
        %1409 = vst [vmem:[#allocation3 + $0x290] sm:$0xf] %v1393
        %1410 = vst [vmem:[#allocation3 + $0x298] sm:$0xf] %v1394
        %1411 = vst [vmem:[#allocation3 + $0x2a0] sm:$0xf] %v1395
        %1412 = vst [vmem:[#allocation3 + $0x2a8] sm:$0xf] %v1396
        %1413 = vst [vmem:[#allocation3 + $0x2b0] sm:$0xf] %v1397
        %1414 = vst [vmem:[#allocation3 + $0x2b8] sm:$0xf] %v1398
        %v1415 = vld [vmem:[%s203 + $0x4] sm:$0xff]
        %v1416 = vld [vmem:[%s203 + $0xc] sm:$0xff]
        %v1417 = vld [vmem:[%s203 + $0x14] sm:$0xff]
        %v1418 = vld [vmem:[%s203 + $0x1c] sm:$0xff]
        %v1419 = vld [vmem:[%s203 + $0x24] sm:$0xf]
        %v1425 = vcombine.low %v1415, %v1415
        %v1426 = vcombine.low %v1416, %v1416
        %v1427 = vcombine.low %v1417, %v1417
        %v1428 = vcombine.low %v1418, %v1418
        %v1429 = vcombine.low %v1419, %v1419
        %1430 = vrot.lane.b32.xlu0 %v1425, 123
        %v1431 = vpop.permute.xlu0 %1430
        %1432 = vrot.lane.b32.xlu0 %v1415, 123
        %v1433 = vpop.permute.xlu0 %1432
        %1434 = vrot.lane.b32.xlu0 %v1426, 123
        %v1435 = vpop.permute.xlu0 %1434
        %1436 = vrot.lane.b32.xlu0 %v1416, 123
        %v1437 = vpop.permute.xlu0 %1436
        %1438 = vrot.lane.b32.xlu0 %v1427, 123
        %v1439 = vpop.permute.xlu0 %1438
        %1440 = vrot.lane.b32.xlu0 %v1417, 123
        %v1441 = vpop.permute.xlu0 %1440
        %1442 = vrot.lane.b32.xlu0 %v1428, 123
        %v1443 = vpop.permute.xlu0 %1442
        %1444 = vrot.lane.b32.xlu0 %v1418, 123
        %v1445 = vpop.permute.xlu0 %1444
        %1446 = vrot.lane.b32.xlu0 %v1429, 123
        %v1447 = vpop.permute.xlu0 %1446
        %vm1448 = vcmask 1006592
        %v1449 = vsel %vm1448, %v1431, %v1433
        %v1450 = vsel %vm1448, %v1433, %v1435
        %v1451 = vsel %vm1448, %v1435, %v1437
        %v1452 = vsel %vm1448, %v1437, %v1439
        %v1453 = vsel %vm1448, %v1439, %v1441
        %v1454 = vsel %vm1448, %v1441, %v1443
        %v1455 = vsel %vm1448, %v1443, %v1445
        %v1456 = vsel %vm1448, %v1445, %v1447
        %1465 = vst [vmem:[#allocation3 + $0x280] sm:$0xf0] %v1449
        %1466 = vst [vmem:[#allocation3 + $0x288] sm:$0xf0] %v1450
        %1467 = vst [vmem:[#allocation3 + $0x290] sm:$0xf0] %v1451
        %1468 = vst [vmem:[#allocation3 + $0x298] sm:$0xf0] %v1452
        %1469 = vst [vmem:[#allocation3 + $0x2a0] sm:$0xf0] %v1453
        %1470 = vst [vmem:[#allocation3 + $0x2a8] sm:$0xf0] %v1454
        %1471 = vst [vmem:[#allocation3 + $0x2b0] sm:$0xf0] %v1455
        %1472 = vst [vmem:[#allocation3 + $0x2b8] sm:$0xf0] %v1456
        %v1473 = vld [vmem:[%s203 + $0x4] sm:$0xff]
        %v1474 = vld [vmem:[%s203 + $0xc] sm:$0xff]
        %v1475 = vld [vmem:[%s203 + $0x14] sm:$0xff]
        %v1476 = vld [vmem:[%s203 + $0x1c] sm:$0xff]
        %v1477 = vld [vmem:[%s203 + $0x24] sm:$0xf]
        %v1483 = vcombine.high %v1473, %v1473
        %v1484 = vcombine.high %v1474, %v1474
        %v1485 = vcombine.high %v1475, %v1475
        %v1486 = vcombine.high %v1476, %v1476
        %1487 = vrot.lane.b32.xlu0 %v1473, 122
        %v1488 = vpop.permute.xlu0 %1487
        %1489 = vrot.lane.b32.xlu0 %v1483, 122
        %v1490 = vpop.permute.xlu0 %1489
        %1491 = vrot.lane.b32.xlu0 %v1474, 122
        %v1492 = vpop.permute.xlu0 %1491
        %1493 = vrot.lane.b32.xlu0 %v1484, 122
        %v1494 = vpop.permute.xlu0 %1493
        %1495 = vrot.lane.b32.xlu0 %v1475, 122
        %v1496 = vpop.permute.xlu0 %1495
        %1497 = vrot.lane.b32.xlu0 %v1485, 122
        %v1498 = vpop.permute.xlu0 %1497
        %1499 = vrot.lane.b32.xlu0 %v1476, 122
        %v1500 = vpop.permute.xlu0 %1499
        %1501 = vrot.lane.b32.xlu0 %v1486, 122
        %v1502 = vpop.permute.xlu0 %1501
        %1503 = vrot.lane.b32.xlu0 %v1477, 122
        %v1504 = vpop.permute.xlu0 %1503
        %vm1505 = vcmask 998400
        %v1506 = vsel %vm1505, %v1488, %v1490
        %v1507 = vsel %vm1505, %v1490, %v1492
        %v1508 = vsel %vm1505, %v1492, %v1494
        %v1509 = vsel %vm1505, %v1494, %v1496
        %v1510 = vsel %vm1505, %v1496, %v1498
        %v1511 = vsel %vm1505, %v1498, %v1500
        %v1512 = vsel %vm1505, %v1500, %v1502
        %v1513 = vsel %vm1505, %v1502, %v1504
        %1522 = vst [vmem:[#allocation3 + $0x2c0] sm:$0xf] %v1506
        %1523 = vst [vmem:[#allocation3 + $0x2c8] sm:$0xf] %v1507
        %1524 = vst [vmem:[#allocation3 + $0x2d0] sm:$0xf] %v1508
        %1525 = vst [vmem:[#allocation3 + $0x2d8] sm:$0xf] %v1509
        %1526 = vst [vmem:[#allocation3 + $0x2e0] sm:$0xf] %v1510
        %1527 = vst [vmem:[#allocation3 + $0x2e8] sm:$0xf] %v1511
        %1528 = vst [vmem:[#allocation3 + $0x2f0] sm:$0xf] %v1512
        %1529 = vst [vmem:[#allocation3 + $0x2f8] sm:$0xf] %v1513
        %v1530 = vld [vmem:[%s203 + $0x4] sm:$0xff]
        %v1531 = vld [vmem:[%s203 + $0xc] sm:$0xff]
        %v1532 = vld [vmem:[%s203 + $0x14] sm:$0xff]
        %v1533 = vld [vmem:[%s203 + $0x1c] sm:$0xff]
        %v1534 = vld [vmem:[%s203 + $0x24] sm:$0xf]
        %v1540 = vcombine.low %v1530, %v1530
        %v1541 = vcombine.low %v1531, %v1531
        %v1542 = vcombine.low %v1532, %v1532
        %v1543 = vcombine.low %v1533, %v1533
        %v1544 = vcombine.low %v1534, %v1534
        %1545 = vrot.lane.b32.xlu0 %v1540, 121
        %v1546 = vpop.permute.xlu0 %1545
        %1547 = vrot.lane.b32.xlu0 %v1530, 121
        %v1548 = vpop.permute.xlu0 %1547
        %1549 = vrot.lane.b32.xlu0 %v1541, 121
        %v1550 = vpop.permute.xlu0 %1549
        %1551 = vrot.lane.b32.xlu0 %v1531, 121
        %v1552 = vpop.permute.xlu0 %1551
        %1553 = vrot.lane.b32.xlu0 %v1542, 121
        %v1554 = vpop.permute.xlu0 %1553
        %1555 = vrot.lane.b32.xlu0 %v1532, 121
        %v1556 = vpop.permute.xlu0 %1555
        %1557 = vrot.lane.b32.xlu0 %v1543, 121
        %v1558 = vpop.permute.xlu0 %1557
        %1559 = vrot.lane.b32.xlu0 %v1533, 121
        %v1560 = vpop.permute.xlu0 %1559
        %1561 = vrot.lane.b32.xlu0 %v1544, 121
        %v1562 = vpop.permute.xlu0 %1561
        %vm1563 = vcmask 990208
        %v1564 = vsel %vm1563, %v1546, %v1548
        %v1565 = vsel %vm1563, %v1548, %v1550
        %v1566 = vsel %vm1563, %v1550, %v1552
        %v1567 = vsel %vm1563, %v1552, %v1554
        %v1568 = vsel %vm1563, %v1554, %v1556
        %v1569 = vsel %vm1563, %v1556, %v1558
        %v1570 = vsel %vm1563, %v1558, %v1560
        %v1571 = vsel %vm1563, %v1560, %v1562
        %1580 = vst [vmem:[#allocation3 + $0x2c0] sm:$0xf0] %v1564
        %1581 = vst [vmem:[#allocation3 + $0x2c8] sm:$0xf0] %v1565
        %1582 = vst [vmem:[#allocation3 + $0x2d0] sm:$0xf0] %v1566
        %1583 = vst [vmem:[#allocation3 + $0x2d8] sm:$0xf0] %v1567
        %1584 = vst [vmem:[#allocation3 + $0x2e0] sm:$0xf0] %v1568
        %1585 = vst [vmem:[#allocation3 + $0x2e8] sm:$0xf0] %v1569
        %1586 = vst [vmem:[#allocation3 + $0x2f0] sm:$0xf0] %v1570
        %1587 = vst [vmem:[#allocation3 + $0x2f8] sm:$0xf0] %v1571
        %v1588 = vld [vmem:[%s203 + $0x4] sm:$0xff]
        %v1589 = vld [vmem:[%s203 + $0xc] sm:$0xff]
        %v1590 = vld [vmem:[%s203 + $0x14] sm:$0xff]
        %v1591 = vld [vmem:[%s203 + $0x1c] sm:$0xff]
        %v1592 = vld [vmem:[%s203 + $0x24] sm:$0xf]
        %v1598 = vcombine.high %v1588, %v1588
        %v1599 = vcombine.high %v1589, %v1589
        %v1600 = vcombine.high %v1590, %v1590
        %v1601 = vcombine.high %v1591, %v1591
        %1602 = vrot.lane.b32.xlu0 %v1588, 113
        %v1603 = vpop.permute.xlu0 %1602
        %1604 = vrot.lane.b32.xlu0 %v1598, 113
        %v1605 = vpop.permute.xlu0 %1604
        %1606 = vrot.lane.b32.xlu0 %v1589, 113
        %v1607 = vpop.permute.xlu0 %1606
        %1608 = vrot.lane.b32.xlu0 %v1599, 113
        %v1609 = vpop.permute.xlu0 %1608
        %1610 = vrot.lane.b32.xlu0 %v1590, 113
        %v1611 = vpop.permute.xlu0 %1610
        %1612 = vrot.lane.b32.xlu0 %v1600, 113
        %v1613 = vpop.permute.xlu0 %1612
        %1614 = vrot.lane.b32.xlu0 %v1591, 113
        %v1615 = vpop.permute.xlu0 %1614
        %1616 = vrot.lane.b32.xlu0 %v1601, 113
        %v1617 = vpop.permute.xlu0 %1616
        %1618 = vrot.lane.b32.xlu0 %v1592, 113
        %v1619 = vpop.permute.xlu0 %1618
        %vm1620 = vcmask 924672
        %v1621 = vsel %vm1620, %v1603, %v1605
        %v1622 = vsel %vm1620, %v1605, %v1607
        %v1623 = vsel %vm1620, %v1607, %v1609
        %v1624 = vsel %vm1620, %v1609, %v1611
        %v1625 = vsel %vm1620, %v1611, %v1613
        %v1626 = vsel %vm1620, %v1613, %v1615
        %v1627 = vsel %vm1620, %v1615, %v1617
        %v1628 = vsel %vm1620, %v1617, %v1619
        %1637 = vst [vmem:[#allocation3 + $0x300] sm:$0xf] %v1621
        %1638 = vst [vmem:[#allocation3 + $0x308] sm:$0xf] %v1622
        %1639 = vst [vmem:[#allocation3 + $0x310] sm:$0xf] %v1623
        %1640 = vst [vmem:[#allocation3 + $0x318] sm:$0xf] %v1624
        %1641 = vst [vmem:[#allocation3 + $0x320] sm:$0xf] %v1625
        %1642 = vst [vmem:[#allocation3 + $0x328] sm:$0xf] %v1626
        %1643 = vst [vmem:[#allocation3 + $0x330] sm:$0xf] %v1627
        %1644 = vst [vmem:[#allocation3 + $0x338] sm:$0xf] %v1628
        %v1645 = vld [vmem:[%s203 + $0x4] sm:$0xff]
        %v1646 = vld [vmem:[%s203 + $0xc] sm:$0xff]
        %v1647 = vld [vmem:[%s203 + $0x14] sm:$0xff]
        %v1648 = vld [vmem:[%s203 + $0x1c] sm:$0xff]
        %v1649 = vld [vmem:[%s203 + $0x24] sm:$0xf]
        %v1655 = vcombine.low %v1645, %v1645
        %v1656 = vcombine.low %v1646, %v1646
        %v1657 = vcombine.low %v1647, %v1647
        %v1658 = vcombine.low %v1648, %v1648
        %v1659 = vcombine.low %v1649, %v1649
        %1660 = vrot.lane.b32.xlu0 %v1655, 112
        %v1661 = vpop.permute.xlu0 %1660
        %1662 = vrot.lane.b32.xlu0 %v1645, 112
        %v1663 = vpop.permute.xlu0 %1662
        %1664 = vrot.lane.b32.xlu0 %v1656, 112
        %v1665 = vpop.permute.xlu0 %1664
        %1666 = vrot.lane.b32.xlu0 %v1646, 112
        %v1667 = vpop.permute.xlu0 %1666
        %1668 = vrot.lane.b32.xlu0 %v1657, 112
        %v1669 = vpop.permute.xlu0 %1668
        %1670 = vrot.lane.b32.xlu0 %v1647, 112
        %v1671 = vpop.permute.xlu0 %1670
        %1672 = vrot.lane.b32.xlu0 %v1658, 112
        %v1673 = vpop.permute.xlu0 %1672
        %1674 = vrot.lane.b32.xlu0 %v1648, 112
        %v1675 = vpop.permute.xlu0 %1674
        %1676 = vrot.lane.b32.xlu0 %v1659, 112
        %v1677 = vpop.permute.xlu0 %1676
        %vm1678 = vcmask 916480
        %v1679 = vsel %vm1678, %v1661, %v1663
        %v1680 = vsel %vm1678, %v1663, %v1665
        %v1681 = vsel %vm1678, %v1665, %v1667
        %v1682 = vsel %vm1678, %v1667, %v1669
        %v1683 = vsel %vm1678, %v1669, %v1671
        %v1684 = vsel %vm1678, %v1671, %v1673
        %v1685 = vsel %vm1678, %v1673, %v1675
        %v1686 = vsel %vm1678, %v1675, %v1677
        %1695 = vst [vmem:[#allocation3 + $0x300] sm:$0xf0] %v1679
        %1696 = vst [vmem:[#allocation3 + $0x308] sm:$0xf0] %v1680
        %1697 = vst [vmem:[#allocation3 + $0x310] sm:$0xf0] %v1681
        %1698 = vst [vmem:[#allocation3 + $0x318] sm:$0xf0] %v1682
        %1699 = vst [vmem:[#allocation3 + $0x320] sm:$0xf0] %v1683
        %1700 = vst [vmem:[#allocation3 + $0x328] sm:$0xf0] %v1684
        %1701 = vst [vmem:[#allocation3 + $0x330] sm:$0xf0] %v1685
        %1702 = vst [vmem:[#allocation3 + $0x338] sm:$0xf0] %v1686
        %v1703 = vld [vmem:[%s203 + $0x4] sm:$0xff]
        %v1704 = vld [vmem:[%s203 + $0xc] sm:$0xff]
        %v1705 = vld [vmem:[%s203 + $0x14] sm:$0xff]
        %v1706 = vld [vmem:[%s203 + $0x1c] sm:$0xff]
        %v1707 = vld [vmem:[%s203 + $0x24] sm:$0xf]
        %v1713 = vcombine.high %v1703, %v1703
        %v1714 = vcombine.high %v1704, %v1704
        %v1715 = vcombine.high %v1705, %v1705
        %v1716 = vcombine.high %v1706, %v1706
        %1717 = vrot.lane.b32.xlu0 %v1703, 111
        %v1718 = vpop.permute.xlu0 %1717
        %1719 = vrot.lane.b32.xlu0 %v1713, 111
        %v1720 = vpop.permute.xlu0 %1719
        %1721 = vrot.lane.b32.xlu0 %v1704, 111
        %v1722 = vpop.permute.xlu0 %1721
        %1723 = vrot.lane.b32.xlu0 %v1714, 111
        %v1724 = vpop.permute.xlu0 %1723
        %1725 = vrot.lane.b32.xlu0 %v1705, 111
        %v1726 = vpop.permute.xlu0 %1725
        %1727 = vrot.lane.b32.xlu0 %v1715, 111
        %v1728 = vpop.permute.xlu0 %1727
        %1729 = vrot.lane.b32.xlu0 %v1706, 111
        %v1730 = vpop.permute.xlu0 %1729
        %1731 = vrot.lane.b32.xlu0 %v1716, 111
        %v1732 = vpop.permute.xlu0 %1731
        %1733 = vrot.lane.b32.xlu0 %v1707, 111
        %v1734 = vpop.permute.xlu0 %1733
        %vm1735 = vcmask 908288
        %v1736 = vsel %vm1735, %v1718, %v1720
        %v1737 = vsel %vm1735, %v1720, %v1722
        %v1738 = vsel %vm1735, %v1722, %v1724
        %v1739 = vsel %vm1735, %v1724, %v1726
        %v1740 = vsel %vm1735, %v1726, %v1728
        %v1741 = vsel %vm1735, %v1728, %v1730
        %v1742 = vsel %vm1735, %v1730, %v1732
        %v1743 = vsel %vm1735, %v1732, %v1734
        %1752 = vst [vmem:[#allocation3 + $0x340] sm:$0xf] %v1736
        %1753 = vst [vmem:[#allocation3 + $0x348] sm:$0xf] %v1737
        %1754 = vst [vmem:[#allocation3 + $0x350] sm:$0xf] %v1738
        %1755 = vst [vmem:[#allocation3 + $0x358] sm:$0xf] %v1739
        %1756 = vst [vmem:[#allocation3 + $0x360] sm:$0xf] %v1740
        %1757 = vst [vmem:[#allocation3 + $0x368] sm:$0xf] %v1741
        %1758 = vst [vmem:[#allocation3 + $0x370] sm:$0xf] %v1742
        %1759 = vst [vmem:[#allocation3 + $0x378] sm:$0xf] %v1743
        %v1760 = vld [vmem:[%s203 + $0x4] sm:$0xff]
        %v1761 = vld [vmem:[%s203 + $0xc] sm:$0xff]
        %v1762 = vld [vmem:[%s203 + $0x14] sm:$0xff]
        %v1763 = vld [vmem:[%s203 + $0x1c] sm:$0xff]
        %v1764 = vld [vmem:[%s203 + $0x24] sm:$0xf]
        %v1770 = vcombine.low %v1760, %v1760
        %v1771 = vcombine.low %v1761, %v1761
        %v1772 = vcombine.low %v1762, %v1762
        %v1773 = vcombine.low %v1763, %v1763
        %v1774 = vcombine.low %v1764, %v1764
        %1775 = vrot.lane.b32.xlu0 %v1770, 110
        %v1776 = vpop.permute.xlu0 %1775
        %1777 = vrot.lane.b32.xlu0 %v1760, 110
        %v1778 = vpop.permute.xlu0 %1777
        %1779 = vrot.lane.b32.xlu0 %v1771, 110
        %v1780 = vpop.permute.xlu0 %1779
        %1781 = vrot.lane.b32.xlu0 %v1761, 110
        %v1782 = vpop.permute.xlu0 %1781
        %1783 = vrot.lane.b32.xlu0 %v1772, 110
        %v1784 = vpop.permute.xlu0 %1783
        %1785 = vrot.lane.b32.xlu0 %v1762, 110
        %v1786 = vpop.permute.xlu0 %1785
        %1787 = vrot.lane.b32.xlu0 %v1773, 110
        %v1788 = vpop.permute.xlu0 %1787
        %1789 = vrot.lane.b32.xlu0 %v1763, 110
        %v1790 = vpop.permute.xlu0 %1789
        %1791 = vrot.lane.b32.xlu0 %v1774, 110
        %v1792 = vpop.permute.xlu0 %1791
        %vm1793 = vcmask 900096
        %v1794 = vsel %vm1793, %v1776, %v1778
        %v1795 = vsel %vm1793, %v1778, %v1780
        %v1796 = vsel %vm1793, %v1780, %v1782
        %v1797 = vsel %vm1793, %v1782, %v1784
        %v1798 = vsel %vm1793, %v1784, %v1786
        %v1799 = vsel %vm1793, %v1786, %v1788
        %v1800 = vsel %vm1793, %v1788, %v1790
        %v1801 = vsel %vm1793, %v1790, %v1792
        %1810 = vst [vmem:[#allocation3 + $0x340] sm:$0xf0] %v1794
        %1811 = vst [vmem:[#allocation3 + $0x348] sm:$0xf0] %v1795
        %1812 = vst [vmem:[#allocation3 + $0x350] sm:$0xf0] %v1796
        %1813 = vst [vmem:[#allocation3 + $0x358] sm:$0xf0] %v1797
        %1814 = vst [vmem:[#allocation3 + $0x360] sm:$0xf0] %v1798
        %1815 = vst [vmem:[#allocation3 + $0x368] sm:$0xf0] %v1799
        %1816 = vst [vmem:[#allocation3 + $0x370] sm:$0xf0] %v1800
        %1817 = vst [vmem:[#allocation3 + $0x378] sm:$0xf0] %v1801
        %v1818 = vld [vmem:[%s203 + $0x4] sm:$0xff]
        %v1819 = vld [vmem:[%s203 + $0xc] sm:$0xff]
        %v1820 = vld [vmem:[%s203 + $0x14] sm:$0xff]
        %v1821 = vld [vmem:[%s203 + $0x1c] sm:$0xff]
        %v1822 = vld [vmem:[%s203 + $0x24] sm:$0xf]
        %v1828 = vcombine.high %v1818, %v1818
        %v1829 = vcombine.high %v1819, %v1819
        %v1830 = vcombine.high %v1820, %v1820
        %v1831 = vcombine.high %v1821, %v1821
        %1832 = vrot.lane.b32.xlu0 %v1818, 102
        %v1833 = vpop.permute.xlu0 %1832
        %1834 = vrot.lane.b32.xlu0 %v1828, 102
        %v1835 = vpop.permute.xlu0 %1834
        %1836 = vrot.lane.b32.xlu0 %v1819, 102
        %v1837 = vpop.permute.xlu0 %1836
        %1838 = vrot.lane.b32.xlu0 %v1829, 102
        %v1839 = vpop.permute.xlu0 %1838
        %1840 = vrot.lane.b32.xlu0 %v1820, 102
        %v1841 = vpop.permute.xlu0 %1840
        %1842 = vrot.lane.b32.xlu0 %v1830, 102
        %v1843 = vpop.permute.xlu0 %1842
        %1844 = vrot.lane.b32.xlu0 %v1821, 102
        %v1845 = vpop.permute.xlu0 %1844
        %1846 = vrot.lane.b32.xlu0 %v1831, 102
        %v1847 = vpop.permute.xlu0 %1846
        %1848 = vrot.lane.b32.xlu0 %v1822, 102
        %v1849 = vpop.permute.xlu0 %1848
        %vm1850 = vcmask 834560
        %v1851 = vsel %vm1850, %v1833, %v1835
        %v1852 = vsel %vm1850, %v1835, %v1837
        %v1853 = vsel %vm1850, %v1837, %v1839
        %v1854 = vsel %vm1850, %v1839, %v1841
        %v1855 = vsel %vm1850, %v1841, %v1843
        %v1856 = vsel %vm1850, %v1843, %v1845
        %v1857 = vsel %vm1850, %v1845, %v1847
        %v1858 = vsel %vm1850, %v1847, %v1849
        %1867 = vst [vmem:[#allocation3 + $0x380] sm:$0xf] %v1851
        %1868 = vst [vmem:[#allocation3 + $0x388] sm:$0xf] %v1852
        %1869 = vst [vmem:[#allocation3 + $0x390] sm:$0xf] %v1853
        %1870 = vst [vmem:[#allocation3 + $0x398] sm:$0xf] %v1854
        %1871 = vst [vmem:[#allocation3 + $0x3a0] sm:$0xf] %v1855
        %1872 = vst [vmem:[#allocation3 + $0x3a8] sm:$0xf] %v1856
        %1873 = vst [vmem:[#allocation3 + $0x3b0] sm:$0xf] %v1857
        %1874 = vst [vmem:[#allocation3 + $0x3b8] sm:$0xf] %v1858
        %v1875 = vld [vmem:[%s203 + $0x4] sm:$0xff]
        %v1876 = vld [vmem:[%s203 + $0xc] sm:$0xff]
        %v1877 = vld [vmem:[%s203 + $0x14] sm:$0xff]
        %v1878 = vld [vmem:[%s203 + $0x1c] sm:$0xff]
        %v1879 = vld [vmem:[%s203 + $0x24] sm:$0xf]
        %v1885 = vcombine.low %v1875, %v1875
        %v1886 = vcombine.low %v1876, %v1876
        %v1887 = vcombine.low %v1877, %v1877
        %v1888 = vcombine.low %v1878, %v1878
        %v1889 = vcombine.low %v1879, %v1879
        %1890 = vrot.lane.b32.xlu0 %v1885, 101
        %v1891 = vpop.permute.xlu0 %1890
        %1892 = vrot.lane.b32.xlu0 %v1875, 101
        %v1893 = vpop.permute.xlu0 %1892
        %1894 = vrot.lane.b32.xlu0 %v1886, 101
        %v1895 = vpop.permute.xlu0 %1894
        %1896 = vrot.lane.b32.xlu0 %v1876, 101
        %v1897 = vpop.permute.xlu0 %1896
        %1898 = vrot.lane.b32.xlu0 %v1887, 101
        %v1899 = vpop.permute.xlu0 %1898
        %1900 = vrot.lane.b32.xlu0 %v1877, 101
        %v1901 = vpop.permute.xlu0 %1900
        %1902 = vrot.lane.b32.xlu0 %v1888, 101
        %v1903 = vpop.permute.xlu0 %1902
        %1904 = vrot.lane.b32.xlu0 %v1878, 101
        %v1905 = vpop.permute.xlu0 %1904
        %1906 = vrot.lane.b32.xlu0 %v1889, 101
        %v1907 = vpop.permute.xlu0 %1906
        %vm1908 = vcmask 826368
        %v1909 = vsel %vm1908, %v1891, %v1893
        %v1910 = vsel %vm1908, %v1893, %v1895
        %v1911 = vsel %vm1908, %v1895, %v1897
        %v1912 = vsel %vm1908, %v1897, %v1899
        %v1913 = vsel %vm1908, %v1899, %v1901
        %v1914 = vsel %vm1908, %v1901, %v1903
        %v1915 = vsel %vm1908, %v1903, %v1905
        %v1916 = vsel %vm1908, %v1905, %v1907
        %1925 = vst [vmem:[#allocation3 + $0x380] sm:$0xf0] %v1909
        %1926 = vst [vmem:[#allocation3 + $0x388] sm:$0xf0] %v1910
        %1927 = vst [vmem:[#allocation3 + $0x390] sm:$0xf0] %v1911
        %1928 = vst [vmem:[#allocation3 + $0x398] sm:$0xf0] %v1912
        %1929 = vst [vmem:[#allocation3 + $0x3a0] sm:$0xf0] %v1913
        %1930 = vst [vmem:[#allocation3 + $0x3a8] sm:$0xf0] %v1914
        %1931 = vst [vmem:[#allocation3 + $0x3b0] sm:$0xf0] %v1915
        %1932 = vst [vmem:[#allocation3 + $0x3b8] sm:$0xf0] %v1916
        %v1933 = vld [vmem:[%s203 + $0x4] sm:$0xff]
        %v1934 = vld [vmem:[%s203 + $0xc] sm:$0xff]
        %v1935 = vld [vmem:[%s203 + $0x14] sm:$0xff]
        %v1936 = vld [vmem:[%s203 + $0x1c] sm:$0xff]
        %v1937 = vld [vmem:[%s203 + $0x24] sm:$0xf]
        %v1943 = vcombine.high %v1933, %v1933
        %v1944 = vcombine.high %v1934, %v1934
        %v1945 = vcombine.high %v1935, %v1935
        %v1946 = vcombine.high %v1936, %v1936
        %1947 = vrot.lane.b32.xlu0 %v1933, 100
        %v1948 = vpop.permute.xlu0 %1947
        %1949 = vrot.lane.b32.xlu0 %v1943, 100
        %v1950 = vpop.permute.xlu0 %1949
        %1951 = vrot.lane.b32.xlu0 %v1934, 100
        %v1952 = vpop.permute.xlu0 %1951
        %1953 = vrot.lane.b32.xlu0 %v1944, 100
        %v1954 = vpop.permute.xlu0 %1953
        %1955 = vrot.lane.b32.xlu0 %v1935, 100
        %v1956 = vpop.permute.xlu0 %1955
        %1957 = vrot.lane.b32.xlu0 %v1945, 100
        %v1958 = vpop.permute.xlu0 %1957
        %1959 = vrot.lane.b32.xlu0 %v1936, 100
        %v1960 = vpop.permute.xlu0 %1959
        %1961 = vrot.lane.b32.xlu0 %v1946, 100
        %v1962 = vpop.permute.xlu0 %1961
        %1963 = vrot.lane.b32.xlu0 %v1937, 100
        %v1964 = vpop.permute.xlu0 %1963
        %vm1965 = vcmask 818176
        %v1966 = vsel %vm1965, %v1948, %v1950
        %v1967 = vsel %vm1965, %v1950, %v1952
        %v1968 = vsel %vm1965, %v1952, %v1954
        %v1969 = vsel %vm1965, %v1954, %v1956
        %v1970 = vsel %vm1965, %v1956, %v1958
        %v1971 = vsel %vm1965, %v1958, %v1960
        %v1972 = vsel %vm1965, %v1960, %v1962
        %v1973 = vsel %vm1965, %v1962, %v1964
        %1982 = vst [vmem:[#allocation3 + $0x3c0] sm:$0xf] %v1966
        %1983 = vst [vmem:[#allocation3 + $0x3c8] sm:$0xf] %v1967
        %1984 = vst [vmem:[#allocation3 + $0x3d0] sm:$0xf] %v1968
        %1985 = vst [vmem:[#allocation3 + $0x3d8] sm:$0xf] %v1969
        %1986 = vst [vmem:[#allocation3 + $0x3e0] sm:$0xf] %v1970
        %1987 = vst [vmem:[#allocation3 + $0x3e8] sm:$0xf] %v1971
        %1988 = vst [vmem:[#allocation3 + $0x3f0] sm:$0xf] %v1972
        %1989 = vst [vmem:[#allocation3 + $0x3f8] sm:$0xf] %v1973
        %v1990 = vld [vmem:[%s203 + $0x4] sm:$0xff]
        %v1991 = vld [vmem:[%s203 + $0xc] sm:$0xff]
        %v1992 = vld [vmem:[%s203 + $0x14] sm:$0xff]
        %v1993 = vld [vmem:[%s203 + $0x1c] sm:$0xff]
        %v1994 = vld [vmem:[%s203 + $0x24] sm:$0xf]
        %v2000 = vcombine.low %v1990, %v1990
        %v2001 = vcombine.low %v1991, %v1991
        %v2002 = vcombine.low %v1992, %v1992
        %v2003 = vcombine.low %v1993, %v1993
        %v2004 = vcombine.low %v1994, %v1994
        %2005 = vrot.lane.b32.xlu0 %v2000, 99
        %v2006 = vpop.permute.xlu0 %2005
        %2007 = vrot.lane.b32.xlu0 %v1990, 99
        %v2008 = vpop.permute.xlu0 %2007
        %2009 = vrot.lane.b32.xlu0 %v2001, 99
        %v2010 = vpop.permute.xlu0 %2009
        %2011 = vrot.lane.b32.xlu0 %v1991, 99
        %v2012 = vpop.permute.xlu0 %2011
        %2013 = vrot.lane.b32.xlu0 %v2002, 99
        %v2014 = vpop.permute.xlu0 %2013
        %2015 = vrot.lane.b32.xlu0 %v1992, 99
        %v2016 = vpop.permute.xlu0 %2015
        %2017 = vrot.lane.b32.xlu0 %v2003, 99
        %v2018 = vpop.permute.xlu0 %2017
        %2019 = vrot.lane.b32.xlu0 %v1993, 99
        %v2020 = vpop.permute.xlu0 %2019
        %2021 = vrot.lane.b32.xlu0 %v2004, 99
        %v2022 = vpop.permute.xlu0 %2021
        %vm2023 = vcmask 809984
        %v2024 = vsel %vm2023, %v2006, %v2008
        %v2025 = vsel %vm2023, %v2008, %v2010
        %v2026 = vsel %vm2023, %v2010, %v2012
        %v2027 = vsel %vm2023, %v2012, %v2014
        %v2028 = vsel %vm2023, %v2014, %v2016
        %v2029 = vsel %vm2023, %v2016, %v2018
        %v2030 = vsel %vm2023, %v2018, %v2020
        %v2031 = vsel %vm2023, %v2020, %v2022
        %2040 = vst [vmem:[#allocation3 + $0x3c0] sm:$0xf0] %v2024
        %2041 = vst [vmem:[#allocation3 + $0x3c8] sm:$0xf0] %v2025
        %2042 = vst [vmem:[#allocation3 + $0x3d0] sm:$0xf0] %v2026
        %2043 = vst [vmem:[#allocation3 + $0x3d8] sm:$0xf0] %v2027
        %2044 = vst [vmem:[#allocation3 + $0x3e0] sm:$0xf0] %v2028
        %2045 = vst [vmem:[#allocation3 + $0x3e8] sm:$0xf0] %v2029
        %2046 = vst [vmem:[#allocation3 + $0x3f0] sm:$0xf0] %v2030
        %2047 = vst [vmem:[#allocation3 + $0x3f8] sm:$0xf0] %v2031
        %v2048 = vld [vmem:[%s203 + $0x4] sm:$0xff]
        %v2049 = vld [vmem:[%s203 + $0xc] sm:$0xff]
        %v2050 = vld [vmem:[%s203 + $0x14] sm:$0xff]
        %v2051 = vld [vmem:[%s203 + $0x1c] sm:$0xff]
        %v2052 = vld [vmem:[%s203 + $0x24] sm:$0xf]
        %v2058 = vcombine.high %v2048, %v2048
        %v2059 = vcombine.high %v2049, %v2049
        %v2060 = vcombine.high %v2050, %v2050
        %v2061 = vcombine.high %v2051, %v2051
        %2062 = vrot.lane.b32.xlu0 %v2048, 14
        %v2063 = vpop.permute.xlu0 %2062
        %2064 = vrot.lane.b32.xlu0 %v2058, 14
        %v2065 = vpop.permute.xlu0 %2064
        %2066 = vrot.lane.b32.xlu0 %v2049, 14
        %v2067 = vpop.permute.xlu0 %2066
        %2068 = vrot.lane.b32.xlu0 %v2059, 14
        %v2069 = vpop.permute.xlu0 %2068
        %2070 = vrot.lane.b32.xlu0 %v2050, 14
        %v2071 = vpop.permute.xlu0 %2070
        %2072 = vrot.lane.b32.xlu0 %v2060, 14
        %v2073 = vpop.permute.xlu0 %2072
        %2074 = vrot.lane.b32.xlu0 %v2051, 14
        %v2075 = vpop.permute.xlu0 %2074
        %2076 = vrot.lane.b32.xlu0 %v2061, 14
        %v2077 = vpop.permute.xlu0 %2076
        %2078 = vrot.lane.b32.xlu0 %v2052, 14
        %v2079 = vpop.permute.xlu0 %2078
        %vm2080 = vcmask 113664
        %v2081 = vsel %vm2080, %v2063, %v2065
        %v2082 = vsel %vm2080, %v2065, %v2067
        %v2083 = vsel %vm2080, %v2067, %v2069
        %v2084 = vsel %vm2080, %v2069, %v2071
        %v2085 = vsel %vm2080, %v2071, %v2073
        %v2086 = vsel %vm2080, %v2073, %v2075
        %v2087 = vsel %vm2080, %v2075, %v2077
        %v2088 = vsel %vm2080, %v2077, %v2079
        %2097 = vst [vmem:[#allocation3 + $0x400] sm:$0xf] %v2081
        %2098 = vst [vmem:[#allocation3 + $0x408] sm:$0xf] %v2082
        %2099 = vst [vmem:[#allocation3 + $0x410] sm:$0xf] %v2083
        %2100 = vst [vmem:[#allocation3 + $0x418] sm:$0xf] %v2084
        %2101 = vst [vmem:[#allocation3 + $0x420] sm:$0xf] %v2085
        %2102 = vst [vmem:[#allocation3 + $0x428] sm:$0xf] %v2086
        %2103 = vst [vmem:[#allocation3 + $0x430] sm:$0xf] %v2087
        %2104 = vst [vmem:[#allocation3 + $0x438] sm:$0xf] %v2088
        %v2105 = vld [vmem:[%s203 + $0x4] sm:$0xff]
        %v2106 = vld [vmem:[%s203 + $0xc] sm:$0xff]
        %v2107 = vld [vmem:[%s203 + $0x14] sm:$0xff]
        %v2108 = vld [vmem:[%s203 + $0x1c] sm:$0xff]
        %v2109 = vld [vmem:[%s203 + $0x24] sm:$0xf]
        %v2115 = vcombine.low %v2105, %v2105
        %v2116 = vcombine.low %v2106, %v2106
        %v2117 = vcombine.low %v2107, %v2107
        %v2118 = vcombine.low %v2108, %v2108
        %v2119 = vcombine.low %v2109, %v2109
        %2120 = vrot.lane.b32.xlu0 %v2115, 13
        %v2121 = vpop.permute.xlu0 %2120
        %2122 = vrot.lane.b32.xlu0 %v2105, 13
        %v2123 = vpop.permute.xlu0 %2122
        %2124 = vrot.lane.b32.xlu0 %v2116, 13
        %v2125 = vpop.permute.xlu0 %2124
        %2126 = vrot.lane.b32.xlu0 %v2106, 13
        %v2127 = vpop.permute.xlu0 %2126
        %2128 = vrot.lane.b32.xlu0 %v2117, 13
        %v2129 = vpop.permute.xlu0 %2128
        %2130 = vrot.lane.b32.xlu0 %v2107, 13
        %v2131 = vpop.permute.xlu0 %2130
        %2132 = vrot.lane.b32.xlu0 %v2118, 13
        %v2133 = vpop.permute.xlu0 %2132
        %2134 = vrot.lane.b32.xlu0 %v2108, 13
        %v2135 = vpop.permute.xlu0 %2134
        %2136 = vrot.lane.b32.xlu0 %v2119, 13
        %v2137 = vpop.permute.xlu0 %2136
        %vm2138 = vcmask 105472
        %v2139 = vsel %vm2138, %v2121, %v2123
        %v2140 = vsel %vm2138, %v2123, %v2125
        %v2141 = vsel %vm2138, %v2125, %v2127
        %v2142 = vsel %vm2138, %v2127, %v2129
        %v2143 = vsel %vm2138, %v2129, %v2131
        %v2144 = vsel %vm2138, %v2131, %v2133
        %v2145 = vsel %vm2138, %v2133, %v2135
        %v2146 = vsel %vm2138, %v2135, %v2137
        %2155 = vst [vmem:[#allocation3 + $0x400] sm:$0xf0] %v2139
        %2156 = vst [vmem:[#allocation3 + $0x408] sm:$0xf0] %v2140
        %2157 = vst [vmem:[#allocation3 + $0x410] sm:$0xf0] %v2141
        %2158 = vst [vmem:[#allocation3 + $0x418] sm:$0xf0] %v2142
        %2159 = vst [vmem:[#allocation3 + $0x420] sm:$0xf0] %v2143
        %2160 = vst [vmem:[#allocation3 + $0x428] sm:$0xf0] %v2144
        %2161 = vst [vmem:[#allocation3 + $0x430] sm:$0xf0] %v2145
        %2162 = vst [vmem:[#allocation3 + $0x438] sm:$0xf0] %v2146
        %v2163 = vld [vmem:[%s203 + $0x4] sm:$0xff]
        %v2164 = vld [vmem:[%s203 + $0xc] sm:$0xff]
        %v2165 = vld [vmem:[%s203 + $0x14] sm:$0xff]
        %v2166 = vld [vmem:[%s203 + $0x1c] sm:$0xff]
        %v2167 = vld [vmem:[%s203 + $0x24] sm:$0xf]
        %v2173 = vcombine.high %v2163, %v2163
        %v2174 = vcombine.high %v2164, %v2164
        %v2175 = vcombine.high %v2165, %v2165
        %v2176 = vcombine.high %v2166, %v2166
        %2177 = vrot.lane.b32.xlu0 %v2163, 12
        %v2178 = vpop.permute.xlu0 %2177
        %2179 = vrot.lane.b32.xlu0 %v2173, 12
        %v2180 = vpop.permute.xlu0 %2179
        %2181 = vrot.lane.b32.xlu0 %v2164, 12
        %v2182 = vpop.permute.xlu0 %2181
        %2183 = vrot.lane.b32.xlu0 %v2174, 12
        %v2184 = vpop.permute.xlu0 %2183
        %2185 = vrot.lane.b32.xlu0 %v2165, 12
        %v2186 = vpop.permute.xlu0 %2185
        %2187 = vrot.lane.b32.xlu0 %v2175, 12
        %v2188 = vpop.permute.xlu0 %2187
        %2189 = vrot.lane.b32.xlu0 %v2166, 12
        %v2190 = vpop.permute.xlu0 %2189
        %2191 = vrot.lane.b32.xlu0 %v2176, 12
        %v2192 = vpop.permute.xlu0 %2191
        %2193 = vrot.lane.b32.xlu0 %v2167, 12
        %v2194 = vpop.permute.xlu0 %2193
        %vm2195 = vcmask 97280
        %v2196 = vsel %vm2195, %v2178, %v2180
        %v2197 = vsel %vm2195, %v2180, %v2182
        %v2198 = vsel %vm2195, %v2182, %v2184
        %v2199 = vsel %vm2195, %v2184, %v2186
        %v2200 = vsel %vm2195, %v2186, %v2188
        %v2201 = vsel %vm2195, %v2188, %v2190
        %v2202 = vsel %vm2195, %v2190, %v2192
        %v2203 = vsel %vm2195, %v2192, %v2194
        %2212 = vst [vmem:[#allocation3 + $0x440] sm:$0xf] %v2196
        %2213 = vst [vmem:[#allocation3 + $0x448] sm:$0xf] %v2197
        %2214 = vst [vmem:[#allocation3 + $0x450] sm:$0xf] %v2198
        %2215 = vst [vmem:[#allocation3 + $0x458] sm:$0xf] %v2199
        %2216 = vst [vmem:[#allocation3 + $0x460] sm:$0xf] %v2200
        %2217 = vst [vmem:[#allocation3 + $0x468] sm:$0xf] %v2201
        %2218 = vst [vmem:[#allocation3 + $0x470] sm:$0xf] %v2202
        %2219 = vst [vmem:[#allocation3 + $0x478] sm:$0xf] %v2203
        %v2220 = vld [vmem:[%s203 + $0x4] sm:$0xff]
        %v2221 = vld [vmem:[%s203 + $0xc] sm:$0xff]
        %v2222 = vld [vmem:[%s203 + $0x14] sm:$0xff]
        %v2223 = vld [vmem:[%s203 + $0x1c] sm:$0xff]
        %v2224 = vld [vmem:[%s203 + $0x24] sm:$0xf]
        %v2230 = vcombine.low %v2220, %v2220
        %v2231 = vcombine.low %v2221, %v2221
        %v2232 = vcombine.low %v2222, %v2222
        %v2233 = vcombine.low %v2223, %v2223
        %v2234 = vcombine.low %v2224, %v2224
        %2235 = vrot.lane.b32.xlu0 %v2230, 11
        %v2236 = vpop.permute.xlu0 %2235
        %2237 = vrot.lane.b32.xlu0 %v2220, 11
        %v2238 = vpop.permute.xlu0 %2237
        %2239 = vrot.lane.b32.xlu0 %v2231, 11
        %v2240 = vpop.permute.xlu0 %2239
        %2241 = vrot.lane.b32.xlu0 %v2221, 11
        %v2242 = vpop.permute.xlu0 %2241
        %2243 = vrot.lane.b32.xlu0 %v2232, 11
        %v2244 = vpop.permute.xlu0 %2243
        %2245 = vrot.lane.b32.xlu0 %v2222, 11
        %v2246 = vpop.permute.xlu0 %2245
        %2247 = vrot.lane.b32.xlu0 %v2233, 11
        %v2248 = vpop.permute.xlu0 %2247
        %2249 = vrot.lane.b32.xlu0 %v2223, 11
        %v2250 = vpop.permute.xlu0 %2249
        %2251 = vrot.lane.b32.xlu0 %v2234, 11
        %v2252 = vpop.permute.xlu0 %2251
        %vm2253 = vcmask 89088
        %v2254 = vsel %vm2253, %v2236, %v2238
        %v2255 = vsel %vm2253, %v2238, %v2240
        %v2256 = vsel %vm2253, %v2240, %v2242
        %v2257 = vsel %vm2253, %v2242, %v2244
        %v2258 = vsel %vm2253, %v2244, %v2246
        %v2259 = vsel %vm2253, %v2246, %v2248
        %v2260 = vsel %vm2253, %v2248, %v2250
        %v2261 = vsel %vm2253, %v2250, %v2252
        %2270 = vst [vmem:[#allocation3 + $0x440] sm:$0xf0] %v2254
        %2271 = vst [vmem:[#allocation3 + $0x448] sm:$0xf0] %v2255
        %2272 = vst [vmem:[#allocation3 + $0x450] sm:$0xf0] %v2256
        %2273 = vst [vmem:[#allocation3 + $0x458] sm:$0xf0] %v2257
        %2274 = vst [vmem:[#allocation3 + $0x460] sm:$0xf0] %v2258
        %2275 = vst [vmem:[#allocation3 + $0x468] sm:$0xf0] %v2259
        %2276 = vst [vmem:[#allocation3 + $0x470] sm:$0xf0] %v2260
        %2277 = vst [vmem:[#allocation3 + $0x478] sm:$0xf0] %v2261
        %v2278 = vld [vmem:[%s203 + $0x4] sm:$0xff]
        %v2279 = vld [vmem:[%s203 + $0xc] sm:$0xff]
        %v2280 = vld [vmem:[%s203 + $0x14] sm:$0xff]
        %v2281 = vld [vmem:[%s203 + $0x1c] sm:$0xff]
        %v2282 = vld [vmem:[%s203 + $0x24] sm:$0xf]
        %v2288 = vcombine.high %v2278, %v2278
        %v2289 = vcombine.high %v2279, %v2279
        %v2290 = vcombine.high %v2280, %v2280
        %v2291 = vcombine.high %v2281, %v2281
        %2292 = vrot.lane.b32.xlu0 %v2278, 3
        %v2293 = vpop.permute.xlu0 %2292
        %2294 = vrot.lane.b32.xlu0 %v2288, 3
        %v2295 = vpop.permute.xlu0 %2294
        %2296 = vrot.lane.b32.xlu0 %v2279, 3
        %v2297 = vpop.permute.xlu0 %2296
        %2298 = vrot.lane.b32.xlu0 %v2289, 3
        %v2299 = vpop.permute.xlu0 %2298
        %2300 = vrot.lane.b32.xlu0 %v2280, 3
        %v2301 = vpop.permute.xlu0 %2300
        %2302 = vrot.lane.b32.xlu0 %v2290, 3
        %v2303 = vpop.permute.xlu0 %2302
        %2304 = vrot.lane.b32.xlu0 %v2281, 3
        %v2305 = vpop.permute.xlu0 %2304
        %2306 = vrot.lane.b32.xlu0 %v2291, 3
        %v2307 = vpop.permute.xlu0 %2306
        %2308 = vrot.lane.b32.xlu0 %v2282, 3
        %v2309 = vpop.permute.xlu0 %2308
        %vm2310 = vcmask 23552
        %v2311 = vsel %vm2310, %v2293, %v2295
        %v2312 = vsel %vm2310, %v2295, %v2297
        %v2313 = vsel %vm2310, %v2297, %v2299
        %v2314 = vsel %vm2310, %v2299, %v2301
        %v2315 = vsel %vm2310, %v2301, %v2303
        %v2316 = vsel %vm2310, %v2303, %v2305
        %v2317 = vsel %vm2310, %v2305, %v2307
        %v2318 = vsel %vm2310, %v2307, %v2309
        %2327 = vst [vmem:[#allocation3 + $0x480] sm:$0xf] %v2311
        %2328 = vst [vmem:[#allocation3 + $0x488] sm:$0xf] %v2312
        %2329 = vst [vmem:[#allocation3 + $0x490] sm:$0xf] %v2313
        %2330 = vst [vmem:[#allocation3 + $0x498] sm:$0xf] %v2314
        %2331 = vst [vmem:[#allocation3 + $0x4a0] sm:$0xf] %v2315
        %2332 = vst [vmem:[#allocation3 + $0x4a8] sm:$0xf] %v2316
        %2333 = vst [vmem:[#allocation3 + $0x4b0] sm:$0xf] %v2317
        %2334 = vst [vmem:[#allocation3 + $0x4b8] sm:$0xf] %v2318
        %v2335 = vld [vmem:[%s203 + $0x4] sm:$0xff]
        %v2336 = vld [vmem:[%s203 + $0xc] sm:$0xff]
        %v2337 = vld [vmem:[%s203 + $0x14] sm:$0xff]
        %v2338 = vld [vmem:[%s203 + $0x1c] sm:$0xff]
        %v2339 = vld [vmem:[%s203 + $0x24] sm:$0xf]
        %v2345 = vcombine.low %v2335, %v2335
        %v2346 = vcombine.low %v2336, %v2336
        %v2347 = vcombine.low %v2337, %v2337
        %v2348 = vcombine.low %v2338, %v2338
        %v2349 = vcombine.low %v2339, %v2339
        %2350 = vrot.lane.b32.xlu0 %v2345, 2
        %v2351 = vpop.permute.xlu0 %2350
        %2352 = vrot.lane.b32.xlu0 %v2335, 2
        %v2353 = vpop.permute.xlu0 %2352
        %2354 = vrot.lane.b32.xlu0 %v2346, 2
        %v2355 = vpop.permute.xlu0 %2354
        %2356 = vrot.lane.b32.xlu0 %v2336, 2
        %v2357 = vpop.permute.xlu0 %2356
        %2358 = vrot.lane.b32.xlu0 %v2347, 2
        %v2359 = vpop.permute.xlu0 %2358
        %2360 = vrot.lane.b32.xlu0 %v2337, 2
        %v2361 = vpop.permute.xlu0 %2360
        %2362 = vrot.lane.b32.xlu0 %v2348, 2
        %v2363 = vpop.permute.xlu0 %2362
        %2364 = vrot.lane.b32.xlu0 %v2338, 2
        %v2365 = vpop.permute.xlu0 %2364
        %2366 = vrot.lane.b32.xlu0 %v2349, 2
        %v2367 = vpop.permute.xlu0 %2366
        %vm2368 = vcmask 15360
        %v2369 = vsel %vm2368, %v2351, %v2353
        %v2370 = vsel %vm2368, %v2353, %v2355
        %v2371 = vsel %vm2368, %v2355, %v2357
        %v2372 = vsel %vm2368, %v2357, %v2359
        %v2373 = vsel %vm2368, %v2359, %v2361
        %v2374 = vsel %vm2368, %v2361, %v2363
        %v2375 = vsel %vm2368, %v2363, %v2365
        %v2376 = vsel %vm2368, %v2365, %v2367
        %2385 = vst [vmem:[#allocation3 + $0x480] sm:$0xf0] %v2369
        %2386 = vst [vmem:[#allocation3 + $0x488] sm:$0xf0] %v2370
        %2387 = vst [vmem:[#allocation3 + $0x490] sm:$0xf0] %v2371
        %2388 = vst [vmem:[#allocation3 + $0x498] sm:$0xf0] %v2372
        %2389 = vst [vmem:[#allocation3 + $0x4a0] sm:$0xf0] %v2373
        %2390 = vst [vmem:[#allocation3 + $0x4a8] sm:$0xf0] %v2374
        %2391 = vst [vmem:[#allocation3 + $0x4b0] sm:$0xf0] %v2375
        %2392 = vst [vmem:[#allocation3 + $0x4b8] sm:$0xf0] %v2376
        %v2393 = vld [vmem:[%s203 + $0x4] sm:$0xff]
        %v2394 = vld [vmem:[%s203 + $0xc] sm:$0xff]
        %v2395 = vld [vmem:[%s203 + $0x14] sm:$0xff]
        %v2396 = vld [vmem:[%s203 + $0x1c] sm:$0xff]
        %v2397 = vld [vmem:[%s203 + $0x24] sm:$0xf]
        %v2403 = vcombine.high %v2393, %v2393
        %v2404 = vcombine.high %v2394, %v2394
        %v2405 = vcombine.high %v2395, %v2395
        %v2406 = vcombine.high %v2396, %v2396
        %2407 = vrot.lane.b32.xlu0 %v2393, 1
        %v2408 = vpop.permute.xlu0 %2407
        %2409 = vrot.lane.b32.xlu0 %v2403, 1
        %v2410 = vpop.permute.xlu0 %2409
        %2411 = vrot.lane.b32.xlu0 %v2394, 1
        %v2412 = vpop.permute.xlu0 %2411
        %2413 = vrot.lane.b32.xlu0 %v2404, 1
        %v2414 = vpop.permute.xlu0 %2413
        %2415 = vrot.lane.b32.xlu0 %v2395, 1
        %v2416 = vpop.permute.xlu0 %2415
        %2417 = vrot.lane.b32.xlu0 %v2405, 1
        %v2418 = vpop.permute.xlu0 %2417
        %2419 = vrot.lane.b32.xlu0 %v2396, 1
        %v2420 = vpop.permute.xlu0 %2419
        %2421 = vrot.lane.b32.xlu0 %v2406, 1
        %v2422 = vpop.permute.xlu0 %2421
        %2423 = vrot.lane.b32.xlu0 %v2397, 1
        %v2424 = vpop.permute.xlu0 %2423
        %vm2425 = vcmask 7168
        %v2426 = vsel %vm2425, %v2408, %v2410
        %v2427 = vsel %vm2425, %v2410, %v2412
        %v2428 = vsel %vm2425, %v2412, %v2414
        %v2429 = vsel %vm2425, %v2414, %v2416
        %v2430 = vsel %vm2425, %v2416, %v2418
        %v2431 = vsel %vm2425, %v2418, %v2420
        %v2432 = vsel %vm2425, %v2420, %v2422
        %v2433 = vsel %vm2425, %v2422, %v2424
        %2442 = vst [vmem:[#allocation3 + $0x4c0] sm:$0xf] %v2426
        %2443 = vst [vmem:[#allocation3 + $0x4c8] sm:$0xf] %v2427
        %2444 = vst [vmem:[#allocation3 + $0x4d0] sm:$0xf] %v2428
        %2445 = vst [vmem:[#allocation3 + $0x4d8] sm:$0xf] %v2429
        %2446 = vst [vmem:[#allocation3 + $0x4e0] sm:$0xf] %v2430
        %2447 = vst [vmem:[#allocation3 + $0x4e8] sm:$0xf] %v2431
        %2448 = vst [vmem:[#allocation3 + $0x4f0] sm:$0xf] %v2432
        %2449 = vst [vmem:[#allocation3 + $0x4f8] sm:$0xf] %v2433
        %v2450 = vld [vmem:[%s203 + $0x8] sm:$0xff]
        %v2451 = vld [vmem:[%s203 + $0x10] sm:$0xff]
        %v2452 = vld [vmem:[%s203 + $0x18] sm:$0xff]
        %v2453 = vld [vmem:[%s203 + $0x20] sm:$0xff]
        %v2458 = vcombine.low %v2450, %v2450
        %v2459 = vcombine.low %v2451, %v2451
        %v2460 = vcombine.low %v2452, %v2452
        %v2461 = vcombine.low %v2453, %v2453
        %2466 = vst [vmem:[#allocation3 + $0x4c0] sm:$0xf0] %v2458
        %2467 = vst [vmem:[#allocation3 + $0x4c8] sm:$0xf0] %v2450
        %2468 = vst [vmem:[#allocation3 + $0x4d0] sm:$0xf0] %v2459
        %2469 = vst [vmem:[#allocation3 + $0x4d8] sm:$0xf0] %v2451
        %2470 = vst [vmem:[#allocation3 + $0x4e0] sm:$0xf0] %v2460
        %2471 = vst [vmem:[#allocation3 + $0x4e8] sm:$0xf0] %v2452
        %2472 = vst [vmem:[#allocation3 + $0x4f0] sm:$0xf0] %v2461
        %2473 = vst [vmem:[#allocation3 + $0x4f8] sm:$0xf0] %v2453
        %v2474 = vld [vmem:[%s203 + $0x8] sm:$0xff]
        %v2475 = vld [vmem:[%s203 + $0x10] sm:$0xff]
        %v2476 = vld [vmem:[%s203 + $0x18] sm:$0xff]
        %v2477 = vld [vmem:[%s203 + $0x20] sm:$0xff]
        %v2478 = vld [vmem:[%s203 + $0x28] sm:$0xf]
        %v2484 = vcombine.high %v2474, %v2474
        %v2485 = vcombine.high %v2475, %v2475
        %v2486 = vcombine.high %v2476, %v2476
        %v2487 = vcombine.high %v2477, %v2477
        %2488 = vrot.lane.b32.xlu0 %v2474, 120
        %v2489 = vpop.permute.xlu0 %2488
        %2490 = vrot.lane.b32.xlu0 %v2484, 120
        %v2491 = vpop.permute.xlu0 %2490
        %2492 = vrot.lane.b32.xlu0 %v2475, 120
        %v2493 = vpop.permute.xlu0 %2492
        %2494 = vrot.lane.b32.xlu0 %v2485, 120
        %v2495 = vpop.permute.xlu0 %2494
        %2496 = vrot.lane.b32.xlu0 %v2476, 120
        %v2497 = vpop.permute.xlu0 %2496
        %2498 = vrot.lane.b32.xlu0 %v2486, 120
        %v2499 = vpop.permute.xlu0 %2498
        %2500 = vrot.lane.b32.xlu0 %v2477, 120
        %v2501 = vpop.permute.xlu0 %2500
        %2502 = vrot.lane.b32.xlu0 %v2487, 120
        %v2503 = vpop.permute.xlu0 %2502
        %2504 = vrot.lane.b32.xlu0 %v2478, 120
        %v2505 = vpop.permute.xlu0 %2504
        %vm2506 = vcmask 982016
        %v2507 = vsel %vm2506, %v2489, %v2491
        %v2508 = vsel %vm2506, %v2491, %v2493
        %v2509 = vsel %vm2506, %v2493, %v2495
        %v2510 = vsel %vm2506, %v2495, %v2497
        %v2511 = vsel %vm2506, %v2497, %v2499
        %v2512 = vsel %vm2506, %v2499, %v2501
        %v2513 = vsel %vm2506, %v2501, %v2503
        %v2514 = vsel %vm2506, %v2503, %v2505
        %2523 = vst [vmem:[#allocation3 + $0x500] sm:$0xf] %v2507
        %2524 = vst [vmem:[#allocation3 + $0x508] sm:$0xf] %v2508
        %2525 = vst [vmem:[#allocation3 + $0x510] sm:$0xf] %v2509
        %2526 = vst [vmem:[#allocation3 + $0x518] sm:$0xf] %v2510
        %2527 = vst [vmem:[#allocation3 + $0x520] sm:$0xf] %v2511
        %2528 = vst [vmem:[#allocation3 + $0x528] sm:$0xf] %v2512
        %2529 = vst [vmem:[#allocation3 + $0x530] sm:$0xf] %v2513
        %2530 = vst [vmem:[#allocation3 + $0x538] sm:$0xf] %v2514
        %v2531 = vld [vmem:[%s203 + $0x8] sm:$0xff]
        %v2532 = vld [vmem:[%s203 + $0x10] sm:$0xff]
        %v2533 = vld [vmem:[%s203 + $0x18] sm:$0xff]
        %v2534 = vld [vmem:[%s203 + $0x20] sm:$0xff]
        %v2535 = vld [vmem:[%s203 + $0x28] sm:$0xf]
        %v2541 = vcombine.low %v2531, %v2531
        %v2542 = vcombine.low %v2532, %v2532
        %v2543 = vcombine.low %v2533, %v2533
        %v2544 = vcombine.low %v2534, %v2534
        %v2545 = vcombine.low %v2535, %v2535
        %2546 = vrot.lane.b32.xlu0 %v2541, 119
        %v2547 = vpop.permute.xlu0 %2546
        %2548 = vrot.lane.b32.xlu0 %v2531, 119
        %v2549 = vpop.permute.xlu0 %2548
        %2550 = vrot.lane.b32.xlu0 %v2542, 119
        %v2551 = vpop.permute.xlu0 %2550
        %2552 = vrot.lane.b32.xlu0 %v2532, 119
        %v2553 = vpop.permute.xlu0 %2552
        %2554 = vrot.lane.b32.xlu0 %v2543, 119
        %v2555 = vpop.permute.xlu0 %2554
        %2556 = vrot.lane.b32.xlu0 %v2533, 119
        %v2557 = vpop.permute.xlu0 %2556
        %2558 = vrot.lane.b32.xlu0 %v2544, 119
        %v2559 = vpop.permute.xlu0 %2558
        %2560 = vrot.lane.b32.xlu0 %v2534, 119
        %v2561 = vpop.permute.xlu0 %2560
        %2562 = vrot.lane.b32.xlu0 %v2545, 119
        %v2563 = vpop.permute.xlu0 %2562
        %vm2564 = vcmask 973824
        %v2565 = vsel %vm2564, %v2547, %v2549
        %v2566 = vsel %vm2564, %v2549, %v2551
        %v2567 = vsel %vm2564, %v2551, %v2553
        %v2568 = vsel %vm2564, %v2553, %v2555
        %v2569 = vsel %vm2564, %v2555, %v2557
        %v2570 = vsel %vm2564, %v2557, %v2559
        %v2571 = vsel %vm2564, %v2559, %v2561
        %v2572 = vsel %vm2564, %v2561, %v2563
        %2581 = vst [vmem:[#allocation3 + $0x500] sm:$0xf0] %v2565
        %2582 = vst [vmem:[#allocation3 + $0x508] sm:$0xf0] %v2566
        %2583 = vst [vmem:[#allocation3 + $0x510] sm:$0xf0] %v2567
        %2584 = vst [vmem:[#allocation3 + $0x518] sm:$0xf0] %v2568
        %2585 = vst [vmem:[#allocation3 + $0x520] sm:$0xf0] %v2569
        %2586 = vst [vmem:[#allocation3 + $0x528] sm:$0xf0] %v2570
        %2587 = vst [vmem:[#allocation3 + $0x530] sm:$0xf0] %v2571
        %2588 = vst [vmem:[#allocation3 + $0x538] sm:$0xf0] %v2572
        %v2589 = vld [vmem:[%s203 + $0x8] sm:$0xff]
        %v2590 = vld [vmem:[%s203 + $0x10] sm:$0xff]
        %v2591 = vld [vmem:[%s203 + $0x18] sm:$0xff]
        %v2592 = vld [vmem:[%s203 + $0x20] sm:$0xff]
        %v2593 = vld [vmem:[%s203 + $0x28] sm:$0xf]
        %v2599 = vcombine.high %v2589, %v2589
        %v2600 = vcombine.high %v2590, %v2590
        %v2601 = vcombine.high %v2591, %v2591
        %v2602 = vcombine.high %v2592, %v2592
        %2603 = vrot.lane.b32.xlu0 %v2589, 118
        %v2604 = vpop.permute.xlu0 %2603
        %2605 = vrot.lane.b32.xlu0 %v2599, 118
        %v2606 = vpop.permute.xlu0 %2605
        %2607 = vrot.lane.b32.xlu0 %v2590, 118
        %v2608 = vpop.permute.xlu0 %2607
        %2609 = vrot.lane.b32.xlu0 %v2600, 118
        %v2610 = vpop.permute.xlu0 %2609
        %2611 = vrot.lane.b32.xlu0 %v2591, 118
        %v2612 = vpop.permute.xlu0 %2611
        %2613 = vrot.lane.b32.xlu0 %v2601, 118
        %v2614 = vpop.permute.xlu0 %2613
        %2615 = vrot.lane.b32.xlu0 %v2592, 118
        %v2616 = vpop.permute.xlu0 %2615
        %2617 = vrot.lane.b32.xlu0 %v2602, 118
        %v2618 = vpop.permute.xlu0 %2617
        %2619 = vrot.lane.b32.xlu0 %v2593, 118
        %v2620 = vpop.permute.xlu0 %2619
        %vm2621 = vcmask 965632
        %v2622 = vsel %vm2621, %v2604, %v2606
        %v2623 = vsel %vm2621, %v2606, %v2608
        %v2624 = vsel %vm2621, %v2608, %v2610
        %v2625 = vsel %vm2621, %v2610, %v2612
        %v2626 = vsel %vm2621, %v2612, %v2614
        %v2627 = vsel %vm2621, %v2614, %v2616
        %v2628 = vsel %vm2621, %v2616, %v2618
        %v2629 = vsel %vm2621, %v2618, %v2620
        %2638 = vst [vmem:[#allocation3 + $0x540] sm:$0xf] %v2622
        %2639 = vst [vmem:[#allocation3 + $0x548] sm:$0xf] %v2623
        %2640 = vst [vmem:[#allocation3 + $0x550] sm:$0xf] %v2624
        %2641 = vst [vmem:[#allocation3 + $0x558] sm:$0xf] %v2625
        %2642 = vst [vmem:[#allocation3 + $0x560] sm:$0xf] %v2626
        %2643 = vst [vmem:[#allocation3 + $0x568] sm:$0xf] %v2627
        %2644 = vst [vmem:[#allocation3 + $0x570] sm:$0xf] %v2628
        %2645 = vst [vmem:[#allocation3 + $0x578] sm:$0xf] %v2629
        %v2646 = vld [vmem:[%s203 + $0x8] sm:$0xff]
        %v2647 = vld [vmem:[%s203 + $0x10] sm:$0xff]
        %v2648 = vld [vmem:[%s203 + $0x18] sm:$0xff]
        %v2649 = vld [vmem:[%s203 + $0x20] sm:$0xff]
        %v2650 = vld [vmem:[%s203 + $0x28] sm:$0xf]
        %v2656 = vcombine.low %v2646, %v2646
        %v2657 = vcombine.low %v2647, %v2647
        %v2658 = vcombine.low %v2648, %v2648
        %v2659 = vcombine.low %v2649, %v2649
        %v2660 = vcombine.low %v2650, %v2650
        %2661 = vrot.lane.b32.xlu0 %v2656, 117
        %v2662 = vpop.permute.xlu0 %2661
        %2663 = vrot.lane.b32.xlu0 %v2646, 117
        %v2664 = vpop.permute.xlu0 %2663
        %2665 = vrot.lane.b32.xlu0 %v2657, 117
        %v2666 = vpop.permute.xlu0 %2665
        %2667 = vrot.lane.b32.xlu0 %v2647, 117
        %v2668 = vpop.permute.xlu0 %2667
        %2669 = vrot.lane.b32.xlu0 %v2658, 117
        %v2670 = vpop.permute.xlu0 %2669
        %2671 = vrot.lane.b32.xlu0 %v2648, 117
        %v2672 = vpop.permute.xlu0 %2671
        %2673 = vrot.lane.b32.xlu0 %v2659, 117
        %v2674 = vpop.permute.xlu0 %2673
        %2675 = vrot.lane.b32.xlu0 %v2649, 117
        %v2676 = vpop.permute.xlu0 %2675
        %2677 = vrot.lane.b32.xlu0 %v2660, 117
        %v2678 = vpop.permute.xlu0 %2677
        %v2679 = vsel %vm470, %v2662, %v2664
        %v2680 = vsel %vm470, %v2664, %v2666
        %v2681 = vsel %vm470, %v2666, %v2668
        %v2682 = vsel %vm470, %v2668, %v2670
        %v2683 = vsel %vm470, %v2670, %v2672
        %v2684 = vsel %vm470, %v2672, %v2674
        %v2685 = vsel %vm470, %v2674, %v2676
        %v2686 = vsel %vm470, %v2676, %v2678
        %2695 = vst [vmem:[#allocation3 + $0x540] sm:$0xf0] %v2679
        %2696 = vst [vmem:[#allocation3 + $0x548] sm:$0xf0] %v2680
        %2697 = vst [vmem:[#allocation3 + $0x550] sm:$0xf0] %v2681
        %2698 = vst [vmem:[#allocation3 + $0x558] sm:$0xf0] %v2682
        %2699 = vst [vmem:[#allocation3 + $0x560] sm:$0xf0] %v2683
        %2700 = vst [vmem:[#allocation3 + $0x568] sm:$0xf0] %v2684
        %2701 = vst [vmem:[#allocation3 + $0x570] sm:$0xf0] %v2685
        %2702 = vst [vmem:[#allocation3 + $0x578] sm:$0xf0] %v2686
        %v2703 = vld [vmem:[%s203 + $0x8] sm:$0xff]
        %v2704 = vld [vmem:[%s203 + $0x10] sm:$0xff]
        %v2705 = vld [vmem:[%s203 + $0x18] sm:$0xff]
        %v2706 = vld [vmem:[%s203 + $0x20] sm:$0xff]
        %v2707 = vld [vmem:[%s203 + $0x28] sm:$0xf]
        %v2713 = vcombine.high %v2703, %v2703
        %v2714 = vcombine.high %v2704, %v2704
        %v2715 = vcombine.high %v2705, %v2705
        %v2716 = vcombine.high %v2706, %v2706
        %2717 = vrot.lane.b32.xlu0 %v2703, 109
        %v2718 = vpop.permute.xlu0 %2717
        %2719 = vrot.lane.b32.xlu0 %v2713, 109
        %v2720 = vpop.permute.xlu0 %2719
        %2721 = vrot.lane.b32.xlu0 %v2704, 109
        %v2722 = vpop.permute.xlu0 %2721
        %2723 = vrot.lane.b32.xlu0 %v2714, 109
        %v2724 = vpop.permute.xlu0 %2723
        %2725 = vrot.lane.b32.xlu0 %v2705, 109
        %v2726 = vpop.permute.xlu0 %2725
        %2727 = vrot.lane.b32.xlu0 %v2715, 109
        %v2728 = vpop.permute.xlu0 %2727
        %2729 = vrot.lane.b32.xlu0 %v2706, 109
        %v2730 = vpop.permute.xlu0 %2729
        %2731 = vrot.lane.b32.xlu0 %v2716, 109
        %v2732 = vpop.permute.xlu0 %2731
        %2733 = vrot.lane.b32.xlu0 %v2707, 109
        %v2734 = vpop.permute.xlu0 %2733
        %vm2735 = vcmask 891904
        %v2736 = vsel %vm2735, %v2718, %v2720
        %v2737 = vsel %vm2735, %v2720, %v2722
        %v2738 = vsel %vm2735, %v2722, %v2724
        %v2739 = vsel %vm2735, %v2724, %v2726
        %v2740 = vsel %vm2735, %v2726, %v2728
        %v2741 = vsel %vm2735, %v2728, %v2730
        %v2742 = vsel %vm2735, %v2730, %v2732
        %v2743 = vsel %vm2735, %v2732, %v2734
        %2752 = vst [vmem:[#allocation3 + $0x580] sm:$0xf] %v2736
        %2753 = vst [vmem:[#allocation3 + $0x588] sm:$0xf] %v2737
        %2754 = vst [vmem:[#allocation3 + $0x590] sm:$0xf] %v2738
        %2755 = vst [vmem:[#allocation3 + $0x598] sm:$0xf] %v2739
        %2756 = vst [vmem:[#allocation3 + $0x5a0] sm:$0xf] %v2740
        %2757 = vst [vmem:[#allocation3 + $0x5a8] sm:$0xf] %v2741
        %2758 = vst [vmem:[#allocation3 + $0x5b0] sm:$0xf] %v2742
        %2759 = vst [vmem:[#allocation3 + $0x5b8] sm:$0xf] %v2743
        %v2760 = vld [vmem:[%s203 + $0x8] sm:$0xff]
        %v2761 = vld [vmem:[%s203 + $0x10] sm:$0xff]
        %v2762 = vld [vmem:[%s203 + $0x18] sm:$0xff]
        %v2763 = vld [vmem:[%s203 + $0x20] sm:$0xff]
        %v2764 = vld [vmem:[%s203 + $0x28] sm:$0xf]
        %v2770 = vcombine.low %v2760, %v2760
        %v2771 = vcombine.low %v2761, %v2761
        %v2772 = vcombine.low %v2762, %v2762
        %v2773 = vcombine.low %v2763, %v2763
        %v2774 = vcombine.low %v2764, %v2764
        %2775 = vrot.lane.b32.xlu0 %v2770, 108
        %v2776 = vpop.permute.xlu0 %2775
        %2777 = vrot.lane.b32.xlu0 %v2760, 108
        %v2778 = vpop.permute.xlu0 %2777
        %2779 = vrot.lane.b32.xlu0 %v2771, 108
        %v2780 = vpop.permute.xlu0 %2779
        %2781 = vrot.lane.b32.xlu0 %v2761, 108
        %v2782 = vpop.permute.xlu0 %2781
        %2783 = vrot.lane.b32.xlu0 %v2772, 108
        %v2784 = vpop.permute.xlu0 %2783
        %2785 = vrot.lane.b32.xlu0 %v2762, 108
        %v2786 = vpop.permute.xlu0 %2785
        %2787 = vrot.lane.b32.xlu0 %v2773, 108
        %v2788 = vpop.permute.xlu0 %2787
        %2789 = vrot.lane.b32.xlu0 %v2763, 108
        %v2790 = vpop.permute.xlu0 %2789
        %2791 = vrot.lane.b32.xlu0 %v2774, 108
        %v2792 = vpop.permute.xlu0 %2791
        %vm2793 = vcmask 883712
        %v2794 = vsel %vm2793, %v2776, %v2778
        %v2795 = vsel %vm2793, %v2778, %v2780
        %v2796 = vsel %vm2793, %v2780, %v2782
        %v2797 = vsel %vm2793, %v2782, %v2784
        %v2798 = vsel %vm2793, %v2784, %v2786
        %v2799 = vsel %vm2793, %v2786, %v2788
        %v2800 = vsel %vm2793, %v2788, %v2790
        %v2801 = vsel %vm2793, %v2790, %v2792
        %2810 = vst [vmem:[#allocation3 + $0x580] sm:$0xf0] %v2794
        %2811 = vst [vmem:[#allocation3 + $0x588] sm:$0xf0] %v2795
        %2812 = vst [vmem:[#allocation3 + $0x590] sm:$0xf0] %v2796
        %2813 = vst [vmem:[#allocation3 + $0x598] sm:$0xf0] %v2797
        %2814 = vst [vmem:[#allocation3 + $0x5a0] sm:$0xf0] %v2798
        %2815 = vst [vmem:[#allocation3 + $0x5a8] sm:$0xf0] %v2799
        %2816 = vst [vmem:[#allocation3 + $0x5b0] sm:$0xf0] %v2800
        %2817 = vst [vmem:[#allocation3 + $0x5b8] sm:$0xf0] %v2801
        %v2818 = vld [vmem:[%s203 + $0x8] sm:$0xff]
        %v2819 = vld [vmem:[%s203 + $0x10] sm:$0xff]
        %v2820 = vld [vmem:[%s203 + $0x18] sm:$0xff]
        %v2821 = vld [vmem:[%s203 + $0x20] sm:$0xff]
        %v2822 = vld [vmem:[%s203 + $0x28] sm:$0xf]
        %v2828 = vcombine.high %v2818, %v2818
        %v2829 = vcombine.high %v2819, %v2819
        %v2830 = vcombine.high %v2820, %v2820
        %v2831 = vcombine.high %v2821, %v2821
        %2832 = vrot.lane.b32.xlu0 %v2818, 107
        %v2833 = vpop.permute.xlu0 %2832
        %2834 = vrot.lane.b32.xlu0 %v2828, 107
        %v2835 = vpop.permute.xlu0 %2834
        %2836 = vrot.lane.b32.xlu0 %v2819, 107
        %v2837 = vpop.permute.xlu0 %2836
        %2838 = vrot.lane.b32.xlu0 %v2829, 107
        %v2839 = vpop.permute.xlu0 %2838
        %2840 = vrot.lane.b32.xlu0 %v2820, 107
        %v2841 = vpop.permute.xlu0 %2840
        %2842 = vrot.lane.b32.xlu0 %v2830, 107
        %v2843 = vpop.permute.xlu0 %2842
        %2844 = vrot.lane.b32.xlu0 %v2821, 107
        %v2845 = vpop.permute.xlu0 %2844
        %2846 = vrot.lane.b32.xlu0 %v2831, 107
        %v2847 = vpop.permute.xlu0 %2846
        %2848 = vrot.lane.b32.xlu0 %v2822, 107
        %v2849 = vpop.permute.xlu0 %2848
        %vm2850 = vcmask 875520
        %v2851 = vsel %vm2850, %v2833, %v2835
        %v2852 = vsel %vm2850, %v2835, %v2837
        %v2853 = vsel %vm2850, %v2837, %v2839
        %v2854 = vsel %vm2850, %v2839, %v2841
        %v2855 = vsel %vm2850, %v2841, %v2843
        %v2856 = vsel %vm2850, %v2843, %v2845
        %v2857 = vsel %vm2850, %v2845, %v2847
        %v2858 = vsel %vm2850, %v2847, %v2849
        %2867 = vst [vmem:[#allocation3 + $0x5c0] sm:$0xf] %v2851
        %2868 = vst [vmem:[#allocation3 + $0x5c8] sm:$0xf] %v2852
        %2869 = vst [vmem:[#allocation3 + $0x5d0] sm:$0xf] %v2853
        %2870 = vst [vmem:[#allocation3 + $0x5d8] sm:$0xf] %v2854
        %2871 = vst [vmem:[#allocation3 + $0x5e0] sm:$0xf] %v2855
        %2872 = vst [vmem:[#allocation3 + $0x5e8] sm:$0xf] %v2856
        %2873 = vst [vmem:[#allocation3 + $0x5f0] sm:$0xf] %v2857
        %2874 = vst [vmem:[#allocation3 + $0x5f8] sm:$0xf] %v2858
        %v2875 = vld [vmem:[%s203 + $0x8] sm:$0xff]
        %v2876 = vld [vmem:[%s203 + $0x10] sm:$0xff]
        %v2877 = vld [vmem:[%s203 + $0x18] sm:$0xff]
        %v2878 = vld [vmem:[%s203 + $0x20] sm:$0xff]
        %v2879 = vld [vmem:[%s203 + $0x28] sm:$0xf]
        %v2885 = vcombine.low %v2875, %v2875
        %v2886 = vcombine.low %v2876, %v2876
        %v2887 = vcombine.low %v2877, %v2877
        %v2888 = vcombine.low %v2878, %v2878
        %v2889 = vcombine.low %v2879, %v2879
        %2890 = vrot.lane.b32.xlu0 %v2885, 106
        %v2891 = vpop.permute.xlu0 %2890
        %2892 = vrot.lane.b32.xlu0 %v2875, 106
        %v2893 = vpop.permute.xlu0 %2892
        %2894 = vrot.lane.b32.xlu0 %v2886, 106
        %v2895 = vpop.permute.xlu0 %2894
        %2896 = vrot.lane.b32.xlu0 %v2876, 106
        %v2897 = vpop.permute.xlu0 %2896
        %2898 = vrot.lane.b32.xlu0 %v2887, 106
        %v2899 = vpop.permute.xlu0 %2898
        %2900 = vrot.lane.b32.xlu0 %v2877, 106
        %v2901 = vpop.permute.xlu0 %2900
        %2902 = vrot.lane.b32.xlu0 %v2888, 106
        %v2903 = vpop.permute.xlu0 %2902
        %2904 = vrot.lane.b32.xlu0 %v2878, 106
        %v2905 = vpop.permute.xlu0 %2904
        %2906 = vrot.lane.b32.xlu0 %v2889, 106
        %v2907 = vpop.permute.xlu0 %2906
        %v2908 = vsel %vm700, %v2891, %v2893
        %v2909 = vsel %vm700, %v2893, %v2895
        %v2910 = vsel %vm700, %v2895, %v2897
        %v2911 = vsel %vm700, %v2897, %v2899
        %v2912 = vsel %vm700, %v2899, %v2901
        %v2913 = vsel %vm700, %v2901, %v2903
        %v2914 = vsel %vm700, %v2903, %v2905
        %v2915 = vsel %vm700, %v2905, %v2907
        %2924 = vst [vmem:[#allocation3 + $0x5c0] sm:$0xf0] %v2908
        %2925 = vst [vmem:[#allocation3 + $0x5c8] sm:$0xf0] %v2909
        %2926 = vst [vmem:[#allocation3 + $0x5d0] sm:$0xf0] %v2910
        %2927 = vst [vmem:[#allocation3 + $0x5d8] sm:$0xf0] %v2911
        %2928 = vst [vmem:[#allocation3 + $0x5e0] sm:$0xf0] %v2912
        %2929 = vst [vmem:[#allocation3 + $0x5e8] sm:$0xf0] %v2913
        %2930 = vst [vmem:[#allocation3 + $0x5f0] sm:$0xf0] %v2914
        %2931 = vst [vmem:[#allocation3 + $0x5f8] sm:$0xf0] %v2915
        %v2932 = vld [vmem:[%s203 + $0x8] sm:$0xff]
        %v2933 = vld [vmem:[%s203 + $0x10] sm:$0xff]
        %v2934 = vld [vmem:[%s203 + $0x18] sm:$0xff]
        %v2935 = vld [vmem:[%s203 + $0x20] sm:$0xff]
        %v2936 = vld [vmem:[%s203 + $0x28] sm:$0xf]
        %v2942 = vcombine.high %v2932, %v2932
        %v2943 = vcombine.high %v2933, %v2933
        %v2944 = vcombine.high %v2934, %v2934
        %v2945 = vcombine.high %v2935, %v2935
        %2946 = vrot.lane.b32.xlu0 %v2932, 21
        %v2947 = vpop.permute.xlu0 %2946
        %2948 = vrot.lane.b32.xlu0 %v2942, 21
        %v2949 = vpop.permute.xlu0 %2948
        %2950 = vrot.lane.b32.xlu0 %v2933, 21
        %v2951 = vpop.permute.xlu0 %2950
        %2952 = vrot.lane.b32.xlu0 %v2943, 21
        %v2953 = vpop.permute.xlu0 %2952
        %2954 = vrot.lane.b32.xlu0 %v2934, 21
        %v2955 = vpop.permute.xlu0 %2954
        %2956 = vrot.lane.b32.xlu0 %v2944, 21
        %v2957 = vpop.permute.xlu0 %2956
        %2958 = vrot.lane.b32.xlu0 %v2935, 21
        %v2959 = vpop.permute.xlu0 %2958
        %2960 = vrot.lane.b32.xlu0 %v2945, 21
        %v2961 = vpop.permute.xlu0 %2960
        %2962 = vrot.lane.b32.xlu0 %v2936, 21
        %v2963 = vpop.permute.xlu0 %2962
        %vm2964 = vcmask 171008
        %v2965 = vsel %vm2964, %v2947, %v2949
        %v2966 = vsel %vm2964, %v2949, %v2951
        %v2967 = vsel %vm2964, %v2951, %v2953
        %v2968 = vsel %vm2964, %v2953, %v2955
        %v2969 = vsel %vm2964, %v2955, %v2957
        %v2970 = vsel %vm2964, %v2957, %v2959
        %v2971 = vsel %vm2964, %v2959, %v2961
        %v2972 = vsel %vm2964, %v2961, %v2963
        %2981 = vst [vmem:[#allocation3 + $0x600] sm:$0xf] %v2965
        %2982 = vst [vmem:[#allocation3 + $0x608] sm:$0xf] %v2966
        %2983 = vst [vmem:[#allocation3 + $0x610] sm:$0xf] %v2967
        %2984 = vst [vmem:[#allocation3 + $0x618] sm:$0xf] %v2968
        %2985 = vst [vmem:[#allocation3 + $0x620] sm:$0xf] %v2969
        %2986 = vst [vmem:[#allocation3 + $0x628] sm:$0xf] %v2970
        %2987 = vst [vmem:[#allocation3 + $0x630] sm:$0xf] %v2971
        %2988 = vst [vmem:[#allocation3 + $0x638] sm:$0xf] %v2972
        %v2989 = vld [vmem:[%s203 + $0x8] sm:$0xff]
        %v2990 = vld [vmem:[%s203 + $0x10] sm:$0xff]
        %v2991 = vld [vmem:[%s203 + $0x18] sm:$0xff]
        %v2992 = vld [vmem:[%s203 + $0x20] sm:$0xff]
        %v2993 = vld [vmem:[%s203 + $0x28] sm:$0xf]
        %v2999 = vcombine.low %v2989, %v2989
        %v3000 = vcombine.low %v2990, %v2990
        %v3001 = vcombine.low %v2991, %v2991
        %v3002 = vcombine.low %v2992, %v2992
        %v3003 = vcombine.low %v2993, %v2993
        %3004 = vrot.lane.b32.xlu0 %v2999, 20
        %v3005 = vpop.permute.xlu0 %3004
        %3006 = vrot.lane.b32.xlu0 %v2989, 20
        %v3007 = vpop.permute.xlu0 %3006
        %3008 = vrot.lane.b32.xlu0 %v3000, 20
        %v3009 = vpop.permute.xlu0 %3008
        %3010 = vrot.lane.b32.xlu0 %v2990, 20
        %v3011 = vpop.permute.xlu0 %3010
        %3012 = vrot.lane.b32.xlu0 %v3001, 20
        %v3013 = vpop.permute.xlu0 %3012
        %3014 = vrot.lane.b32.xlu0 %v2991, 20
        %v3015 = vpop.permute.xlu0 %3014
        %3016 = vrot.lane.b32.xlu0 %v3002, 20
        %v3017 = vpop.permute.xlu0 %3016
        %3018 = vrot.lane.b32.xlu0 %v2992, 20
        %v3019 = vpop.permute.xlu0 %3018
        %3020 = vrot.lane.b32.xlu0 %v3003, 20
        %v3021 = vpop.permute.xlu0 %3020
        %vm3022 = vcmask 162816
        %v3023 = vsel %vm3022, %v3005, %v3007
        %v3024 = vsel %vm3022, %v3007, %v3009
        %v3025 = vsel %vm3022, %v3009, %v3011
        %v3026 = vsel %vm3022, %v3011, %v3013
        %v3027 = vsel %vm3022, %v3013, %v3015
        %v3028 = vsel %vm3022, %v3015, %v3017
        %v3029 = vsel %vm3022, %v3017, %v3019
        %v3030 = vsel %vm3022, %v3019, %v3021
        %3039 = vst [vmem:[#allocation3 + $0x600] sm:$0xf0] %v3023
        %3040 = vst [vmem:[#allocation3 + $0x608] sm:$0xf0] %v3024
        %3041 = vst [vmem:[#allocation3 + $0x610] sm:$0xf0] %v3025
        %3042 = vst [vmem:[#allocation3 + $0x618] sm:$0xf0] %v3026
        %3043 = vst [vmem:[#allocation3 + $0x620] sm:$0xf0] %v3027
        %3044 = vst [vmem:[#allocation3 + $0x628] sm:$0xf0] %v3028
        %3045 = vst [vmem:[#allocation3 + $0x630] sm:$0xf0] %v3029
        %3046 = vst [vmem:[#allocation3 + $0x638] sm:$0xf0] %v3030
        %v3047 = vld [vmem:[%s203 + $0x8] sm:$0xff]
        %v3048 = vld [vmem:[%s203 + $0x10] sm:$0xff]
        %v3049 = vld [vmem:[%s203 + $0x18] sm:$0xff]
        %v3050 = vld [vmem:[%s203 + $0x20] sm:$0xff]
        %v3051 = vld [vmem:[%s203 + $0x28] sm:$0xf]
        %v3057 = vcombine.high %v3047, %v3047
        %v3058 = vcombine.high %v3048, %v3048
        %v3059 = vcombine.high %v3049, %v3049
        %v3060 = vcombine.high %v3050, %v3050
        %3061 = vrot.lane.b32.xlu0 %v3047, 19
        %v3062 = vpop.permute.xlu0 %3061
        %3063 = vrot.lane.b32.xlu0 %v3057, 19
        %v3064 = vpop.permute.xlu0 %3063
        %3065 = vrot.lane.b32.xlu0 %v3048, 19
        %v3066 = vpop.permute.xlu0 %3065
        %3067 = vrot.lane.b32.xlu0 %v3058, 19
        %v3068 = vpop.permute.xlu0 %3067
        %3069 = vrot.lane.b32.xlu0 %v3049, 19
        %v3070 = vpop.permute.xlu0 %3069
        %3071 = vrot.lane.b32.xlu0 %v3059, 19
        %v3072 = vpop.permute.xlu0 %3071
        %3073 = vrot.lane.b32.xlu0 %v3050, 19
        %v3074 = vpop.permute.xlu0 %3073
        %3075 = vrot.lane.b32.xlu0 %v3060, 19
        %v3076 = vpop.permute.xlu0 %3075
        %3077 = vrot.lane.b32.xlu0 %v3051, 19
        %v3078 = vpop.permute.xlu0 %3077
        %vm3079 = vcmask 154624
        %v3080 = vsel %vm3079, %v3062, %v3064
        %v3081 = vsel %vm3079, %v3064, %v3066
        %v3082 = vsel %vm3079, %v3066, %v3068
        %v3083 = vsel %vm3079, %v3068, %v3070
        %v3084 = vsel %vm3079, %v3070, %v3072
        %v3085 = vsel %vm3079, %v3072, %v3074
        %v3086 = vsel %vm3079, %v3074, %v3076
        %v3087 = vsel %vm3079, %v3076, %v3078
        %3096 = vst [vmem:[#allocation3 + $0x640] sm:$0xf] %v3080
        %3097 = vst [vmem:[#allocation3 + $0x648] sm:$0xf] %v3081
        %3098 = vst [vmem:[#allocation3 + $0x650] sm:$0xf] %v3082
        %3099 = vst [vmem:[#allocation3 + $0x658] sm:$0xf] %v3083
        %3100 = vst [vmem:[#allocation3 + $0x660] sm:$0xf] %v3084
        %3101 = vst [vmem:[#allocation3 + $0x668] sm:$0xf] %v3085
        %3102 = vst [vmem:[#allocation3 + $0x670] sm:$0xf] %v3086
        %3103 = vst [vmem:[#allocation3 + $0x678] sm:$0xf] %v3087
        %v3104 = vld [vmem:[%s203 + $0x8] sm:$0xff]
        %v3105 = vld [vmem:[%s203 + $0x10] sm:$0xff]
        %v3106 = vld [vmem:[%s203 + $0x18] sm:$0xff]
        %v3107 = vld [vmem:[%s203 + $0x20] sm:$0xff]
        %v3108 = vld [vmem:[%s203 + $0x28] sm:$0xf]
        %v3114 = vcombine.low %v3104, %v3104
        %v3115 = vcombine.low %v3105, %v3105
        %v3116 = vcombine.low %v3106, %v3106
        %v3117 = vcombine.low %v3107, %v3107
        %v3118 = vcombine.low %v3108, %v3108
        %3119 = vrot.lane.b32.xlu0 %v3114, 18
        %v3120 = vpop.permute.xlu0 %3119
        %3121 = vrot.lane.b32.xlu0 %v3104, 18
        %v3122 = vpop.permute.xlu0 %3121
        %3123 = vrot.lane.b32.xlu0 %v3115, 18
        %v3124 = vpop.permute.xlu0 %3123
        %3125 = vrot.lane.b32.xlu0 %v3105, 18
        %v3126 = vpop.permute.xlu0 %3125
        %3127 = vrot.lane.b32.xlu0 %v3116, 18
        %v3128 = vpop.permute.xlu0 %3127
        %3129 = vrot.lane.b32.xlu0 %v3106, 18
        %v3130 = vpop.permute.xlu0 %3129
        %3131 = vrot.lane.b32.xlu0 %v3117, 18
        %v3132 = vpop.permute.xlu0 %3131
        %3133 = vrot.lane.b32.xlu0 %v3107, 18
        %v3134 = vpop.permute.xlu0 %3133
        %3135 = vrot.lane.b32.xlu0 %v3118, 18
        %v3136 = vpop.permute.xlu0 %3135
        %vm3137 = vcmask 146432
        %v3138 = vsel %vm3137, %v3120, %v3122
        %v3139 = vsel %vm3137, %v3122, %v3124
        %v3140 = vsel %vm3137, %v3124, %v3126
        %v3141 = vsel %vm3137, %v3126, %v3128
        %v3142 = vsel %vm3137, %v3128, %v3130
        %v3143 = vsel %vm3137, %v3130, %v3132
        %v3144 = vsel %vm3137, %v3132, %v3134
        %v3145 = vsel %vm3137, %v3134, %v3136
        %3154 = vst [vmem:[#allocation3 + $0x640] sm:$0xf0] %v3138
        %3155 = vst [vmem:[#allocation3 + $0x648] sm:$0xf0] %v3139
        %3156 = vst [vmem:[#allocation3 + $0x650] sm:$0xf0] %v3140
        %3157 = vst [vmem:[#allocation3 + $0x658] sm:$0xf0] %v3141
        %3158 = vst [vmem:[#allocation3 + $0x660] sm:$0xf0] %v3142
        %3159 = vst [vmem:[#allocation3 + $0x668] sm:$0xf0] %v3143
        %3160 = vst [vmem:[#allocation3 + $0x670] sm:$0xf0] %v3144
        %3161 = vst [vmem:[#allocation3 + $0x678] sm:$0xf0] %v3145
        %v3162 = vld [vmem:[%s203 + $0x8] sm:$0xff]
        %v3163 = vld [vmem:[%s203 + $0x10] sm:$0xff]
        %v3164 = vld [vmem:[%s203 + $0x18] sm:$0xff]
        %v3165 = vld [vmem:[%s203 + $0x20] sm:$0xff]
        %v3166 = vld [vmem:[%s203 + $0x28] sm:$0xf]
        %v3172 = vcombine.high %v3162, %v3162
        %v3173 = vcombine.high %v3163, %v3163
        %v3174 = vcombine.high %v3164, %v3164
        %v3175 = vcombine.high %v3165, %v3165
        %3176 = vrot.lane.b32.xlu0 %v3162, 10
        %v3177 = vpop.permute.xlu0 %3176
        %3178 = vrot.lane.b32.xlu0 %v3172, 10
        %v3179 = vpop.permute.xlu0 %3178
        %3180 = vrot.lane.b32.xlu0 %v3163, 10
        %v3181 = vpop.permute.xlu0 %3180
        %3182 = vrot.lane.b32.xlu0 %v3173, 10
        %v3183 = vpop.permute.xlu0 %3182
        %3184 = vrot.lane.b32.xlu0 %v3164, 10
        %v3185 = vpop.permute.xlu0 %3184
        %3186 = vrot.lane.b32.xlu0 %v3174, 10
        %v3187 = vpop.permute.xlu0 %3186
        %3188 = vrot.lane.b32.xlu0 %v3165, 10
        %v3189 = vpop.permute.xlu0 %3188
        %3190 = vrot.lane.b32.xlu0 %v3175, 10
        %v3191 = vpop.permute.xlu0 %3190
        %3192 = vrot.lane.b32.xlu0 %v3166, 10
        %v3193 = vpop.permute.xlu0 %3192
        %vm3194 = vcmask 80896
        %v3195 = vsel %vm3194, %v3177, %v3179
        %v3196 = vsel %vm3194, %v3179, %v3181
        %v3197 = vsel %vm3194, %v3181, %v3183
        %v3198 = vsel %vm3194, %v3183, %v3185
        %v3199 = vsel %vm3194, %v3185, %v3187
        %v3200 = vsel %vm3194, %v3187, %v3189
        %v3201 = vsel %vm3194, %v3189, %v3191
        %v3202 = vsel %vm3194, %v3191, %v3193
        %3211 = vst [vmem:[#allocation3 + $0x680] sm:$0xf] %v3195
        %3212 = vst [vmem:[#allocation3 + $0x688] sm:$0xf] %v3196
        %3213 = vst [vmem:[#allocation3 + $0x690] sm:$0xf] %v3197
        %3214 = vst [vmem:[#allocation3 + $0x698] sm:$0xf] %v3198
        %3215 = vst [vmem:[#allocation3 + $0x6a0] sm:$0xf] %v3199
        %3216 = vst [vmem:[#allocation3 + $0x6a8] sm:$0xf] %v3200
        %3217 = vst [vmem:[#allocation3 + $0x6b0] sm:$0xf] %v3201
        %3218 = vst [vmem:[#allocation3 + $0x6b8] sm:$0xf] %v3202
        %v3219 = vld [vmem:[%s203 + $0x8] sm:$0xff]
        %v3220 = vld [vmem:[%s203 + $0x10] sm:$0xff]
        %v3221 = vld [vmem:[%s203 + $0x18] sm:$0xff]
        %v3222 = vld [vmem:[%s203 + $0x20] sm:$0xff]
        %v3223 = vld [vmem:[%s203 + $0x28] sm:$0xf]
        %v3229 = vcombine.low %v3219, %v3219
        %v3230 = vcombine.low %v3220, %v3220
        %v3231 = vcombine.low %v3221, %v3221
        %v3232 = vcombine.low %v3222, %v3222
        %v3233 = vcombine.low %v3223, %v3223
        %3234 = vrot.lane.b32.xlu0 %v3229, 9
        %v3235 = vpop.permute.xlu0 %3234
        %3236 = vrot.lane.b32.xlu0 %v3219, 9
        %v3237 = vpop.permute.xlu0 %3236
        %3238 = vrot.lane.b32.xlu0 %v3230, 9
        %v3239 = vpop.permute.xlu0 %3238
        %3240 = vrot.lane.b32.xlu0 %v3220, 9
        %v3241 = vpop.permute.xlu0 %3240
        %3242 = vrot.lane.b32.xlu0 %v3231, 9
        %v3243 = vpop.permute.xlu0 %3242
        %3244 = vrot.lane.b32.xlu0 %v3221, 9
        %v3245 = vpop.permute.xlu0 %3244
        %3246 = vrot.lane.b32.xlu0 %v3232, 9
        %v3247 = vpop.permute.xlu0 %3246
        %3248 = vrot.lane.b32.xlu0 %v3222, 9
        %v3249 = vpop.permute.xlu0 %3248
        %3250 = vrot.lane.b32.xlu0 %v3233, 9
        %v3251 = vpop.permute.xlu0 %3250
        %vm3252 = vcmask 72704
        %v3253 = vsel %vm3252, %v3235, %v3237
        %v3254 = vsel %vm3252, %v3237, %v3239
        %v3255 = vsel %vm3252, %v3239, %v3241
        %v3256 = vsel %vm3252, %v3241, %v3243
        %v3257 = vsel %vm3252, %v3243, %v3245
        %v3258 = vsel %vm3252, %v3245, %v3247
        %v3259 = vsel %vm3252, %v3247, %v3249
        %v3260 = vsel %vm3252, %v3249, %v3251
        %3269 = vst [vmem:[#allocation3 + $0x680] sm:$0xf0] %v3253
        %3270 = vst [vmem:[#allocation3 + $0x688] sm:$0xf0] %v3254
        %3271 = vst [vmem:[#allocation3 + $0x690] sm:$0xf0] %v3255
        %3272 = vst [vmem:[#allocation3 + $0x698] sm:$0xf0] %v3256
        %3273 = vst [vmem:[#allocation3 + $0x6a0] sm:$0xf0] %v3257
        %3274 = vst [vmem:[#allocation3 + $0x6a8] sm:$0xf0] %v3258
        %3275 = vst [vmem:[#allocation3 + $0x6b0] sm:$0xf0] %v3259
        %3276 = vst [vmem:[#allocation3 + $0x6b8] sm:$0xf0] %v3260
        %v3277 = vld [vmem:[%s203 + $0x8] sm:$0xff]
        %v3278 = vld [vmem:[%s203 + $0x10] sm:$0xff]
        %v3279 = vld [vmem:[%s203 + $0x18] sm:$0xff]
        %v3280 = vld [vmem:[%s203 + $0x20] sm:$0xff]
        %v3281 = vld [vmem:[%s203 + $0x28] sm:$0xf]
        %v3287 = vcombine.high %v3277, %v3277
        %v3288 = vcombine.high %v3278, %v3278
        %v3289 = vcombine.high %v3279, %v3279
        %v3290 = vcombine.high %v3280, %v3280
        %3291 = vrot.lane.b32.xlu0 %v3277, 8
        %v3292 = vpop.permute.xlu0 %3291
        %3293 = vrot.lane.b32.xlu0 %v3287, 8
        %v3294 = vpop.permute.xlu0 %3293
        %3295 = vrot.lane.b32.xlu0 %v3278, 8
        %v3296 = vpop.permute.xlu0 %3295
        %3297 = vrot.lane.b32.xlu0 %v3288, 8
        %v3298 = vpop.permute.xlu0 %3297
        %3299 = vrot.lane.b32.xlu0 %v3279, 8
        %v3300 = vpop.permute.xlu0 %3299
        %3301 = vrot.lane.b32.xlu0 %v3289, 8
        %v3302 = vpop.permute.xlu0 %3301
        %3303 = vrot.lane.b32.xlu0 %v3280, 8
        %v3304 = vpop.permute.xlu0 %3303
        %3305 = vrot.lane.b32.xlu0 %v3290, 8
        %v3306 = vpop.permute.xlu0 %3305
        %3307 = vrot.lane.b32.xlu0 %v3281, 8
        %v3308 = vpop.permute.xlu0 %3307
        %vm3309 = vcmask 64512
        %v3310 = vsel %vm3309, %v3292, %v3294
        %v3311 = vsel %vm3309, %v3294, %v3296
        %v3312 = vsel %vm3309, %v3296, %v3298
        %v3313 = vsel %vm3309, %v3298, %v3300
        %v3314 = vsel %vm3309, %v3300, %v3302
        %v3315 = vsel %vm3309, %v3302, %v3304
        %v3316 = vsel %vm3309, %v3304, %v3306
        %v3317 = vsel %vm3309, %v3306, %v3308
        %3326 = vst [vmem:[#allocation3 + $0x6c0] sm:$0xf] %v3310
        %3327 = vst [vmem:[#allocation3 + $0x6c8] sm:$0xf] %v3311
        %3328 = vst [vmem:[#allocation3 + $0x6d0] sm:$0xf] %v3312
        %3329 = vst [vmem:[#allocation3 + $0x6d8] sm:$0xf] %v3313
        %3330 = vst [vmem:[#allocation3 + $0x6e0] sm:$0xf] %v3314
        %3331 = vst [vmem:[#allocation3 + $0x6e8] sm:$0xf] %v3315
        %3332 = vst [vmem:[#allocation3 + $0x6f0] sm:$0xf] %v3316
        %3333 = vst [vmem:[#allocation3 + $0x6f8] sm:$0xf] %v3317
        %v3334 = vld [vmem:[%s203 + $0x8] sm:$0xff]
        %v3335 = vld [vmem:[%s203 + $0x10] sm:$0xff]
        %v3336 = vld [vmem:[%s203 + $0x18] sm:$0xff]
        %v3337 = vld [vmem:[%s203 + $0x20] sm:$0xff]
        %v3338 = vld [vmem:[%s203 + $0x28] sm:$0xf]
        %v3344 = vcombine.low %v3334, %v3334
        %v3345 = vcombine.low %v3335, %v3335
        %v3346 = vcombine.low %v3336, %v3336
        %v3347 = vcombine.low %v3337, %v3337
        %v3348 = vcombine.low %v3338, %v3338
        %3349 = vrot.lane.b32.xlu0 %v3344, 7
        %v3350 = vpop.permute.xlu0 %3349
        %3351 = vrot.lane.b32.xlu0 %v3334, 7
        %v3352 = vpop.permute.xlu0 %3351
        %3353 = vrot.lane.b32.xlu0 %v3345, 7
        %v3354 = vpop.permute.xlu0 %3353
        %3355 = vrot.lane.b32.xlu0 %v3335, 7
        %v3356 = vpop.permute.xlu0 %3355
        %3357 = vrot.lane.b32.xlu0 %v3346, 7
        %v3358 = vpop.permute.xlu0 %3357
        %3359 = vrot.lane.b32.xlu0 %v3336, 7
        %v3360 = vpop.permute.xlu0 %3359
        %3361 = vrot.lane.b32.xlu0 %v3347, 7
        %v3362 = vpop.permute.xlu0 %3361
        %3363 = vrot.lane.b32.xlu0 %v3337, 7
        %v3364 = vpop.permute.xlu0 %3363
        %3365 = vrot.lane.b32.xlu0 %v3348, 7
        %v3366 = vpop.permute.xlu0 %3365
        %v3367 = vsel %vm1160, %v3350, %v3352
        %v3368 = vsel %vm1160, %v3352, %v3354
        %v3369 = vsel %vm1160, %v3354, %v3356
        %v3370 = vsel %vm1160, %v3356, %v3358
        %v3371 = vsel %vm1160, %v3358, %v3360
        %v3372 = vsel %vm1160, %v3360, %v3362
        %v3373 = vsel %vm1160, %v3362, %v3364
        %v3374 = vsel %vm1160, %v3364, %v3366
        %3383 = vst [vmem:[#allocation3 + $0x6c0] sm:$0xf0] %v3367
        %3384 = vst [vmem:[#allocation3 + $0x6c8] sm:$0xf0] %v3368
        %3385 = vst [vmem:[#allocation3 + $0x6d0] sm:$0xf0] %v3369
        %3386 = vst [vmem:[#allocation3 + $0x6d8] sm:$0xf0] %v3370
        %3387 = vst [vmem:[#allocation3 + $0x6e0] sm:$0xf0] %v3371
        %3388 = vst [vmem:[#allocation3 + $0x6e8] sm:$0xf0] %v3372
        %3389 = vst [vmem:[#allocation3 + $0x6f0] sm:$0xf0] %v3373
        %3390 = vst [vmem:[#allocation3 + $0x6f8] sm:$0xf0] %v3374
        %v3391 = vld [vmem:[%s203 + $0xc] sm:$0xff]
        %v3392 = vld [vmem:[%s203 + $0x14] sm:$0xff]
        %v3393 = vld [vmem:[%s203 + $0x1c] sm:$0xff]
        %v3394 = vld [vmem:[%s203 + $0x24] sm:$0xff]
        %v3395 = vld [vmem:[%s203 + $0x2c] sm:$0xf]
        %v3401 = vcombine.high %v3391, %v3391
        %v3402 = vcombine.high %v3392, %v3392
        %v3403 = vcombine.high %v3393, %v3393
        %v3404 = vcombine.high %v3394, %v3394
        %3405 = vrot.lane.b32.xlu0 %v3391, 127
        %v3406 = vpop.permute.xlu0 %3405
        %3407 = vrot.lane.b32.xlu0 %v3401, 127
        %v3408 = vpop.permute.xlu0 %3407
        %3409 = vrot.lane.b32.xlu0 %v3392, 127
        %v3410 = vpop.permute.xlu0 %3409
        %3411 = vrot.lane.b32.xlu0 %v3402, 127
        %v3412 = vpop.permute.xlu0 %3411
        %3413 = vrot.lane.b32.xlu0 %v3393, 127
        %v3414 = vpop.permute.xlu0 %3413
        %3415 = vrot.lane.b32.xlu0 %v3403, 127
        %v3416 = vpop.permute.xlu0 %3415
        %3417 = vrot.lane.b32.xlu0 %v3394, 127
        %v3418 = vpop.permute.xlu0 %3417
        %3419 = vrot.lane.b32.xlu0 %v3404, 127
        %v3420 = vpop.permute.xlu0 %3419
        %3421 = vrot.lane.b32.xlu0 %v3395, 127
        %v3422 = vpop.permute.xlu0 %3421
        %v3423 = vsel %vm298, %v3406, %v3408
        %v3424 = vsel %vm298, %v3408, %v3410
        %v3425 = vsel %vm298, %v3410, %v3412
        %v3426 = vsel %vm298, %v3412, %v3414
        %v3427 = vsel %vm298, %v3414, %v3416
        %v3428 = vsel %vm298, %v3416, %v3418
        %v3429 = vsel %vm298, %v3418, %v3420
        %v3430 = vsel %vm298, %v3420, %v3422
        %3439 = vst [vmem:[#allocation3 + $0x700] sm:$0xf] %v3423
        %3440 = vst [vmem:[#allocation3 + $0x708] sm:$0xf] %v3424
        %3441 = vst [vmem:[#allocation3 + $0x710] sm:$0xf] %v3425
        %3442 = vst [vmem:[#allocation3 + $0x718] sm:$0xf] %v3426
        %3443 = vst [vmem:[#allocation3 + $0x720] sm:$0xf] %v3427
        %3444 = vst [vmem:[#allocation3 + $0x728] sm:$0xf] %v3428
        %3445 = vst [vmem:[#allocation3 + $0x730] sm:$0xf] %v3429
        %3446 = vst [vmem:[#allocation3 + $0x738] sm:$0xf] %v3430
        %v3447 = vld [vmem:[%s203 + $0xc] sm:$0xff]
        %v3448 = vld [vmem:[%s203 + $0x14] sm:$0xff]
        %v3449 = vld [vmem:[%s203 + $0x1c] sm:$0xff]
        %v3450 = vld [vmem:[%s203 + $0x24] sm:$0xff]
        %v3451 = vld [vmem:[%s203 + $0x2c] sm:$0xf]
        %v3457 = vcombine.low %v3447, %v3447
        %v3458 = vcombine.low %v3448, %v3448
        %v3459 = vcombine.low %v3449, %v3449
        %v3460 = vcombine.low %v3450, %v3450
        %v3461 = vcombine.low %v3451, %v3451
        %3462 = vrot.lane.b32.xlu0 %v3457, 126
        %v3463 = vpop.permute.xlu0 %3462
        %3464 = vrot.lane.b32.xlu0 %v3447, 126
        %v3465 = vpop.permute.xlu0 %3464
        %3466 = vrot.lane.b32.xlu0 %v3458, 126
        %v3467 = vpop.permute.xlu0 %3466
        %3468 = vrot.lane.b32.xlu0 %v3448, 126
        %v3469 = vpop.permute.xlu0 %3468
        %3470 = vrot.lane.b32.xlu0 %v3459, 126
        %v3471 = vpop.permute.xlu0 %3470
        %3472 = vrot.lane.b32.xlu0 %v3449, 126
        %v3473 = vpop.permute.xlu0 %3472
        %3474 = vrot.lane.b32.xlu0 %v3460, 126
        %v3475 = vpop.permute.xlu0 %3474
        %3476 = vrot.lane.b32.xlu0 %v3450, 126
        %v3477 = vpop.permute.xlu0 %3476
        %3478 = vrot.lane.b32.xlu0 %v3461, 126
        %v3479 = vpop.permute.xlu0 %3478
        %v3480 = vsel %vm355, %v3463, %v3465
        %v3481 = vsel %vm355, %v3465, %v3467
        %v3482 = vsel %vm355, %v3467, %v3469
        %v3483 = vsel %vm355, %v3469, %v3471
        %v3484 = vsel %vm355, %v3471, %v3473
        %v3485 = vsel %vm355, %v3473, %v3475
        %v3486 = vsel %vm355, %v3475, %v3477
        %v3487 = vsel %vm355, %v3477, %v3479
        %3496 = vst [vmem:[#allocation3 + $0x700] sm:$0xf0] %v3480
        %3497 = vst [vmem:[#allocation3 + $0x708] sm:$0xf0] %v3481
        %3498 = vst [vmem:[#allocation3 + $0x710] sm:$0xf0] %v3482
        %3499 = vst [vmem:[#allocation3 + $0x718] sm:$0xf0] %v3483
        %3500 = vst [vmem:[#allocation3 + $0x720] sm:$0xf0] %v3484
        %3501 = vst [vmem:[#allocation3 + $0x728] sm:$0xf0] %v3485
        %3502 = vst [vmem:[#allocation3 + $0x730] sm:$0xf0] %v3486
        %3503 = vst [vmem:[#allocation3 + $0x738] sm:$0xf0] %v3487
        %v3504 = vld [vmem:[%s203 + $0xc] sm:$0xff]
        %v3505 = vld [vmem:[%s203 + $0x14] sm:$0xff]
        %v3506 = vld [vmem:[%s203 + $0x1c] sm:$0xff]
        %v3507 = vld [vmem:[%s203 + $0x24] sm:$0xff]
        %v3508 = vld [vmem:[%s203 + $0x2c] sm:$0xf]
        %v3514 = vcombine.high %v3504, %v3504
        %v3515 = vcombine.high %v3505, %v3505
        %v3516 = vcombine.high %v3506, %v3506
        %v3517 = vcombine.high %v3507, %v3507
        %3518 = vrot.lane.b32.xlu0 %v3504, 125
        %v3519 = vpop.permute.xlu0 %3518
        %3520 = vrot.lane.b32.xlu0 %v3514, 125
        %v3521 = vpop.permute.xlu0 %3520
        %3522 = vrot.lane.b32.xlu0 %v3505, 125
        %v3523 = vpop.permute.xlu0 %3522
        %3524 = vrot.lane.b32.xlu0 %v3515, 125
        %v3525 = vpop.permute.xlu0 %3524
        %3526 = vrot.lane.b32.xlu0 %v3506, 125
        %v3527 = vpop.permute.xlu0 %3526
        %3528 = vrot.lane.b32.xlu0 %v3516, 125
        %v3529 = vpop.permute.xlu0 %3528
        %3530 = vrot.lane.b32.xlu0 %v3507, 125
        %v3531 = vpop.permute.xlu0 %3530
        %3532 = vrot.lane.b32.xlu0 %v3517, 125
        %v3533 = vpop.permute.xlu0 %3532
        %3534 = vrot.lane.b32.xlu0 %v3508, 125
        %v3535 = vpop.permute.xlu0 %3534
        %v3536 = vsel %vm413, %v3519, %v3521
        %v3537 = vsel %vm413, %v3521, %v3523
        %v3538 = vsel %vm413, %v3523, %v3525
        %v3539 = vsel %vm413, %v3525, %v3527
        %v3540 = vsel %vm413, %v3527, %v3529
        %v3541 = vsel %vm413, %v3529, %v3531
        %v3542 = vsel %vm413, %v3531, %v3533
        %v3543 = vsel %vm413, %v3533, %v3535
        %3552 = vst [vmem:[#allocation3 + $0x740] sm:$0xf] %v3536
        %3553 = vst [vmem:[#allocation3 + $0x748] sm:$0xf] %v3537
        %3554 = vst [vmem:[#allocation3 + $0x750] sm:$0xf] %v3538
        %3555 = vst [vmem:[#allocation3 + $0x758] sm:$0xf] %v3539
        %3556 = vst [vmem:[#allocation3 + $0x760] sm:$0xf] %v3540
        %3557 = vst [vmem:[#allocation3 + $0x768] sm:$0xf] %v3541
        %3558 = vst [vmem:[#allocation3 + $0x770] sm:$0xf] %v3542
        %3559 = vst [vmem:[#allocation3 + $0x778] sm:$0xf] %v3543
        %v3560 = vld [vmem:[%s203 + $0xc] sm:$0xff]
        %v3561 = vld [vmem:[%s203 + $0x14] sm:$0xff]
        %v3562 = vld [vmem:[%s203 + $0x1c] sm:$0xff]
        %v3563 = vld [vmem:[%s203 + $0x24] sm:$0xff]
        %v3564 = vld [vmem:[%s203 + $0x2c] sm:$0xf]
        %v3570 = vcombine.low %v3560, %v3560
        %v3571 = vcombine.low %v3561, %v3561
        %v3572 = vcombine.low %v3562, %v3562
        %v3573 = vcombine.low %v3563, %v3563
        %v3574 = vcombine.low %v3564, %v3564
        %3575 = vrot.lane.b32.xlu0 %v3570, 124
        %v3576 = vpop.permute.xlu0 %3575
        %3577 = vrot.lane.b32.xlu0 %v3560, 124
        %v3578 = vpop.permute.xlu0 %3577
        %3579 = vrot.lane.b32.xlu0 %v3571, 124
        %v3580 = vpop.permute.xlu0 %3579
        %3581 = vrot.lane.b32.xlu0 %v3561, 124
        %v3582 = vpop.permute.xlu0 %3581
        %3583 = vrot.lane.b32.xlu0 %v3572, 124
        %v3584 = vpop.permute.xlu0 %3583
        %3585 = vrot.lane.b32.xlu0 %v3562, 124
        %v3586 = vpop.permute.xlu0 %3585
        %3587 = vrot.lane.b32.xlu0 %v3573, 124
        %v3588 = vpop.permute.xlu0 %3587
        %3589 = vrot.lane.b32.xlu0 %v3563, 124
        %v3590 = vpop.permute.xlu0 %3589
        %3591 = vrot.lane.b32.xlu0 %v3574, 124
        %v3592 = vpop.permute.xlu0 %3591
        %v3593 = vsel %vm1390, %v3576, %v3578
        %v3594 = vsel %vm1390, %v3578, %v3580
        %v3595 = vsel %vm1390, %v3580, %v3582
        %v3596 = vsel %vm1390, %v3582, %v3584
        %v3597 = vsel %vm1390, %v3584, %v3586
        %v3598 = vsel %vm1390, %v3586, %v3588
        %v3599 = vsel %vm1390, %v3588, %v3590
        %v3600 = vsel %vm1390, %v3590, %v3592
        %3609 = vst [vmem:[#allocation3 + $0x740] sm:$0xf0] %v3593
        %3610 = vst [vmem:[#allocation3 + $0x748] sm:$0xf0] %v3594
        %3611 = vst [vmem:[#allocation3 + $0x750] sm:$0xf0] %v3595
        %3612 = vst [vmem:[#allocation3 + $0x758] sm:$0xf0] %v3596
        %3613 = vst [vmem:[#allocation3 + $0x760] sm:$0xf0] %v3597
        %3614 = vst [vmem:[#allocation3 + $0x768] sm:$0xf0] %v3598
        %3615 = vst [vmem:[#allocation3 + $0x770] sm:$0xf0] %v3599
        %3616 = vst [vmem:[#allocation3 + $0x778] sm:$0xf0] %v3600
        %v3617 = vld [vmem:[%s203 + $0xc] sm:$0xff]
        %v3618 = vld [vmem:[%s203 + $0x14] sm:$0xff]
        %v3619 = vld [vmem:[%s203 + $0x1c] sm:$0xff]
        %v3620 = vld [vmem:[%s203 + $0x24] sm:$0xff]
        %v3621 = vld [vmem:[%s203 + $0x2c] sm:$0xf]
        %v3627 = vcombine.high %v3617, %v3617
        %v3628 = vcombine.high %v3618, %v3618
        %v3629 = vcombine.high %v3619, %v3619
        %v3630 = vcombine.high %v3620, %v3620
        %3631 = vrot.lane.b32.xlu0 %v3617, 116
        %v3632 = vpop.permute.xlu0 %3631
        %3633 = vrot.lane.b32.xlu0 %v3627, 116
        %v3634 = vpop.permute.xlu0 %3633
        %3635 = vrot.lane.b32.xlu0 %v3618, 116
        %v3636 = vpop.permute.xlu0 %3635
        %3637 = vrot.lane.b32.xlu0 %v3628, 116
        %v3638 = vpop.permute.xlu0 %3637
        %3639 = vrot.lane.b32.xlu0 %v3619, 116
        %v3640 = vpop.permute.xlu0 %3639
        %3641 = vrot.lane.b32.xlu0 %v3629, 116
        %v3642 = vpop.permute.xlu0 %3641
        %3643 = vrot.lane.b32.xlu0 %v3620, 116
        %v3644 = vpop.permute.xlu0 %3643
        %3645 = vrot.lane.b32.xlu0 %v3630, 116
        %v3646 = vpop.permute.xlu0 %3645
        %3647 = vrot.lane.b32.xlu0 %v3621, 116
        %v3648 = vpop.permute.xlu0 %3647
        %v3649 = vsel %vm528, %v3632, %v3634
        %v3650 = vsel %vm528, %v3634, %v3636
        %v3651 = vsel %vm528, %v3636, %v3638
        %v3652 = vsel %vm528, %v3638, %v3640
        %v3653 = vsel %vm528, %v3640, %v3642
        %v3654 = vsel %vm528, %v3642, %v3644
        %v3655 = vsel %vm528, %v3644, %v3646
        %v3656 = vsel %vm528, %v3646, %v3648
        %3665 = vst [vmem:[#allocation3 + $0x780] sm:$0xf] %v3649
        %3666 = vst [vmem:[#allocation3 + $0x788] sm:$0xf] %v3650
        %3667 = vst [vmem:[#allocation3 + $0x790] sm:$0xf] %v3651
        %3668 = vst [vmem:[#allocation3 + $0x798] sm:$0xf] %v3652
        %3669 = vst [vmem:[#allocation3 + $0x7a0] sm:$0xf] %v3653
        %3670 = vst [vmem:[#allocation3 + $0x7a8] sm:$0xf] %v3654
        %3671 = vst [vmem:[#allocation3 + $0x7b0] sm:$0xf] %v3655
        %3672 = vst [vmem:[#allocation3 + $0x7b8] sm:$0xf] %v3656
        %v3673 = vld [vmem:[%s203 + $0xc] sm:$0xff]
        %v3674 = vld [vmem:[%s203 + $0x14] sm:$0xff]
        %v3675 = vld [vmem:[%s203 + $0x1c] sm:$0xff]
        %v3676 = vld [vmem:[%s203 + $0x24] sm:$0xff]
        %v3677 = vld [vmem:[%s203 + $0x2c] sm:$0xf]
        %v3683 = vcombine.low %v3673, %v3673
        %v3684 = vcombine.low %v3674, %v3674
        %v3685 = vcombine.low %v3675, %v3675
        %v3686 = vcombine.low %v3676, %v3676
        %v3687 = vcombine.low %v3677, %v3677
        %3688 = vrot.lane.b32.xlu0 %v3683, 115
        %v3689 = vpop.permute.xlu0 %3688
        %3690 = vrot.lane.b32.xlu0 %v3673, 115
        %v3691 = vpop.permute.xlu0 %3690
        %3692 = vrot.lane.b32.xlu0 %v3684, 115
        %v3693 = vpop.permute.xlu0 %3692
        %3694 = vrot.lane.b32.xlu0 %v3674, 115
        %v3695 = vpop.permute.xlu0 %3694
        %3696 = vrot.lane.b32.xlu0 %v3685, 115
        %v3697 = vpop.permute.xlu0 %3696
        %3698 = vrot.lane.b32.xlu0 %v3675, 115
        %v3699 = vpop.permute.xlu0 %3698
        %3700 = vrot.lane.b32.xlu0 %v3686, 115
        %v3701 = vpop.permute.xlu0 %3700
        %3702 = vrot.lane.b32.xlu0 %v3676, 115
        %v3703 = vpop.permute.xlu0 %3702
        %3704 = vrot.lane.b32.xlu0 %v3687, 115
        %v3705 = vpop.permute.xlu0 %3704
        %v3706 = vsel %vm585, %v3689, %v3691
        %v3707 = vsel %vm585, %v3691, %v3693
        %v3708 = vsel %vm585, %v3693, %v3695
        %v3709 = vsel %vm585, %v3695, %v3697
        %v3710 = vsel %vm585, %v3697, %v3699
        %v3711 = vsel %vm585, %v3699, %v3701
        %v3712 = vsel %vm585, %v3701, %v3703
        %v3713 = vsel %vm585, %v3703, %v3705
        %3722 = vst [vmem:[#allocation3 + $0x780] sm:$0xf0] %v3706
        %3723 = vst [vmem:[#allocation3 + $0x788] sm:$0xf0] %v3707
        %3724 = vst [vmem:[#allocation3 + $0x790] sm:$0xf0] %v3708
        %3725 = vst [vmem:[#allocation3 + $0x798] sm:$0xf0] %v3709
        %3726 = vst [vmem:[#allocation3 + $0x7a0] sm:$0xf0] %v3710
        %3727 = vst [vmem:[#allocation3 + $0x7a8] sm:$0xf0] %v3711
        %3728 = vst [vmem:[#allocation3 + $0x7b0] sm:$0xf0] %v3712
        %3729 = vst [vmem:[#allocation3 + $0x7b8] sm:$0xf0] %v3713
        %v3730 = vld [vmem:[%s203 + $0xc] sm:$0xff]
        %v3731 = vld [vmem:[%s203 + $0x14] sm:$0xff]
        %v3732 = vld [vmem:[%s203 + $0x1c] sm:$0xff]
        %v3733 = vld [vmem:[%s203 + $0x24] sm:$0xff]
        %v3734 = vld [vmem:[%s203 + $0x2c] sm:$0xf]
        %v3740 = vcombine.high %v3730, %v3730
        %v3741 = vcombine.high %v3731, %v3731
        %v3742 = vcombine.high %v3732, %v3732
        %v3743 = vcombine.high %v3733, %v3733
        %3744 = vrot.lane.b32.xlu0 %v3730, 114
        %v3745 = vpop.permute.xlu0 %3744
        %3746 = vrot.lane.b32.xlu0 %v3740, 114
        %v3747 = vpop.permute.xlu0 %3746
        %3748 = vrot.lane.b32.xlu0 %v3731, 114
        %v3749 = vpop.permute.xlu0 %3748
        %3750 = vrot.lane.b32.xlu0 %v3741, 114
        %v3751 = vpop.permute.xlu0 %3750
        %3752 = vrot.lane.b32.xlu0 %v3732, 114
        %v3753 = vpop.permute.xlu0 %3752
        %3754 = vrot.lane.b32.xlu0 %v3742, 114
        %v3755 = vpop.permute.xlu0 %3754
        %3756 = vrot.lane.b32.xlu0 %v3733, 114
        %v3757 = vpop.permute.xlu0 %3756
        %3758 = vrot.lane.b32.xlu0 %v3743, 114
        %v3759 = vpop.permute.xlu0 %3758
        %3760 = vrot.lane.b32.xlu0 %v3734, 114
        %v3761 = vpop.permute.xlu0 %3760
        %v3762 = vsel %vm643, %v3745, %v3747
        %v3763 = vsel %vm643, %v3747, %v3749
        %v3764 = vsel %vm643, %v3749, %v3751
        %v3765 = vsel %vm643, %v3751, %v3753
        %v3766 = vsel %vm643, %v3753, %v3755
        %v3767 = vsel %vm643, %v3755, %v3757
        %v3768 = vsel %vm643, %v3757, %v3759
        %v3769 = vsel %vm643, %v3759, %v3761
        %3778 = vst [vmem:[#allocation3 + $0x7c0] sm:$0xf] %v3762
        %3779 = vst [vmem:[#allocation3 + $0x7c8] sm:$0xf] %v3763
        %3780 = vst [vmem:[#allocation3 + $0x7d0] sm:$0xf] %v3764
        %3781 = vst [vmem:[#allocation3 + $0x7d8] sm:$0xf] %v3765
        %3782 = vst [vmem:[#allocation3 + $0x7e0] sm:$0xf] %v3766
        %3783 = vst [vmem:[#allocation3 + $0x7e8] sm:$0xf] %v3767
        %3784 = vst [vmem:[#allocation3 + $0x7f0] sm:$0xf] %v3768
        %3785 = vst [vmem:[#allocation3 + $0x7f8] sm:$0xf] %v3769
        %v3786 = vld [vmem:[%s203 + $0xc] sm:$0xff]
        %v3787 = vld [vmem:[%s203 + $0x14] sm:$0xff]
        %v3788 = vld [vmem:[%s203 + $0x1c] sm:$0xff]
        %v3789 = vld [vmem:[%s203 + $0x24] sm:$0xff]
        %v3790 = vld [vmem:[%s203 + $0x2c] sm:$0xf]
        %v3796 = vcombine.low %v3786, %v3786
        %v3797 = vcombine.low %v3787, %v3787
        %v3798 = vcombine.low %v3788, %v3788
        %v3799 = vcombine.low %v3789, %v3789
        %v3800 = vcombine.low %v3790, %v3790
        %3801 = vrot.lane.b32.xlu0 %v3796, 113
        %v3802 = vpop.permute.xlu0 %3801
        %3803 = vrot.lane.b32.xlu0 %v3786, 113
        %v3804 = vpop.permute.xlu0 %3803
        %3805 = vrot.lane.b32.xlu0 %v3797, 113
        %v3806 = vpop.permute.xlu0 %3805
        %3807 = vrot.lane.b32.xlu0 %v3787, 113
        %v3808 = vpop.permute.xlu0 %3807
        %3809 = vrot.lane.b32.xlu0 %v3798, 113
        %v3810 = vpop.permute.xlu0 %3809
        %3811 = vrot.lane.b32.xlu0 %v3788, 113
        %v3812 = vpop.permute.xlu0 %3811
        %3813 = vrot.lane.b32.xlu0 %v3799, 113
        %v3814 = vpop.permute.xlu0 %3813
        %3815 = vrot.lane.b32.xlu0 %v3789, 113
        %v3816 = vpop.permute.xlu0 %3815
        %3817 = vrot.lane.b32.xlu0 %v3800, 113
        %v3818 = vpop.permute.xlu0 %3817
        %v3819 = vsel %vm1620, %v3802, %v3804
        %v3820 = vsel %vm1620, %v3804, %v3806
        %v3821 = vsel %vm1620, %v3806, %v3808
        %v3822 = vsel %vm1620, %v3808, %v3810
        %v3823 = vsel %vm1620, %v3810, %v3812
        %v3824 = vsel %vm1620, %v3812, %v3814
        %v3825 = vsel %vm1620, %v3814, %v3816
        %v3826 = vsel %vm1620, %v3816, %v3818
        %3835 = vst [vmem:[#allocation3 + $0x7c0] sm:$0xf0] %v3819
        %3836 = vst [vmem:[#allocation3 + $0x7c8] sm:$0xf0] %v3820
        %3837 = vst [vmem:[#allocation3 + $0x7d0] sm:$0xf0] %v3821
        %3838 = vst [vmem:[#allocation3 + $0x7d8] sm:$0xf0] %v3822
        %3839 = vst [vmem:[#allocation3 + $0x7e0] sm:$0xf0] %v3823
        %3840 = vst [vmem:[#allocation3 + $0x7e8] sm:$0xf0] %v3824
        %3841 = vst [vmem:[#allocation3 + $0x7f0] sm:$0xf0] %v3825
        %3842 = vst [vmem:[#allocation3 + $0x7f8] sm:$0xf0] %v3826
        %v3843 = vld [vmem:[#allocation3] sm:$0xff]
        %v3844 = vld [vmem:[#allocation3 + $0x8] sm:$0xff]
        %v3845 = vld [vmem:[#allocation3 + $0x10] sm:$0xff]
        %v3846 = vld [vmem:[#allocation3 + $0x18] sm:$0xff]
        %v3847 = vld [vmem:[#allocation3 + $0x20] sm:$0xff]
        %v3848 = vld [vmem:[#allocation3 + $0x28] sm:$0xff]
        %v3849 = vld [vmem:[#allocation3 + $0x30] sm:$0xff]
        %v3850 = vld [vmem:[#allocation3 + $0x38] sm:$0xff]
        %v3851 = vld [vmem:[#allocation3 + $0x40] sm:$0xff]
        %v3852 = vld [vmem:[#allocation3 + $0x48] sm:$0xff]
        %v3853 = vld [vmem:[#allocation3 + $0x50] sm:$0xff]
        %v3854 = vld [vmem:[#allocation3 + $0x58] sm:$0xff]
        %v3855 = vld [vmem:[#allocation3 + $0x60] sm:$0xff]
        %v3856 = vld [vmem:[#allocation3 + $0x68] sm:$0xff]
        %v3857 = vld [vmem:[#allocation3 + $0x70] sm:$0xff]
        %v3858 = vld [vmem:[#allocation3 + $0x78] sm:$0xff]
        %v3859 = vld [vmem:[#allocation3 + $0x80] sm:$0xff]
        %v3860 = vld [vmem:[#allocation3 + $0x88] sm:$0xff]
        %v3861 = vld [vmem:[#allocation3 + $0x90] sm:$0xff]
        %v3862 = vld [vmem:[#allocation3 + $0x98] sm:$0xff]
        %v3863 = vld [vmem:[#allocation3 + $0xa0] sm:$0xff]
        %v3864 = vld [vmem:[#allocation3 + $0xa8] sm:$0xff]
        %v3865 = vld [vmem:[#allocation3 + $0xb0] sm:$0xff]
        %v3866 = vld [vmem:[#allocation3 + $0xb8] sm:$0xff]
        %v3867 = vld [vmem:[#allocation3 + $0xc0] sm:$0xff]
        %v3868 = vld [vmem:[#allocation3 + $0xc8] sm:$0xff]
        %v3869 = vld [vmem:[#allocation3 + $0xd0] sm:$0xff]
        %v3870 = vld [vmem:[#allocation3 + $0xd8] sm:$0xff]
        %v3871 = vld [vmem:[#allocation3 + $0xe0] sm:$0xff]
        %v3872 = vld [vmem:[#allocation3 + $0xe8] sm:$0xff]
        %v3873 = vld [vmem:[#allocation3 + $0xf0] sm:$0xff]
        %v3874 = vld [vmem:[#allocation3 + $0xf8] sm:$0xff]
        %v3875 = vld [vmem:[#allocation3 + $0x100] sm:$0xff]
        %v3876 = vld [vmem:[#allocation3 + $0x108] sm:$0xff]
        %v3877 = vld [vmem:[#allocation3 + $0x110] sm:$0xff]
        %v3878 = vld [vmem:[#allocation3 + $0x118] sm:$0xff]
        %v3879 = vld [vmem:[#allocation3 + $0x120] sm:$0xff]
        %v3880 = vld [vmem:[#allocation3 + $0x128] sm:$0xff]
        %v3881 = vld [vmem:[#allocation3 + $0x130] sm:$0xff]
        %v3882 = vld [vmem:[#allocation3 + $0x138] sm:$0xff]
        %v3883 = vld [vmem:[#allocation3 + $0x140] sm:$0xff]
        %v3884 = vld [vmem:[#allocation3 + $0x148] sm:$0xff]
        %v3885 = vld [vmem:[#allocation3 + $0x150] sm:$0xff]
        %v3886 = vld [vmem:[#allocation3 + $0x158] sm:$0xff]
        %v3887 = vld [vmem:[#allocation3 + $0x160] sm:$0xff]
        %v3888 = vld [vmem:[#allocation3 + $0x168] sm:$0xff]
        %v3889 = vld [vmem:[#allocation3 + $0x170] sm:$0xff]
        %v3890 = vld [vmem:[#allocation3 + $0x178] sm:$0xff]
        %v3891 = vld [vmem:[#allocation3 + $0x180] sm:$0xff]
        %v3892 = vld [vmem:[#allocation3 + $0x188] sm:$0xff]
        %v3893 = vld [vmem:[#allocation3 + $0x190] sm:$0xff]
        %v3894 = vld [vmem:[#allocation3 + $0x198] sm:$0xff]
        %v3895 = vld [vmem:[#allocation3 + $0x1a0] sm:$0xff]
        %v3896 = vld [vmem:[#allocation3 + $0x1a8] sm:$0xff]
        %v3897 = vld [vmem:[#allocation3 + $0x1b0] sm:$0xff]
        %v3898 = vld [vmem:[#allocation3 + $0x1b8] sm:$0xff]
        %v3899 = vld [vmem:[#allocation3 + $0x1c0] sm:$0xff]
        %v3900 = vld [vmem:[#allocation3 + $0x1c8] sm:$0xff]
        %v3901 = vld [vmem:[#allocation3 + $0x1d0] sm:$0xff]
        %v3902 = vld [vmem:[#allocation3 + $0x1d8] sm:$0xff]
        %v3903 = vld [vmem:[#allocation3 + $0x1e0] sm:$0xff]
        %v3904 = vld [vmem:[#allocation3 + $0x1e8] sm:$0xff]
        %v3905 = vld [vmem:[#allocation3 + $0x1f0] sm:$0xff]
        %v3906 = vld [vmem:[#allocation3 + $0x1f8] sm:$0xff]
        %v3907 = vld [vmem:[#allocation3 + $0x200] sm:$0xff]
        %v3908 = vld [vmem:[#allocation3 + $0x208] sm:$0xff]
        %v3909 = vld [vmem:[#allocation3 + $0x210] sm:$0xff]
        %v3910 = vld [vmem:[#allocation3 + $0x218] sm:$0xff]
        %v3911 = vld [vmem:[#allocation3 + $0x220] sm:$0xff]
        %v3912 = vld [vmem:[#allocation3 + $0x228] sm:$0xff]
        %v3913 = vld [vmem:[#allocation3 + $0x230] sm:$0xff]
        %v3914 = vld [vmem:[#allocation3 + $0x238] sm:$0xff]
        %v3915 = vld [vmem:[#allocation3 + $0x240] sm:$0xff]
        %v3916 = vld [vmem:[#allocation3 + $0x248] sm:$0xff]
        %v3917 = vld [vmem:[#allocation3 + $0x250] sm:$0xff]
        %v3918 = vld [vmem:[#allocation3 + $0x258] sm:$0xff]
        %v3919 = vld [vmem:[#allocation3 + $0x260] sm:$0xff]
        %v3920 = vld [vmem:[#allocation3 + $0x268] sm:$0xff]
        %v3921 = vld [vmem:[#allocation3 + $0x270] sm:$0xff]
        %v3922 = vld [vmem:[#allocation3 + $0x278] sm:$0xff]
        %v3923 = vld [vmem:[#allocation3 + $0x280] sm:$0xff]
        %v3924 = vld [vmem:[#allocation3 + $0x288] sm:$0xff]
        %v3925 = vld [vmem:[#allocation3 + $0x290] sm:$0xff]
        %v3926 = vld [vmem:[#allocation3 + $0x298] sm:$0xff]
        %v3927 = vld [vmem:[#allocation3 + $0x2a0] sm:$0xff]
        %v3928 = vld [vmem:[#allocation3 + $0x2a8] sm:$0xff]
        %v3929 = vld [vmem:[#allocation3 + $0x2b0] sm:$0xff]
        %v3930 = vld [vmem:[#allocation3 + $0x2b8] sm:$0xff]
        %v3931 = vld [vmem:[#allocation3 + $0x2c0] sm:$0xff]
        %v3932 = vld [vmem:[#allocation3 + $0x2c8] sm:$0xff]
        %v3933 = vld [vmem:[#allocation3 + $0x2d0] sm:$0xff]
        %v3934 = vld [vmem:[#allocation3 + $0x2d8] sm:$0xff]
        %v3935 = vld [vmem:[#allocation3 + $0x2e0] sm:$0xff]
        %v3936 = vld [vmem:[#allocation3 + $0x2e8] sm:$0xff]
        %v3937 = vld [vmem:[#allocation3 + $0x2f0] sm:$0xff]
        %v3938 = vld [vmem:[#allocation3 + $0x2f8] sm:$0xff]
        %v3939 = vld [vmem:[#allocation3 + $0x300] sm:$0xff]
        %v3940 = vld [vmem:[#allocation3 + $0x308] sm:$0xff]
        %v3941 = vld [vmem:[#allocation3 + $0x310] sm:$0xff]
        %v3942 = vld [vmem:[#allocation3 + $0x318] sm:$0xff]
        %v3943 = vld [vmem:[#allocation3 + $0x320] sm:$0xff]
        %v3944 = vld [vmem:[#allocation3 + $0x328] sm:$0xff]
        %v3945 = vld [vmem:[#allocation3 + $0x330] sm:$0xff]
        %v3946 = vld [vmem:[#allocation3 + $0x338] sm:$0xff]
        %v3947 = vld [vmem:[#allocation3 + $0x340] sm:$0xff]
        %v3948 = vld [vmem:[#allocation3 + $0x348] sm:$0xff]
        %v3949 = vld [vmem:[#allocation3 + $0x350] sm:$0xff]
        %v3950 = vld [vmem:[#allocation3 + $0x358] sm:$0xff]
        %v3951 = vld [vmem:[#allocation3 + $0x360] sm:$0xff]
        %v3952 = vld [vmem:[#allocation3 + $0x368] sm:$0xff]
        %v3953 = vld [vmem:[#allocation3 + $0x370] sm:$0xff]
        %v3954 = vld [vmem:[#allocation3 + $0x378] sm:$0xff]
        %v3955 = vld [vmem:[#allocation3 + $0x380] sm:$0xff]
        %v3956 = vld [vmem:[#allocation3 + $0x388] sm:$0xff]
        %v3957 = vld [vmem:[#allocation3 + $0x390] sm:$0xff]
        %v3958 = vld [vmem:[#allocation3 + $0x398] sm:$0xff]
        %v3959 = vld [vmem:[#allocation3 + $0x3a0] sm:$0xff]
        %v3960 = vld [vmem:[#allocation3 + $0x3a8] sm:$0xff]
        %v3961 = vld [vmem:[#allocation3 + $0x3b0] sm:$0xff]
        %v3962 = vld [vmem:[#allocation3 + $0x3b8] sm:$0xff]
        %v3963 = vld [vmem:[#allocation3 + $0x3c0] sm:$0xff]
        %v3964 = vld [vmem:[#allocation3 + $0x3c8] sm:$0xff]
        %v3965 = vld [vmem:[#allocation3 + $0x3d0] sm:$0xff]
        %v3966 = vld [vmem:[#allocation3 + $0x3d8] sm:$0xff]
        %v3967 = vld [vmem:[#allocation3 + $0x3e0] sm:$0xff]
        %v3968 = vld [vmem:[#allocation3 + $0x3e8] sm:$0xff]
        %v3969 = vld [vmem:[#allocation3 + $0x3f0] sm:$0xff]
        %v3970 = vld [vmem:[#allocation3 + $0x3f8] sm:$0xff]
        %v3971 = vld [vmem:[#allocation3 + $0x400] sm:$0xff]
        %v3972 = vld [vmem:[#allocation3 + $0x408] sm:$0xff]
        %v3973 = vld [vmem:[#allocation3 + $0x410] sm:$0xff]
        %v3974 = vld [vmem:[#allocation3 + $0x418] sm:$0xff]
        %v3975 = vld [vmem:[#allocation3 + $0x420] sm:$0xff]
        %v3976 = vld [vmem:[#allocation3 + $0x428] sm:$0xff]
        %v3977 = vld [vmem:[#allocation3 + $0x430] sm:$0xff]
        %v3978 = vld [vmem:[#allocation3 + $0x438] sm:$0xff]
        %v3979 = vld [vmem:[#allocation3 + $0x440] sm:$0xff]
        %v3980 = vld [vmem:[#allocation3 + $0x448] sm:$0xff]
        %v3981 = vld [vmem:[#allocation3 + $0x450] sm:$0xff]
        %v3982 = vld [vmem:[#allocation3 + $0x458] sm:$0xff]
        %v3983 = vld [vmem:[#allocation3 + $0x460] sm:$0xff]
        %v3984 = vld [vmem:[#allocation3 + $0x468] sm:$0xff]
        %v3985 = vld [vmem:[#allocation3 + $0x470] sm:$0xff]
        %v3986 = vld [vmem:[#allocation3 + $0x478] sm:$0xff]
        %v3987 = vld [vmem:[#allocation3 + $0x480] sm:$0xff]
        %v3988 = vld [vmem:[#allocation3 + $0x488] sm:$0xff]
        %v3989 = vld [vmem:[#allocation3 + $0x490] sm:$0xff]
        %v3990 = vld [vmem:[#allocation3 + $0x498] sm:$0xff]
        %v3991 = vld [vmem:[#allocation3 + $0x4a0] sm:$0xff]
        %v3992 = vld [vmem:[#allocation3 + $0x4a8] sm:$0xff]
        %v3993 = vld [vmem:[#allocation3 + $0x4b0] sm:$0xff]
        %v3994 = vld [vmem:[#allocation3 + $0x4b8] sm:$0xff]
        %v3995 = vld [vmem:[#allocation3 + $0x4c0] sm:$0xff]
        %v3996 = vld [vmem:[#allocation3 + $0x4c8] sm:$0xff]
        %v3997 = vld [vmem:[#allocation3 + $0x4d0] sm:$0xff]
        %v3998 = vld [vmem:[#allocation3 + $0x4d8] sm:$0xff]
        %v3999 = vld [vmem:[#allocation3 + $0x4e0] sm:$0xff]
        %v4000 = vld [vmem:[#allocation3 + $0x4e8] sm:$0xff]
        %v4001 = vld [vmem:[#allocation3 + $0x4f0] sm:$0xff]
        %v4002 = vld [vmem:[#allocation3 + $0x4f8] sm:$0xff]
        %v4003 = vld [vmem:[#allocation3 + $0x500] sm:$0xff]
        %v4004 = vld [vmem:[#allocation3 + $0x508] sm:$0xff]
        %v4005 = vld [vmem:[#allocation3 + $0x510] sm:$0xff]
        %v4006 = vld [vmem:[#allocation3 + $0x518] sm:$0xff]
        %v4007 = vld [vmem:[#allocation3 + $0x520] sm:$0xff]
        %v4008 = vld [vmem:[#allocation3 + $0x528] sm:$0xff]
        %v4009 = vld [vmem:[#allocation3 + $0x530] sm:$0xff]
        %v4010 = vld [vmem:[#allocation3 + $0x538] sm:$0xff]
        %v4011 = vld [vmem:[#allocation3 + $0x540] sm:$0xff]
        %v4012 = vld [vmem:[#allocation3 + $0x548] sm:$0xff]
        %v4013 = vld [vmem:[#allocation3 + $0x550] sm:$0xff]
        %v4014 = vld [vmem:[#allocation3 + $0x558] sm:$0xff]
        %v4015 = vld [vmem:[#allocation3 + $0x560] sm:$0xff]
        %v4016 = vld [vmem:[#allocation3 + $0x568] sm:$0xff]
        %v4017 = vld [vmem:[#allocation3 + $0x570] sm:$0xff]
        %v4018 = vld [vmem:[#allocation3 + $0x578] sm:$0xff]
        %v4019 = vld [vmem:[#allocation3 + $0x580] sm:$0xff]
        %v4020 = vld [vmem:[#allocation3 + $0x588] sm:$0xff]
        %v4021 = vld [vmem:[#allocation3 + $0x590] sm:$0xff]
        %v4022 = vld [vmem:[#allocation3 + $0x598] sm:$0xff]
        %v4023 = vld [vmem:[#allocation3 + $0x5a0] sm:$0xff]
        %v4024 = vld [vmem:[#allocation3 + $0x5a8] sm:$0xff]
        %v4025 = vld [vmem:[#allocation3 + $0x5b0] sm:$0xff]
        %v4026 = vld [vmem:[#allocation3 + $0x5b8] sm:$0xff]
        %v4027 = vld [vmem:[#allocation3 + $0x5c0] sm:$0xff]
        %v4028 = vld [vmem:[#allocation3 + $0x5c8] sm:$0xff]
        %v4029 = vld [vmem:[#allocation3 + $0x5d0] sm:$0xff]
        %v4030 = vld [vmem:[#allocation3 + $0x5d8] sm:$0xff]
        %v4031 = vld [vmem:[#allocation3 + $0x5e0] sm:$0xff]
        %v4032 = vld [vmem:[#allocation3 + $0x5e8] sm:$0xff]
        %v4033 = vld [vmem:[#allocation3 + $0x5f0] sm:$0xff]
        %v4034 = vld [vmem:[#allocation3 + $0x5f8] sm:$0xff]
        %v4035 = vld [vmem:[#allocation3 + $0x600] sm:$0xff]
        %v4036 = vld [vmem:[#allocation3 + $0x608] sm:$0xff]
        %v4037 = vld [vmem:[#allocation3 + $0x610] sm:$0xff]
        %v4038 = vld [vmem:[#allocation3 + $0x618] sm:$0xff]
        %v4039 = vld [vmem:[#allocation3 + $0x620] sm:$0xff]
        %v4040 = vld [vmem:[#allocation3 + $0x628] sm:$0xff]
        %v4041 = vld [vmem:[#allocation3 + $0x630] sm:$0xff]
        %v4042 = vld [vmem:[#allocation3 + $0x638] sm:$0xff]
        %v4043 = vld [vmem:[#allocation3 + $0x640] sm:$0xff]
        %v4044 = vld [vmem:[#allocation3 + $0x648] sm:$0xff]
        %v4045 = vld [vmem:[#allocation3 + $0x650] sm:$0xff]
        %v4046 = vld [vmem:[#allocation3 + $0x658] sm:$0xff]
        %v4047 = vld [vmem:[#allocation3 + $0x660] sm:$0xff]
        %v4048 = vld [vmem:[#allocation3 + $0x668] sm:$0xff]
        %v4049 = vld [vmem:[#allocation3 + $0x670] sm:$0xff]
        %v4050 = vld [vmem:[#allocation3 + $0x678] sm:$0xff]
        %v4051 = vld [vmem:[#allocation3 + $0x680] sm:$0xff]
        %v4052 = vld [vmem:[#allocation3 + $0x688] sm:$0xff]
        %v4053 = vld [vmem:[#allocation3 + $0x690] sm:$0xff]
        %v4054 = vld [vmem:[#allocation3 + $0x698] sm:$0xff]
        %v4055 = vld [vmem:[#allocation3 + $0x6a0] sm:$0xff]
        %v4056 = vld [vmem:[#allocation3 + $0x6a8] sm:$0xff]
        %v4057 = vld [vmem:[#allocation3 + $0x6b0] sm:$0xff]
        %v4058 = vld [vmem:[#allocation3 + $0x6b8] sm:$0xff]
        %v4059 = vld [vmem:[#allocation3 + $0x6c0] sm:$0xff]
        %v4060 = vld [vmem:[#allocation3 + $0x6c8] sm:$0xff]
        %v4061 = vld [vmem:[#allocation3 + $0x6d0] sm:$0xff]
        %v4062 = vld [vmem:[#allocation3 + $0x6d8] sm:$0xff]
        %v4063 = vld [vmem:[#allocation3 + $0x6e0] sm:$0xff]
        %v4064 = vld [vmem:[#allocation3 + $0x6e8] sm:$0xff]
        %v4065 = vld [vmem:[#allocation3 + $0x6f0] sm:$0xff]
        %v4066 = vld [vmem:[#allocation3 + $0x6f8] sm:$0xff]
        %v4067 = vld [vmem:[#allocation3 + $0x700] sm:$0xff]
        %v4068 = vld [vmem:[#allocation3 + $0x708] sm:$0xff]
        %v4069 = vld [vmem:[#allocation3 + $0x710] sm:$0xff]
        %v4070 = vld [vmem:[#allocation3 + $0x718] sm:$0xff]
        %v4071 = vld [vmem:[#allocation3 + $0x720] sm:$0xff]
        %v4072 = vld [vmem:[#allocation3 + $0x728] sm:$0xff]
        %v4073 = vld [vmem:[#allocation3 + $0x730] sm:$0xff]
        %v4074 = vld [vmem:[#allocation3 + $0x738] sm:$0xff]
        %v4075 = vld [vmem:[#allocation3 + $0x740] sm:$0xff]
        %v4076 = vld [vmem:[#allocation3 + $0x748] sm:$0xff]
        %v4077 = vld [vmem:[#allocation3 + $0x750] sm:$0xff]
        %v4078 = vld [vmem:[#allocation3 + $0x758] sm:$0xff]
        %v4079 = vld [vmem:[#allocation3 + $0x760] sm:$0xff]
        %v4080 = vld [vmem:[#allocation3 + $0x768] sm:$0xff]
        %v4081 = vld [vmem:[#allocation3 + $0x770] sm:$0xff]
        %v4082 = vld [vmem:[#allocation3 + $0x778] sm:$0xff]
        %v4083 = vld [vmem:[#allocation3 + $0x780] sm:$0xff]
        %v4084 = vld [vmem:[#allocation3 + $0x788] sm:$0xff]
        %v4085 = vld [vmem:[#allocation3 + $0x790] sm:$0xff]
        %v4086 = vld [vmem:[#allocation3 + $0x798] sm:$0xff]
        %v4087 = vld [vmem:[#allocation3 + $0x7a0] sm:$0xff]
        %v4088 = vld [vmem:[#allocation3 + $0x7a8] sm:$0xff]
        %v4089 = vld [vmem:[#allocation3 + $0x7b0] sm:$0xff]
        %v4090 = vld [vmem:[#allocation3 + $0x7b8] sm:$0xff]
        %v4091 = vld [vmem:[#allocation3 + $0x7c0] sm:$0xff]
        %v4092 = vld [vmem:[#allocation3 + $0x7c8] sm:$0xff]
        %v4093 = vld [vmem:[#allocation3 + $0x7d0] sm:$0xff]
        %v4094 = vld [vmem:[#allocation3 + $0x7d8] sm:$0xff]
        %v4095 = vld [vmem:[#allocation3 + $0x7e0] sm:$0xff]
        %v4096 = vld [vmem:[#allocation3 + $0x7e8] sm:$0xff]
        %v4097 = vld [vmem:[#allocation3 + $0x7f0] sm:$0xff]
        %v4098 = vld [vmem:[#allocation3 + $0x7f8] sm:$0xff]
        %4100 = vset.pattern.permute.xlu0 0
        %4101 = vperm.xlu0 %4100, %v240
        %v4102 = vpop.permute.xlu0 %4101
        %4104 = vmatprep.subr.mxu0 %v3844
        %4105 = vmatpush1.msra.mxu0 %v3843
        %4106 = vmatprep.subr.mxu0 %v3852
        %4107 = vmatpush1.msra.mxu0 %v3851
        %4108 = vmatprep.subr.mxu0 %v3860
        %4109 = vmatpush1.msra.mxu0 %v3859
        %4110 = vmatprep.subr.mxu0 %v3868
        %4111 = vmatpush1.msra.mxu0 %v3867
        %4112 = vmatprep.subr.mxu0 %v3876
        %4113 = vmatpush1.msra.mxu0 %v3875
        %4114 = vmatprep.subr.mxu0 %v3884
        %4115 = vmatpush1.msra.mxu0 %v3883
        %4116 = vmatprep.subr.mxu0 %v3892
        %4117 = vmatpush1.msra.mxu0 %v3891
        %4118 = vmatprep.subr.mxu0 %v3900
        %4119 = vmatpush1.msra.mxu0 %v3899
        %4120 = vmatprep.subr.mxu0 %v3908
        %4121 = vmatpush1.msra.mxu0 %v3907
        %4122 = vmatprep.subr.mxu0 %v3916
        %4123 = vmatpush1.msra.mxu0 %v3915
        %4124 = vmatprep.subr.mxu0 %v3924
        %4125 = vmatpush1.msra.mxu0 %v3923
        %4126 = vmatprep.subr.mxu0 %v3932
        %4127 = vmatpush1.msra.mxu0 %v3931
        %4128 = vmatprep.subr.mxu0 %v3940
        %4129 = vmatpush1.msra.mxu0 %v3939
        %4130 = vmatprep.subr.mxu0 %v3948
        %4131 = vmatpush1.msra.mxu0 %v3947
        %4132 = vmatprep.subr.mxu0 %v3956
        %4133 = vmatpush1.msra.mxu0 %v3955
        %4134 = vmatprep.subr.mxu0 %v3964
        %4135 = vmatpush1.msra.mxu0 %v3963
        %4136 = vmatprep.subr.mxu0 %v3972
        %4137 = vmatpush1.msra.mxu0 %v3971
        %4138 = vmatprep.subr.mxu0 %v3980
        %4139 = vmatpush1.msra.mxu0 %v3979
        %4140 = vmatprep.subr.mxu0 %v3988
        %4141 = vmatpush1.msra.mxu0 %v3987
        %4142 = vmatprep.subr.mxu0 %v3996
        %4143 = vmatpush1.msra.mxu0 %v3995
        %4144 = vmatprep.subr.mxu0 %v4004
        %4145 = vmatpush1.msra.mxu0 %v4003
        %4146 = vmatprep.subr.mxu0 %v4012
        %4147 = vmatpush1.msra.mxu0 %v4011
        %4148 = vmatprep.subr.mxu0 %v4020
        %4149 = vmatpush1.msra.mxu0 %v4019
        %4150 = vmatprep.subr.mxu0 %v4028
        %4151 = vmatpush1.msra.mxu0 %v4027
        %4152 = vmatprep.subr.mxu0 %v4036
        %4153 = vmatpush1.msra.mxu0 %v4035
        %4154 = vmatprep.subr.mxu0 %v4044
        %4155 = vmatpush1.msra.mxu0 %v4043
        %4156 = vmatprep.subr.mxu0 %v4052
        %4157 = vmatpush1.msra.mxu0 %v4051
        %4158 = vmatprep.subr.mxu0 %v4060
        %4159 = vmatpush1.msra.mxu0 %v4059
        %4160 = vmatprep.subr.mxu0 %v4068
        %4161 = vmatpush1.msra.mxu0 %v4067
        %4162 = vmatprep.subr.mxu0 %v4076
        %4163 = vmatpush1.msra.mxu0 %v4075
        %4164 = vmatprep.subr.mxu0 %v4084
        %4165 = vmatpush1.msra.mxu0 %v4083
        %4166 = vmatprep.subr.mxu0 %v4092
        %4167 = vmatpush1.msra.mxu0 %v4091
        %4168 = vmatprep.mubr.f32.mxu0 %v239
        %4169 = vmatmul.mubr.f32.gmra.mrb[0].mxu0 %v238
        %v4170 = vpop.f32.mrb[0].mxu0
        %v4171 = vadd.f32 %v4102, %v4170
        %v4172 = vpop.f32.mrb[0].mxu0
        %v4173 = vadd.f32 %v4102, %v4172
        %4174 = vdwg.mxu0
        %4175 = vmatprep.subr.mxu0 %v3846
        %4176 = vmatpush1.msra.mxu0 %v3845
        %4177 = vmatprep.subr.mxu0 %v3854
        %4178 = vmatpush1.msra.mxu0 %v3853
        %4179 = vmatprep.subr.mxu0 %v3862
        %4180 = vmatpush1.msra.mxu0 %v3861
        %4181 = vmatprep.subr.mxu0 %v3870
        %4182 = vmatpush1.msra.mxu0 %v3869
        %4183 = vmatprep.subr.mxu0 %v3878
        %4184 = vmatpush1.msra.mxu0 %v3877
        %4185 = vmatprep.subr.mxu0 %v3886
        %4186 = vmatpush1.msra.mxu0 %v3885
        %4187 = vmatprep.subr.mxu0 %v3894
        %4188 = vmatpush1.msra.mxu0 %v3893
        %4189 = vmatprep.subr.mxu0 %v3902
        %4190 = vmatpush1.msra.mxu0 %v3901
        %4191 = vmatprep.subr.mxu0 %v3910
        %4192 = vmatpush1.msra.mxu0 %v3909
        %4193 = vmatprep.subr.mxu0 %v3918
        %4194 = vmatpush1.msra.mxu0 %v3917
        %4195 = vmatprep.subr.mxu0 %v3926
        %4196 = vmatpush1.msra.mxu0 %v3925
        %4197 = vmatprep.subr.mxu0 %v3934
        %4198 = vmatpush1.msra.mxu0 %v3933
        %4199 = vmatprep.subr.mxu0 %v3942
        %4200 = vmatpush1.msra.mxu0 %v3941
        %4201 = vmatprep.subr.mxu0 %v3950
        %4202 = vmatpush1.msra.mxu0 %v3949
        %4203 = vmatprep.subr.mxu0 %v3958
        %4204 = vmatpush1.msra.mxu0 %v3957
        %4205 = vmatprep.subr.mxu0 %v3966
        %4206 = vmatpush1.msra.mxu0 %v3965
        %4207 = vmatprep.subr.mxu0 %v3974
        %4208 = vmatpush1.msra.mxu0 %v3973
        %4209 = vmatprep.subr.mxu0 %v3982
        %4210 = vmatpush1.msra.mxu0 %v3981
        %4211 = vmatprep.subr.mxu0 %v3990
        %4212 = vmatpush1.msra.mxu0 %v3989
        %4213 = vmatprep.subr.mxu0 %v3998
        %4214 = vmatpush1.msra.mxu0 %v3997
        %4215 = vmatprep.subr.mxu0 %v4006
        %4216 = vmatpush1.msra.mxu0 %v4005
        %4217 = vmatprep.subr.mxu0 %v4014
        %4218 = vmatpush1.msra.mxu0 %v4013
        %4219 = vmatprep.subr.mxu0 %v4022
        %4220 = vmatpush1.msra.mxu0 %v4021
        %4221 = vmatprep.subr.mxu0 %v4030
        %4222 = vmatpush1.msra.mxu0 %v4029
        %4223 = vmatprep.subr.mxu0 %v4038
        %4224 = vmatpush1.msra.mxu0 %v4037
        %4225 = vmatprep.subr.mxu0 %v4046
        %4226 = vmatpush1.msra.mxu0 %v4045
        %4227 = vmatprep.subr.mxu0 %v4054
        %4228 = vmatpush1.msra.mxu0 %v4053
        %4229 = vmatprep.subr.mxu0 %v4062
        %4230 = vmatpush1.msra.mxu0 %v4061
        %4231 = vmatprep.subr.mxu0 %v4070
        %4232 = vmatpush1.msra.mxu0 %v4069
        %4233 = vmatprep.subr.mxu0 %v4078
        %4234 = vmatpush1.msra.mxu0 %v4077
        %4235 = vmatprep.subr.mxu0 %v4086
        %4236 = vmatpush1.msra.mxu0 %v4085
        %4237 = vmatprep.subr.mxu0 %v4094
        %4238 = vmatpush1.msra.mxu0 %v4093
        %4239 = vmatprep.mubr.f32.mxu0 %v239
        %4240 = vmatmul.mubr.f32.gmra.mrb[0].mxu0 %v238
        %v4241 = vpop.f32.mrb[0].mxu0
        %v4242 = vadd.f32 %v4102, %v4241
        %v4243 = vpop.f32.mrb[0].mxu0
        %v4244 = vadd.f32 %v4102, %v4243
        %4245 = vdwg.mxu0
        %4246 = vmatprep.subr.mxu0 %v3848
        %4247 = vmatpush1.msra.mxu0 %v3847
        %4248 = vmatprep.subr.mxu0 %v3856
        %4249 = vmatpush1.msra.mxu0 %v3855
        %4250 = vmatprep.subr.mxu0 %v3864
        %4251 = vmatpush1.msra.mxu0 %v3863
        %4252 = vmatprep.subr.mxu0 %v3872
        %4253 = vmatpush1.msra.mxu0 %v3871
        %4254 = vmatprep.subr.mxu0 %v3880
        %4255 = vmatpush1.msra.mxu0 %v3879
        %4256 = vmatprep.subr.mxu0 %v3888
        %4257 = vmatpush1.msra.mxu0 %v3887
        %4258 = vmatprep.subr.mxu0 %v3896
        %4259 = vmatpush1.msra.mxu0 %v3895
        %4260 = vmatprep.subr.mxu0 %v3904
        %4261 = vmatpush1.msra.mxu0 %v3903
        %4262 = vmatprep.subr.mxu0 %v3912
        %4263 = vmatpush1.msra.mxu0 %v3911
        %4264 = vmatprep.subr.mxu0 %v3920
        %4265 = vmatpush1.msra.mxu0 %v3919
        %4266 = vmatprep.subr.mxu0 %v3928
        %4267 = vmatpush1.msra.mxu0 %v3927
        %4268 = vmatprep.subr.mxu0 %v3936
        %4269 = vmatpush1.msra.mxu0 %v3935
        %4270 = vmatprep.subr.mxu0 %v3944
        %4271 = vmatpush1.msra.mxu0 %v3943
        %4272 = vmatprep.subr.mxu0 %v3952
        %4273 = vmatpush1.msra.mxu0 %v3951
        %4274 = vmatprep.subr.mxu0 %v3960
        %4275 = vmatpush1.msra.mxu0 %v3959
        %4276 = vmatprep.subr.mxu0 %v3968
        %4277 = vmatpush1.msra.mxu0 %v3967
        %4278 = vmatprep.subr.mxu0 %v3976
        %4279 = vmatpush1.msra.mxu0 %v3975
        %4280 = vmatprep.subr.mxu0 %v3984
        %4281 = vmatpush1.msra.mxu0 %v3983
        %4282 = vmatprep.subr.mxu0 %v3992
        %4283 = vmatpush1.msra.mxu0 %v3991
        %4284 = vmatprep.subr.mxu0 %v4000
        %4285 = vmatpush1.msra.mxu0 %v3999
        %4286 = vmatprep.subr.mxu0 %v4008
        %4287 = vmatpush1.msra.mxu0 %v4007
        %4288 = vmatprep.subr.mxu0 %v4016
        %4289 = vmatpush1.msra.mxu0 %v4015
        %4290 = vmatprep.subr.mxu0 %v4024
        %4291 = vmatpush1.msra.mxu0 %v4023
        %4292 = vmatprep.subr.mxu0 %v4032
        %4293 = vmatpush1.msra.mxu0 %v4031
        %4294 = vmatprep.subr.mxu0 %v4040
        %4295 = vmatpush1.msra.mxu0 %v4039
        %4296 = vmatprep.subr.mxu0 %v4048
        %4297 = vmatpush1.msra.mxu0 %v4047
        %4298 = vmatprep.subr.mxu0 %v4056
        %4299 = vmatpush1.msra.mxu0 %v4055
        %4300 = vmatprep.subr.mxu0 %v4064
        %4301 = vmatpush1.msra.mxu0 %v4063
        %4302 = vmatprep.subr.mxu0 %v4072
        %4303 = vmatpush1.msra.mxu0 %v4071
        %4304 = vmatprep.subr.mxu0 %v4080
        %4305 = vmatpush1.msra.mxu0 %v4079
        %4306 = vmatprep.subr.mxu0 %v4088
        %4307 = vmatpush1.msra.mxu0 %v4087
        %4308 = vmatprep.subr.mxu0 %v4096
        %4309 = vmatpush1.msra.mxu0 %v4095
        %4310 = vmatprep.mubr.f32.mxu0 %v239
        %4311 = vmatmul.mubr.f32.gmra.mrb[0].mxu0 %v238
        %v4312 = vpop.f32.mrb[0].mxu0
        %v4313 = vadd.f32 %v4102, %v4312
        %v4314 = vpop.f32.mrb[0].mxu0
        %v4315 = vadd.f32 %v4102, %v4314
        %4316 = vdwg.mxu0
        %4317 = vmatprep.subr.mxu0 %v3850
        %4318 = vmatpush1.msra.mxu0 %v3849
        %4319 = vmatprep.subr.mxu0 %v3858
        %4320 = vmatpush1.msra.mxu0 %v3857
        %4321 = vmatprep.subr.mxu0 %v3866
        %4322 = vmatpush1.msra.mxu0 %v3865
        %4323 = vmatprep.subr.mxu0 %v3874
        %4324 = vmatpush1.msra.mxu0 %v3873
        %4325 = vmatprep.subr.mxu0 %v3882
        %4326 = vmatpush1.msra.mxu0 %v3881
        %4327 = vmatprep.subr.mxu0 %v3890
        %4328 = vmatpush1.msra.mxu0 %v3889
        %4329 = vmatprep.subr.mxu0 %v3898
        %4330 = vmatpush1.msra.mxu0 %v3897
        %4331 = vmatprep.subr.mxu0 %v3906
        %4332 = vmatpush1.msra.mxu0 %v3905
        %4333 = vmatprep.subr.mxu0 %v3914
        %4334 = vmatpush1.msra.mxu0 %v3913
        %4335 = vmatprep.subr.mxu0 %v3922
        %4336 = vmatpush1.msra.mxu0 %v3921
        %4337 = vmatprep.subr.mxu0 %v3930
        %4338 = vmatpush1.msra.mxu0 %v3929
        %4339 = vmatprep.subr.mxu0 %v3938
        %4340 = vmatpush1.msra.mxu0 %v3937
        %4341 = vmatprep.subr.mxu0 %v3946
        %4342 = vmatpush1.msra.mxu0 %v3945
        %4343 = vmatprep.subr.mxu0 %v3954
        %4344 = vmatpush1.msra.mxu0 %v3953
        %4345 = vmatprep.subr.mxu0 %v3962
        %4346 = vmatpush1.msra.mxu0 %v3961
        %4347 = vmatprep.subr.mxu0 %v3970
        %4348 = vmatpush1.msra.mxu0 %v3969
        %4349 = vmatprep.subr.mxu0 %v3978
        %4350 = vmatpush1.msra.mxu0 %v3977
        %4351 = vmatprep.subr.mxu0 %v3986
        %4352 = vmatpush1.msra.mxu0 %v3985
        %4353 = vmatprep.subr.mxu0 %v3994
        %4354 = vmatpush1.msra.mxu0 %v3993
        %4355 = vmatprep.subr.mxu0 %v4002
        %4356 = vmatpush1.msra.mxu0 %v4001
        %4357 = vmatprep.subr.mxu0 %v4010
        %4358 = vmatpush1.msra.mxu0 %v4009
        %4359 = vmatprep.subr.mxu0 %v4018
        %4360 = vmatpush1.msra.mxu0 %v4017
        %4361 = vmatprep.subr.mxu0 %v4026
        %4362 = vmatpush1.msra.mxu0 %v4025
        %4363 = vmatprep.subr.mxu0 %v4034
        %4364 = vmatpush1.msra.mxu0 %v4033
        %4365 = vmatprep.subr.mxu0 %v4042
        %4366 = vmatpush1.msra.mxu0 %v4041
        %4367 = vmatprep.subr.mxu0 %v4050
        %4368 = vmatpush1.msra.mxu0 %v4049
        %4369 = vmatprep.subr.mxu0 %v4058
        %4370 = vmatpush1.msra.mxu0 %v4057
        %4371 = vmatprep.subr.mxu0 %v4066
        %4372 = vmatpush1.msra.mxu0 %v4065
        %4373 = vmatprep.subr.mxu0 %v4074
        %4374 = vmatpush1.msra.mxu0 %v4073
        %4375 = vmatprep.subr.mxu0 %v4082
        %4376 = vmatpush1.msra.mxu0 %v4081
        %4377 = vmatprep.subr.mxu0 %v4090
        %4378 = vmatpush1.msra.mxu0 %v4089
        %4379 = vmatprep.subr.mxu0 %v4098
        %4380 = vmatpush1.msra.mxu0 %v4097
        %4381 = vmatprep.mubr.f32.mxu0 %v239
        %4382 = vmatmul.mubr.f32.gmra.mrb[0].mxu0 %v238
        %v4383 = vpop.f32.mrb[0].mxu0
        %v4384 = vadd.f32 %v4102, %v4383
        %v4385 = vpop.f32.mrb[0].mxu0
        %v4386 = vadd.f32 %v4102, %v4385
        %4387 = vdwg.mxu0
        %vm4388 = vcmp.ge.f32.partialorder %v4171, 0.0
        %vm4389 = vcmp.ge.f32.partialorder %v4173, 0.0
        %vm4390 = vcmp.ge.f32.partialorder %v4242, 0.0
        %vm4391 = vcmp.ge.f32.partialorder %v4244, 0.0
        %vm4392 = vcmp.ge.f32.partialorder %v4313, 0.0
        %vm4393 = vcmp.ge.f32.partialorder %v4315, 0.0
        %vm4394 = vcmp.ge.f32.partialorder %v4384, 0.0
        %vm4395 = vcmp.ge.f32.partialorder %v4386, 0.0
        %v4396 = vmul.f32 %v4171, 0.2
        %v4397 = vmul.f32 %v4173, 0.2
        %v4398 = vmul.f32 %v4242, 0.2
        %v4399 = vmul.f32 %v4244, 0.2
        %v4400 = vmul.f32 %v4313, 0.2
        %v4401 = vmul.f32 %v4315, 0.2
        %v4402 = vmul.f32 %v4384, 0.2
        %v4403 = vmul.f32 %v4386, 0.2
        %v4404 = vsel %vm4388, %v4171, %v4396
        %v4405 = vsel %vm4389, %v4173, %v4397
        %v4406 = vsel %vm4390, %v4242, %v4398
        %v4407 = vsel %vm4391, %v4244, %v4399
        %v4408 = vsel %vm4392, %v4313, %v4400
        %v4409 = vsel %vm4393, %v4315, %v4401
        %v4410 = vsel %vm4394, %v4384, %v4402
        %v4411 = vsel %vm4395, %v4386, %v4403
        %4412 = vst [vmem:[%s158] sm:$0xff] %v4404
        %4413 = vst [vmem:[%s158 + $0x8] sm:$0xff] %v4405
        %4414 = vst [vmem:[%s158 + $0x10] sm:$0xff] %v4406
        %4415 = vst [vmem:[%s158 + $0x18] sm:$0xff] %v4407
        %4416 = vst [vmem:[%s158 + $0x20] sm:$0xff] %v4408
        %4417 = vst [vmem:[%s158 + $0x28] sm:$0xff] %v4409
        %4418 = vst [vmem:[%s158 + $0x30] sm:$0xff] %v4410
        %4419 = vst [vmem:[%s158 + $0x38] sm:$0xff] %v4411
        %s4420 = sand.u32 %s91, 1
        %s4421 = scalar_lea.sflag [#allocation7], %s4420
        %s4422 = sand.u32 %s91, 1
        %s4423 = smul.addr %s4422, 64
        %s4424 = scalar_lea.vmem [#allocation8], %s4423
        // Predicated region
        $region49: #{tpu_custom_call.1} parent=27 // pred_check
          %p4425 = pneg %p101
        $region50: #{tpu_custom_call.1} parent=27 // pred_check_branch
          %4427 = sbr.rel (%p4425) target = $region52
        $region51: #{tpu_custom_call.1} parent=27 // pred_region
          %s4428 = sadd.s32 %s23, %s25
          %s4429 = smul.u32 8, %s4428
          %s4431 = ssub.s32 1024, 1024
          %4432 = vsyncadd %s4421, %s4431
          %s4433 = smul.addr %s24, 8
          %s4434 = sadd.s32 %s4429, %s4433
          %s4435 = smul.addr %s4434, 128
          %s4436 = scalar_lea.hbm %s3, %s4435
          %s4438 = sshll.u32 %s4424, 4
          %s4439 = int_to_ptr.vmem [resolvable:$true] %s4438
          %4441 = dma.vmem_to_hbm [thread:$0]  %s4439, 1024, %s4436, %s4421
        $region52: #{tpu_custom_call.1} parent=27 // pred_fallthru
          _
      $region28: #{tpu_custom_call.1} parent=5 // pred_fallthru
        _
      %p4442 = scmp.le.s32.totalorder 2, %s13
      // Predicated region
      $region53: #{tpu_custom_call.1} parent=5 // pred_check
        %p4443 = pneg %p4442
      $region54: #{tpu_custom_call.1} parent=5 // pred_check_branch
        %4445 = sbr.rel (%p4443) target = $region56
      $region55: #{tpu_custom_call.1} parent=5 // pred_region
        %s4446 = ssub.s32 %s13, 2
        // Predicated region
        $region57: #{tpu_custom_call.1} parent=55 // pred_check
          %p4447 = pneg %p107
        $region58: #{tpu_custom_call.1} parent=55 // pred_check_branch
          %4449 = sbr.rel (%p4447) target = $region60
        $region59: #{tpu_custom_call.1} parent=55 // pred_region
          %s4450 = sand.u32 %s92, 1
          %s4451 = scalar_lea.sflag [#allocation7], %s4450
          %s4452 = sand.u32 %s92, 1
          %s4453 = smul.addr %s4452, 64
          %s4454 = scalar_lea.vmem [#allocation8], %s4453
          %4455 = dma.done %s4451, 1024
        $region60: #{tpu_custom_call.1} parent=55 // pred_fallthru
          _
      $region56: #{tpu_custom_call.1} parent=5 // pred_fallthru
        _
    $region6: #{tpu_custom_call.1} parent=1 // loop_footer
      %s17 = sadd.s32 1, %s13
    $region7: #{tpu_custom_call.1} parent=1 // loop_footer_branch
      %12 = sbr.rel target = $region3
    $region8: #{tpu_custom_call.1} parent=1 // loop_exit
      _
    %4456 = vsyncpa [#allocation6], 1
    %s4457 = scalar_lea.sflag [#allocation6], 1
    %4458 = vsyncpa %s4457, 1
    %4459 = vsyncpa [#allocation7], 1
    %s4460 = scalar_lea.sflag [#allocation7], 1
    %4461 = vsyncpa %s4460, 1
  %4462 = vsyncmov [#allocation4]
  %s4463 = vpop.sfrf %4462
  %p4464 = scmp.eq.s32.totalorder %s4463, 0
  %p4465 = pneg %p4464
  %4467 = shalt.err (%p4465)
  %s4468 = scalar_lea.sflag [#allocation4], 1
  %4469 = vsyncmov %s4468
  %s4470 = vpop.sfrf %4469
  %p4471 = scmp.eq.s32.totalorder %s4470, 0
  %p4472 = pneg %p4471
  %4474 = shalt.err (%p4472)

</llo_original>
